<compile_context>
chip_gen: v5e
topology: v5e:2x2
jax: 0.10.0
libtpu: 0.0.40
codegen_flags: <defaults>
</compile_context>

<pallas_src>
import jax
import jax.numpy as jnp
from jax import lax
from jax.experimental import pallas as pl
from jax.experimental.pallas import tpu as pltpu


def _round_up(x, m):
    return ((x + m - 1) // m) * m


def _cdiv(a, b):
    return -(-a // b)


# -----------------------------------------------------------------------------
# Pallas kernel
# -----------------------------------------------------------------------------
def make_kernel(T, BP, Din, H, L, OP):
    H2, H4, H6, H8 = 2 * H, 4 * H, 6 * H, 8 * H
    n_lstm = 3 * L

    def time_reverse(x):
        # Reverse the T row-blocks (BP sublane-aligned rows each) of a value.
        return jnp.concatenate(
            [x[s * BP:(s + 1) * BP, :] for s in range(T - 1, -1, -1)], axis=0)

    def kernel(*refs):
        xcol_ref, wc_ref, bc_ref, bncs_ref, bncb_ref = refs[0:5]
        lstm_refs = refs[5:5 + n_lstm]
        (wa_ref, ba_ref, w1_ref, b1_ref, bn1s_ref, bn1b_ref,
         w2_ref, b2_ref) = refs[5 + n_lstm:5 + n_lstm + 8]
        out_ref = refs[5 + n_lstm + 8]
        gpair_ref = refs[5 + n_lstm + 9]          # VMEM (T*BP, 8H) scratch

        # --- Conv1d(k=3, pad=1) as im2col matmul + BatchNorm(eval) + ReLU -----
        y = jnp.dot(xcol_ref[...], wc_ref[...],
                    preferred_element_type=jnp.float32) + bc_ref[...]
        src = jnp.maximum(y * bncs_ref[...] + bncb_ref[...], 0.0)    # (T*BP, H)

        # --- Bidirectional multi-layer LSTM ------------------------------------
        for l in range(L):
            wih_ref, whh_ref, bpk_ref = lstm_refs[3 * l:3 * l + 3]

            # Fused, time-paired input projection (off the serial path): row
            # block t of gpair holds the fwd gates for time t and the bwd gates
            # for time T-1-t, columns [i_f,i_b,f_f,f_b,o_f,o_b,g_f,g_b].
            src2 = jnp.concatenate([src, time_reverse(src)], axis=-1)
            gpair_ref[...] = (jnp.dot(src2, wih_ref[...],
                                      preferred_element_type=jnp.float32)
                              + bpk_ref[...])

            whh_blk = whh_ref[...]        # hoisted: loaded once per layer (2H, 8H)

            h = jnp.zeros((BP, H2), jnp.float32)   # [h_fwd | h_bwd]
            c = jnp.zeros((BP, H2), jnp.float32)   # [c_fwd | c_bwd]
            h_steps = []
            # Fully unrolled (T small & static); fwd step t and bwd step t are
            # carried by ONE block-diagonal recurrent GEMM per iteration.
            for t in range(T):
                g = gpair_ref[t * BP:(t + 1) * BP, :] + jnp.dot(
                    h, whh_blk, preferred_element_type=jnp.float32)  # (BP, 8H)
                sig = jax.nn.sigmoid(g[:, 0:H6])
                i_g = sig[:, 0:H2]
                f_g = sig[:, H2:H4]
                o_g = sig[:, H4:H6]
                g_g = jnp.tanh(g[:, H6:H8])
                c = f_g * c + i_g * g_g
                h = o_g * jnp.tanh(c)
                h_steps.append(h)

            # Assemble the time-ordered (T*BP, 2H) layer output with dense
            # concatenations (no per-step masked stores on the serial path).
            src = jnp.concatenate(
                [jnp.concatenate([h_steps[u][:, 0:H],
                                  h_steps[T - 1 - u][:, H:H2]], axis=-1)
                 for u in range(T)], axis=0)

        # --- Attention: tanh(linear) -> softmax over time -> weighted sum ------
        sc = jnp.tanh(jnp.sum(src * wa_ref[...], axis=-1, keepdims=True)
                      + ba_ref[...])                                  # (T*BP, 1)
        sc_t = [sc[t * BP:(t + 1) * BP, :] for t in range(T)]
        m = sc_t[0]
        for t in range(1, T):
            m = jnp.maximum(m, sc_t[t])
        den = jnp.zeros((BP, 1), jnp.float32)
        num = jnp.zeros((BP, H2), jnp.float32)
        for t in range(T):
            e = jnp.exp(sc_t[t] - m)                                  # (BP, 1)
            den = den + e
            num = num + e * src[t * BP:(t + 1) * BP, :]               # (BP, 2H)
        context = num / den        # exact reciprocal for strict parity

        # --- fc1 + BatchNorm(eval) + ReLU + (dropout=identity) + fc2 -----------
        z = jnp.dot(context, w1_ref[...],
                    preferred_element_type=jnp.float32) + b1_ref[...]
        z = jnp.maximum(z * bn1s_ref[...] + bn1b_ref[...], 0.0)
        out_ref[...] = jnp.dot(z, w2_ref[...],
                               preferred_element_type=jnp.float32) + b2_ref[...]

    return kernel


# -----------------------------------------------------------------------------
# Parameter packing for the fused kernel layout
# -----------------------------------------------------------------------------
def _reorder_ifog(w, H):
    # columns in torch gate order [i, f, g, o] -> [i, f, o, g]
    return jnp.concatenate(
        [w[:, 0:H], w[:, H:2 * H], w[:, 3 * H:4 * H], w[:, 2 * H:3 * H]], axis=1)


def _interleave_dirs(wf, wb, H):
    # wf, wb: (rows, 4H) in order [i, f, o, g] -> (rows, 8H)
    # [i_f, i_b, f_f, f_b, o_f, o_b, g_f, g_b]
    cols = []
    for k in range(4):
        cols += [wf[:, k * H:(k + 1) * H], wb[:, k * H:(k + 1) * H]]
    return jnp.concatenate(cols, axis=1)


def pack_lstm_layer(layer, H):
    wih_f, whh_f, b_f, wih_b, whh_b, b_b = layer   # wih: (C,4H), whh: (H,4H), b: (1,4H)
    wf = _reorder_ifog(wih_f, H)
    wb = _reorder_ifog(wih_b, H)
    z = jnp.zeros_like(wf)
    # rows 0:C act on src (time t) -> fwd columns; rows C:2C act on
    # time_reverse(src) (time T-1-t) -> bwd columns.
    wih_pack = jnp.concatenate([_interleave_dirs(wf, z, H),
                                _interleave_dirs(z, wb, H)], axis=0)   # (2C, 8H)
    rf = _reorder_ifog(whh_f, H)
    rb = _reorder_ifog(whh_b, H)
    zr = jnp.zeros_like(rf)
    whh_blk = jnp.concatenate([_interleave_dirs(rf, zr, H),
                               _interleave_dirs(zr, rb, H)], axis=0)   # (2H, 8H)
    b_pack = _interleave_dirs(_reorder_ifog(b_f, H),
                              _reorder_ifog(b_b, H), H)                # (1, 8H)
    return wih_pack, whh_blk, b_pack


# -----------------------------------------------------------------------------
# Glue: im2col, parameters, wrapper
# -----------------------------------------------------------------------------
def im2col_k3(x):
    # x: (B, T, D) -> (B, T, 3D); column blocks are [x_{t-1}, x_t, x_{t+1}] (zero pad)
    Bb, T, D = x.shape
    zero = jnp.zeros((Bb, 1, D), x.dtype)
    x_prev = jnp.concatenate([zero, x[:, :-1]], axis=1)
    x_next = jnp.concatenate([x[:, 1:], zero], axis=1)
    return jnp.concatenate([x_prev, x, x_next], axis=-1)


def _uniform(key, shape, bound):
    return jax.random.uniform(key, shape, jnp.float32, minval=-bound, maxval=bound)


def init_params(key, Din, H, L, O):
    H2 = 2 * H
    eps = 1e-5
    keys = iter(jax.random.split(key, 64))
    p = {}

    # Conv1d(Din -> H, kernel=3, padding=1); torch weight layout (out, in, k)
    kb = 1.0 / (Din * 3) ** 0.5
    wc = _uniform(next(keys), (H, Din, 3), kb)
    p['Wc'] = jnp.transpose(wc, (2, 1, 0)).reshape(3 * Din, H)     # (3*Din, H)
    p['bc'] = _uniform(next(keys), (H,), kb).reshape(1, H)

    # BatchNorm1d(H): eval running stats (mean=0, var=1), gamma=1, beta=0 folded.
    p['bnc_s'] = jnp.full((1, H), 1.0 / (1.0 + eps) ** 0.5, jnp.float32)
    p['bnc_b'] = jnp.zeros((1, H), jnp.float32)

    # Bidirectional LSTM (PyTorch gate order i, f, g, o).
    lb = 1.0 / H ** 0.5
    lstm = []
    for l in range(L):
        in_dim = H if l == 0 else H2
        layer = []
        for _direction in range(2):
            wih = _uniform(next(keys), (4 * H, in_dim), lb)
            whh = _uniform(next(keys), (4 * H, H), lb)
            bih = _uniform(next(keys), (4 * H,), lb)
            bhh = _uniform(next(keys), (4 * H,), lb)
            layer += [jnp.transpose(wih), jnp.transpose(whh),
                      (bih + bhh).reshape(1, 4 * H)]
        lstm.append(tuple(layer))
    p['lstm'] = lstm

    # Attention linear (2H -> 1)
    ab = 1.0 / H2 ** 0.5
    p['Wa'] = _uniform(next(keys), (1, H2), ab)
    p['ba'] = _uniform(next(keys), (1, 1), ab)

    # fc1 (2H -> H), bn_fc1, fc2 (H -> O)
    f1b = 1.0 / H2 ** 0.5
    p['W1'] = jnp.transpose(_uniform(next(keys), (H, H2), f1b))
    p['b1'] = _uniform(next(keys), (1, H), f1b)
    p['bn1_s'] = jnp.full((1, H), 1.0 / (1.0 + eps) ** 0.5, jnp.float32)
    p['bn1_b'] = jnp.zeros((1, H), jnp.float32)
    f2b = 1.0 / H ** 0.5
    p['W2'] = jnp.transpose(_uniform(next(keys), (O, H), f2b))
    p['b2'] = _uniform(next(keys), (1, O), f2b)
    return p


def bilstm_attention_forward(x, params, H, L, O, max_bp=128):
    B, T, Din = x.shape

    # Batch-tile sizing: amortize the serial recurrence over as many sequences
    # as possible; when the batch is large enough, keep >= 2 tiles so the
    # "parallel" grid axis can feed both v7x TensorCores.
    BP = min(max_bp, _round_up(B, 8))
    if B > max_bp:
        BP = min(BP, _round_up(_cdiv(B, 2), 8))
    G = _cdiv(B, BP)
    Bpad = G * BP
    OP = _round_up(max(O, 128), 128)        # lane-dense output width

    xcol = im2col_k3(x)                                            # (B, T, 3Din)
    xcol = jnp.pad(xcol, ((0, Bpad - B), (0, 0), (0, 0)))
    # tile g, time t, row r  ->  global row (g*T + t)*BP + r ; batch = g*BP + r
    xcol_tm = (xcol.reshape(G, BP, T, 3 * Din)
               .transpose(0, 2, 1, 3)
               .reshape(G * T * BP, 3 * Din))

    lstm_packed = []
    for layer in params['lstm']:
        lstm_packed += list(pack_lstm_layer(layer, H))

    W2p = jnp.pad(params['W2'], ((0, 0), (0, OP - O)))
    b2p = jnp.pad(params['b2'], ((0, 0), (0, OP - O)))

    inputs = ([xcol_tm, params['Wc'], params['bc'], params['bnc_s'], params['bnc_b']]
              + lstm_packed
              + [params['Wa'], params['ba'], params['W1'], params['b1'],
                 params['bn1_s'], params['bn1_b'], W2p, b2p])

    def full_spec(a):
        nd = a.ndim
        return pl.BlockSpec(a.shape, lambda g, _nd=nd: (0,) * _nd)

    in_specs = ([pl.BlockSpec((T * BP, 3 * Din), lambda g: (g, 0))]
                + [full_spec(a) for a in inputs[1:]])

    out = pl.pallas_call(
        make_kernel(T, BP, Din, H, L, OP),
        out_shape=jax.ShapeDtypeStruct((G * BP, OP), jnp.float32),
        grid=(G,),
        in_specs=in_specs,
        out_specs=pl.BlockSpec((BP, OP), lambda g: (g, 0)),
        scratch_shapes=[pltpu.VMEM((T * BP, 8 * H), jnp.float32)],   # paired gates
        compiler_params=pltpu.CompilerParams(
            dimension_semantics=("parallel",),
            vmem_limit_bytes=32 * 1024 * 1024),
    )(*inputs)
    return out[:B, :O]


# -----------------------------------------------------------------------------
# Pure-JAX reference (for correctness check)
# -----------------------------------------------------------------------------
def ref_forward(x, p, H, L):
    B, T, Din = x.shape
    xcol = im2col_k3(x)
    y = xcol @ p['Wc'] + p['bc']
    y = jnp.maximum(y * p['bnc_s'] + p['bnc_b'], 0.0)              # (B, T, H)
    inp = y

    def run_dir(x_tb, wih, whh, b):
        def step(carry, x_t):
            h, c = carry
            g = x_t @ wih + h @ whh + b
            i = jax.nn.sigmoid(g[:, 0:H]); f = jax.nn.sigmoid(g[:, H:2 * H])
            gg = jnp.tanh(g[:, 2 * H:3 * H]); o = jax.nn.sigmoid(g[:, 3 * H:4 * H])
            c = f * c + i * gg
            h = o * jnp.tanh(c)
            return (h, c), h
        init = (jnp.zeros((B, H), jnp.float32), jnp.zeros((B, H), jnp.float32))
        _, hs = lax.scan(step, init, x_tb)
        return hs                                                  # (T, B, H)

    for l in range(L):
        wih_f, whh_f, b_f, wih_b, whh_b, b_b = p['lstm'][l]
        x_tb = jnp.transpose(inp, (1, 0, 2))
        hf = run_dir(x_tb, wih_f, whh_f, b_f)
        hb = run_dir(x_tb[::-1], wih_b, whh_b, b_b)[::-1]
        inp = jnp.transpose(jnp.concatenate([hf, hb], axis=-1), (1, 0, 2))

    out = inp                                                      # (B, T, 2H)
    sc = jnp.tanh(jnp.sum(out * p['Wa'][0], axis=-1, keepdims=True) + p['ba'][0, 0])
    w = jax.nn.softmax(sc, axis=1)
    context = jnp.sum(w * out, axis=1)                             # (B, 2H)
    z = jnp.maximum((context @ p['W1'] + p['b1']) * p['bn1_s'] + p['bn1_b'], 0.0)
    return z @ p['W2'] + p['b2']


# -----------------------------------------------------------------------------
if __name__ == "__main__":
    B, T = 2, 8
    INPUT_DIM, HIDDEN_DIM, NUM_LAYERS, OUTPUT_DIM = 8, 32, 2, 4

    key = jax.random.PRNGKey(0)
    kx, kp = jax.random.split(key)
    x = jax.random.normal(kx, (B, T, INPUT_DIM), jnp.float32)
    params = init_params(kp, INPUT_DIM, HIDDEN_DIM, NUM_LAYERS, OUTPUT_DIM)

    out = bilstm_attention_forward(x, params, HIDDEN_DIM, NUM_LAYERS, OUTPUT_DIM)
    out = jax.block_until_ready(out)

    ref = jax.block_until_ready(ref_forward(x, params, HIDDEN_DIM, NUM_LAYERS))
    assert out.shape == (B, OUTPUT_DIM)
    assert jnp.allclose(out, ref, rtol=2e-3, atol=2e-3), (out, ref)
    print("KERNEL_OK")
</pallas_src>

<mosaic_0001>
module attributes {stable_mosaic.version = 11 : i64} {
  func.func @kernel(%arg0: i32, %arg1: memref<64x24xf32, #tpu.memory_space<vmem>>, %arg2: memref<24x32xf32, #tpu.memory_space<vmem>>, %arg3: memref<1x32xf32, #tpu.memory_space<vmem>>, %arg4: memref<1x32xf32, #tpu.memory_space<vmem>>, %arg5: memref<1x32xf32, #tpu.memory_space<vmem>>, %arg6: memref<64x256xf32, #tpu.memory_space<vmem>>, %arg7: memref<64x256xf32, #tpu.memory_space<vmem>>, %arg8: memref<1x256xf32, #tpu.memory_space<vmem>>, %arg9: memref<128x256xf32, #tpu.memory_space<vmem>>, %arg10: memref<64x256xf32, #tpu.memory_space<vmem>>, %arg11: memref<1x256xf32, #tpu.memory_space<vmem>>, %arg12: memref<1x64xf32, #tpu.memory_space<vmem>>, %arg13: memref<1x1xf32, #tpu.memory_space<vmem>>, %arg14: memref<64x32xf32, #tpu.memory_space<vmem>>, %arg15: memref<1x32xf32, #tpu.memory_space<vmem>>, %arg16: memref<1x32xf32, #tpu.memory_space<vmem>>, %arg17: memref<1x32xf32, #tpu.memory_space<vmem>>, %arg18: memref<32x128xf32, #tpu.memory_space<vmem>>, %arg19: memref<1x128xf32, #tpu.memory_space<vmem>>, %arg20: memref<8x128xf32, #tpu.memory_space<vmem>>, %arg21: memref<64x256xf32, #tpu.memory_space<vmem>>) attributes {dimension_semantics = [#tpu.dimension_semantics<parallel>], iteration_bounds = array<i64: 1>, scalar_prefetch = 0 : i64, scratch_operands = 1 : i64, tpu.core_type = #tpu.core_type<tc>, window_params = [{transform_indices = @transform_0, window_bounds = array<i64: 64, 24>}, {pipeline_mode = #tpu.pipeline_mode<synchronous>, transform_indices = @transform_1, window_bounds = array<i64: 24, 32>}, {pipeline_mode = #tpu.pipeline_mode<synchronous>, transform_indices = @transform_2, window_bounds = array<i64: 1, 32>}, {pipeline_mode = #tpu.pipeline_mode<synchronous>, transform_indices = @transform_3, window_bounds = array<i64: 1, 32>}, {pipeline_mode = #tpu.pipeline_mode<synchronous>, transform_indices = @transform_4, window_bounds = array<i64: 1, 32>}, {pipeline_mode = #tpu.pipeline_mode<synchronous>, transform_indices = @transform_5, window_bounds = array<i64: 64, 256>}, {pipeline_mode = #tpu.pipeline_mode<synchronous>, transform_indices = @transform_6, window_bounds = array<i64: 64, 256>}, {pipeline_mode = #tpu.pipeline_mode<synchronous>, transform_indices = @transform_7, window_bounds = array<i64: 1, 256>}, {pipeline_mode = #tpu.pipeline_mode<synchronous>, transform_indices = @transform_8, window_bounds = array<i64: 128, 256>}, {pipeline_mode = #tpu.pipeline_mode<synchronous>, transform_indices = @transform_9, window_bounds = array<i64: 64, 256>}, {pipeline_mode = #tpu.pipeline_mode<synchronous>, transform_indices = @transform_10, window_bounds = array<i64: 1, 256>}, {pipeline_mode = #tpu.pipeline_mode<synchronous>, transform_indices = @transform_11, window_bounds = array<i64: 1, 64>}, {pipeline_mode = #tpu.pipeline_mode<synchronous>, transform_indices = @transform_12, window_bounds = array<i64: 1, 1>}, {pipeline_mode = #tpu.pipeline_mode<synchronous>, transform_indices = @transform_13, window_bounds = array<i64: 64, 32>}, {pipeline_mode = #tpu.pipeline_mode<synchronous>, transform_indices = @transform_14, window_bounds = array<i64: 1, 32>}, {pipeline_mode = #tpu.pipeline_mode<synchronous>, transform_indices = @transform_15, window_bounds = array<i64: 1, 32>}, {pipeline_mode = #tpu.pipeline_mode<synchronous>, transform_indices = @transform_16, window_bounds = array<i64: 1, 32>}, {pipeline_mode = #tpu.pipeline_mode<synchronous>, transform_indices = @transform_17, window_bounds = array<i64: 32, 128>}, {pipeline_mode = #tpu.pipeline_mode<synchronous>, transform_indices = @transform_18, window_bounds = array<i64: 1, 128>}, {transform_indices = @transform_19, window_bounds = array<i64: 8, 128>}]} {
    %c0 = arith.constant 0 : index
    %c0_0 = arith.constant 0 : index
    %0 = vector.load %arg1[%c0, %c0_0] : memref<64x24xf32, #tpu.memory_space<vmem>>, vector<64x24xf32>
    %c0_1 = arith.constant 0 : index
    %c0_2 = arith.constant 0 : index
    %1 = vector.load %arg2[%c0_1, %c0_2] : memref<24x32xf32, #tpu.memory_space<vmem>>, vector<24x32xf32>
    %cst = arith.constant dense<0.000000e+00> : vector<64x32xf32>
    %2 = tpu.matmul %0, %1, %cst {dimension_numbers = #tpu.dot_dimension_numbers<[1], [0], [0], [1], [0, 0, 1, 1], [], []>} : vector<64x24xf32>, vector<24x32xf32>, vector<64x32xf32> -> vector<64x32xf32>
    %c0_3 = arith.constant 0 : index
    %c0_4 = arith.constant 0 : index
    %3 = vector.load %arg3[%c0_3, %c0_4] : memref<1x32xf32, #tpu.memory_space<vmem>>, vector<1x32xf32>
    %4 = vector.broadcast %3 : vector<1x32xf32> to vector<64x32xf32>
    %5 = arith.addf %2, %4 : vector<64x32xf32>
    %c0_5 = arith.constant 0 : index
    %c0_6 = arith.constant 0 : index
    %6 = vector.load %arg4[%c0_5, %c0_6] : memref<1x32xf32, #tpu.memory_space<vmem>>, vector<1x32xf32>
    %7 = vector.broadcast %6 : vector<1x32xf32> to vector<64x32xf32>
    %8 = arith.mulf %5, %7 : vector<64x32xf32>
    %c0_7 = arith.constant 0 : index
    %c0_8 = arith.constant 0 : index
    %9 = vector.load %arg5[%c0_7, %c0_8] : memref<1x32xf32, #tpu.memory_space<vmem>>, vector<1x32xf32>
    %10 = vector.broadcast %9 : vector<1x32xf32> to vector<64x32xf32>
    %11 = arith.addf %8, %10 : vector<64x32xf32>
    %cst_9 = arith.constant 0.000000e+00 : f32
    %12 = vector.broadcast %cst_9 : f32 to vector<64x32xf32>
    %13 = arith.maximumf %11, %12 : vector<64x32xf32>
    %14 = vector.extract_strided_slice %13 {offsets = [56, 0], sizes = [8, 32], strides = [1, 1]} : vector<64x32xf32> to vector<8x32xf32>
    %15 = vector.extract_strided_slice %13 {offsets = [48, 0], sizes = [8, 32], strides = [1, 1]} : vector<64x32xf32> to vector<8x32xf32>
    %16 = vector.extract_strided_slice %13 {offsets = [40, 0], sizes = [8, 32], strides = [1, 1]} : vector<64x32xf32> to vector<8x32xf32>
    %17 = vector.extract_strided_slice %13 {offsets = [32, 0], sizes = [8, 32], strides = [1, 1]} : vector<64x32xf32> to vector<8x32xf32>
    %18 = vector.extract_strided_slice %13 {offsets = [24, 0], sizes = [8, 32], strides = [1, 1]} : vector<64x32xf32> to vector<8x32xf32>
    %19 = vector.extract_strided_slice %13 {offsets = [16, 0], sizes = [8, 32], strides = [1, 1]} : vector<64x32xf32> to vector<8x32xf32>
    %20 = vector.extract_strided_slice %13 {offsets = [8, 0], sizes = [8, 32], strides = [1, 1]} : vector<64x32xf32> to vector<8x32xf32>
    %21 = vector.extract_strided_slice %13 {offsets = [0, 0], sizes = [8, 32], strides = [1, 1]} : vector<64x32xf32> to vector<8x32xf32>
    %22 = tpu.concatenate %14, %15, %16, %17, %18, %19, %20, %21 in 0 : vector<8x32xf32>, vector<8x32xf32>, vector<8x32xf32>, vector<8x32xf32>, vector<8x32xf32>, vector<8x32xf32>, vector<8x32xf32>, vector<8x32xf32> -> vector<64x32xf32>
    %23 = tpu.concatenate %13, %22 in 1 : vector<64x32xf32>, vector<64x32xf32> -> vector<64x64xf32>
    %c0_10 = arith.constant 0 : index
    %c0_11 = arith.constant 0 : index
    %24 = vector.load %arg6[%c0_10, %c0_11] : memref<64x256xf32, #tpu.memory_space<vmem>>, vector<64x256xf32>
    %cst_12 = arith.constant dense<0.000000e+00> : vector<64x256xf32>
    %25 = tpu.matmul %23, %24, %cst_12 {dimension_numbers = #tpu.dot_dimension_numbers<[1], [0], [0], [1], [0, 0, 1, 1], [], []>} : vector<64x64xf32>, vector<64x256xf32>, vector<64x256xf32> -> vector<64x256xf32>
    %c0_13 = arith.constant 0 : index
    %c0_14 = arith.constant 0 : index
    %26 = vector.load %arg8[%c0_13, %c0_14] : memref<1x256xf32, #tpu.memory_space<vmem>>, vector<1x256xf32>
    %27 = vector.broadcast %26 : vector<1x256xf32> to vector<64x256xf32>
    %28 = arith.addf %25, %27 : vector<64x256xf32>
    %c0_15 = arith.constant 0 : index
    %c0_16 = arith.constant 0 : index
    %29 = vector.load %arg21[%c0_15, %c0_16] : memref<64x256xf32, #tpu.memory_space<vmem>>, vector<64x256xf32>
    tpu.vector_store %arg21[%c0_15, %c0_16], %28 {strides = array<i32>} : memref<64x256xf32, #tpu.memory_space<vmem>>, vector<64x256xf32>,
    %c0_17 = arith.constant 0 : index
    %c0_18 = arith.constant 0 : index
    %30 = vector.load %arg7[%c0_17, %c0_18] : memref<64x256xf32, #tpu.memory_space<vmem>>, vector<64x256xf32>
    %cst_19 = arith.constant 0.000000e+00 : f32
    %31 = vector.broadcast %cst_19 : f32 to vector<8x64xf32>
    %cst_20 = arith.constant 0.000000e+00 : f32
    %32 = vector.broadcast %cst_20 : f32 to vector<8x64xf32>
    %c0_21 = arith.constant 0 : index
    %c0_22 = arith.constant 0 : index
    %33 = vector.load %arg21[%c0_21, %c0_22] : memref<64x256xf32, #tpu.memory_space<vmem>>, vector<8x256xf32>
    %cst_23 = arith.constant dense<0.000000e+00> : vector<8x256xf32>
    %34 = tpu.matmul %31, %30, %cst_23 {dimension_numbers = #tpu.dot_dimension_numbers<[1], [0], [0], [1], [0, 0, 1, 1], [], []>} : vector<8x64xf32>, vector<64x256xf32>, vector<8x256xf32> -> vector<8x256xf32>
    %35 = arith.addf %33, %34 : vector<8x256xf32>
    %36 = vector.extract_strided_slice %35 {offsets = [0, 0], sizes = [8, 192], strides = [1, 1]} : vector<8x256xf32> to vector<8x192xf32>
    %37 = arith.negf %36 : vector<8x192xf32>
    %38 = math.exp %37 : vector<8x192xf32>
    %cst_24 = arith.constant 1.000000e+00 : f32
    %39 = vector.broadcast %cst_24 : f32 to vector<8x192xf32>
    %40 = arith.addf %39, %38 : vector<8x192xf32>
    %41 = arith.divf %39, %40 : vector<8x192xf32>
    %42 = vector.extract_strided_slice %41 {offsets = [0, 0], sizes = [8, 64], strides = [1, 1]} : vector<8x192xf32> to vector<8x64xf32>
    %43 = vector.extract_strided_slice %41 {offsets = [0, 64], sizes = [8, 64], strides = [1, 1]} : vector<8x192xf32> to vector<8x64xf32>
    %44 = vector.extract_strided_slice %41 {offsets = [0, 128], sizes = [8, 64], strides = [1, 1]} : vector<8x192xf32> to vector<8x64xf32>
    %45 = vector.extract_strided_slice %35 {offsets = [0, 192], sizes = [8, 64], strides = [1, 1]} : vector<8x256xf32> to vector<8x64xf32>
    %46 = math.tanh %45 : vector<8x64xf32>
    %47 = arith.mulf %43, %32 : vector<8x64xf32>
    %48 = arith.mulf %42, %46 : vector<8x64xf32>
    %49 = arith.addf %47, %48 : vector<8x64xf32>
    %50 = math.tanh %49 : vector<8x64xf32>
    %51 = arith.mulf %44, %50 : vector<8x64xf32>
    %c8 = arith.constant 8 : index
    %c0_25 = arith.constant 0 : index
    %52 = vector.load %arg21[%c8, %c0_25] : memref<64x256xf32, #tpu.memory_space<vmem>>, vector<8x256xf32>
    %cst_26 = arith.constant dense<0.000000e+00> : vector<8x256xf32>
    %53 = tpu.matmul %51, %30, %cst_26 {dimension_numbers = #tpu.dot_dimension_numbers<[1], [0], [0], [1], [0, 0, 1, 1], [], []>} : vector<8x64xf32>, vector<64x256xf32>, vector<8x256xf32> -> vector<8x256xf32>
    %54 = arith.addf %52, %53 : vector<8x256xf32>
    %55 = vector.extract_strided_slice %54 {offsets = [0, 0], sizes = [8, 192], strides = [1, 1]} : vector<8x256xf32> to vector<8x192xf32>
    %56 = arith.negf %55 : vector<8x192xf32>
    %57 = math.exp %56 : vector<8x192xf32>
    %cst_27 = arith.constant 1.000000e+00 : f32
    %58 = vector.broadcast %cst_27 : f32 to vector<8x192xf32>
    %59 = arith.addf %58, %57 : vector<8x192xf32>
    %60 = arith.divf %58, %59 : vector<8x192xf32>
    %61 = vector.extract_strided_slice %60 {offsets = [0, 0], sizes = [8, 64], strides = [1, 1]} : vector<8x192xf32> to vector<8x64xf32>
    %62 = vector.extract_strided_slice %60 {offsets = [0, 64], sizes = [8, 64], strides = [1, 1]} : vector<8x192xf32> to vector<8x64xf32>
    %63 = vector.extract_strided_slice %60 {offsets = [0, 128], sizes = [8, 64], strides = [1, 1]} : vector<8x192xf32> to vector<8x64xf32>
    %64 = vector.extract_strided_slice %54 {offsets = [0, 192], sizes = [8, 64], strides = [1, 1]} : vector<8x256xf32> to vector<8x64xf32>
    %65 = math.tanh %64 : vector<8x64xf32>
    %66 = arith.mulf %62, %49 : vector<8x64xf32>
    %67 = arith.mulf %61, %65 : vector<8x64xf32>
    %68 = arith.addf %66, %67 : vector<8x64xf32>
    %69 = math.tanh %68 : vector<8x64xf32>
    %70 = arith.mulf %63, %69 : vector<8x64xf32>
    %c16 = arith.constant 16 : index
    %c0_28 = arith.constant 0 : index
    %71 = vector.load %arg21[%c16, %c0_28] : memref<64x256xf32, #tpu.memory_space<vmem>>, vector<8x256xf32>
    %cst_29 = arith.constant dense<0.000000e+00> : vector<8x256xf32>
    %72 = tpu.matmul %70, %30, %cst_29 {dimension_numbers = #tpu.dot_dimension_numbers<[1], [0], [0], [1], [0, 0, 1, 1], [], []>} : vector<8x64xf32>, vector<64x256xf32>, vector<8x256xf32> -> vector<8x256xf32>
    %73 = arith.addf %71, %72 : vector<8x256xf32>
    %74 = vector.extract_strided_slice %73 {offsets = [0, 0], sizes = [8, 192], strides = [1, 1]} : vector<8x256xf32> to vector<8x192xf32>
    %75 = arith.negf %74 : vector<8x192xf32>
    %76 = math.exp %75 : vector<8x192xf32>
    %cst_30 = arith.constant 1.000000e+00 : f32
    %77 = vector.broadcast %cst_30 : f32 to vector<8x192xf32>
    %78 = arith.addf %77, %76 : vector<8x192xf32>
    %79 = arith.divf %77, %78 : vector<8x192xf32>
    %80 = vector.extract_strided_slice %79 {offsets = [0, 0], sizes = [8, 64], strides = [1, 1]} : vector<8x192xf32> to vector<8x64xf32>
    %81 = vector.extract_strided_slice %79 {offsets = [0, 64], sizes = [8, 64], strides = [1, 1]} : vector<8x192xf32> to vector<8x64xf32>
    %82 = vector.extract_strided_slice %79 {offsets = [0, 128], sizes = [8, 64], strides = [1, 1]} : vector<8x192xf32> to vector<8x64xf32>
    %83 = vector.extract_strided_slice %73 {offsets = [0, 192], sizes = [8, 64], strides = [1, 1]} : vector<8x256xf32> to vector<8x64xf32>
    %84 = math.tanh %83 : vector<8x64xf32>
    %85 = arith.mulf %81, %68 : vector<8x64xf32>
    %86 = arith.mulf %80, %84 : vector<8x64xf32>
    %87 = arith.addf %85, %86 : vector<8x64xf32>
    %88 = math.tanh %87 : vector<8x64xf32>
    %89 = arith.mulf %82, %88 : vector<8x64xf32>
    %c24 = arith.constant 24 : index
    %c0_31 = arith.constant 0 : index
    %90 = vector.load %arg21[%c24, %c0_31] : memref<64x256xf32, #tpu.memory_space<vmem>>, vector<8x256xf32>
    %cst_32 = arith.constant dense<0.000000e+00> : vector<8x256xf32>
    %91 = tpu.matmul %89, %30, %cst_32 {dimension_numbers = #tpu.dot_dimension_numbers<[1], [0], [0], [1], [0, 0, 1, 1], [], []>} : vector<8x64xf32>, vector<64x256xf32>, vector<8x256xf32> -> vector<8x256xf32>
    %92 = arith.addf %90, %91 : vector<8x256xf32>
    %93 = vector.extract_strided_slice %92 {offsets = [0, 0], sizes = [8, 192], strides = [1, 1]} : vector<8x256xf32> to vector<8x192xf32>
    %94 = arith.negf %93 : vector<8x192xf32>
    %95 = math.exp %94 : vector<8x192xf32>
    %cst_33 = arith.constant 1.000000e+00 : f32
    %96 = vector.broadcast %cst_33 : f32 to vector<8x192xf32>
    %97 = arith.addf %96, %95 : vector<8x192xf32>
    %98 = arith.divf %96, %97 : vector<8x192xf32>
    %99 = vector.extract_strided_slice %98 {offsets = [0, 0], sizes = [8, 64], strides = [1, 1]} : vector<8x192xf32> to vector<8x64xf32>
    %100 = vector.extract_strided_slice %98 {offsets = [0, 64], sizes = [8, 64], strides = [1, 1]} : vector<8x192xf32> to vector<8x64xf32>
    %101 = vector.extract_strided_slice %98 {offsets = [0, 128], sizes = [8, 64], strides = [1, 1]} : vector<8x192xf32> to vector<8x64xf32>
    %102 = vector.extract_strided_slice %92 {offsets = [0, 192], sizes = [8, 64], strides = [1, 1]} : vector<8x256xf32> to vector<8x64xf32>
    %103 = math.tanh %102 : vector<8x64xf32>
    %104 = arith.mulf %100, %87 : vector<8x64xf32>
    %105 = arith.mulf %99, %103 : vector<8x64xf32>
    %106 = arith.addf %104, %105 : vector<8x64xf32>
    %107 = math.tanh %106 : vector<8x64xf32>
    %108 = arith.mulf %101, %107 : vector<8x64xf32>
    %c32 = arith.constant 32 : index
    %c0_34 = arith.constant 0 : index
    %109 = vector.load %arg21[%c32, %c0_34] : memref<64x256xf32, #tpu.memory_space<vmem>>, vector<8x256xf32>
    %cst_35 = arith.constant dense<0.000000e+00> : vector<8x256xf32>
    %110 = tpu.matmul %108, %30, %cst_35 {dimension_numbers = #tpu.dot_dimension_numbers<[1], [0], [0], [1], [0, 0, 1, 1], [], []>} : vector<8x64xf32>, vector<64x256xf32>, vector<8x256xf32> -> vector<8x256xf32>
    %111 = arith.addf %109, %110 : vector<8x256xf32>
    %112 = vector.extract_strided_slice %111 {offsets = [0, 0], sizes = [8, 192], strides = [1, 1]} : vector<8x256xf32> to vector<8x192xf32>
    %113 = arith.negf %112 : vector<8x192xf32>
    %114 = math.exp %113 : vector<8x192xf32>
    %cst_36 = arith.constant 1.000000e+00 : f32
    %115 = vector.broadcast %cst_36 : f32 to vector<8x192xf32>
    %116 = arith.addf %115, %114 : vector<8x192xf32>
    %117 = arith.divf %115, %116 : vector<8x192xf32>
    %118 = vector.extract_strided_slice %117 {offsets = [0, 0], sizes = [8, 64], strides = [1, 1]} : vector<8x192xf32> to vector<8x64xf32>
    %119 = vector.extract_strided_slice %117 {offsets = [0, 64], sizes = [8, 64], strides = [1, 1]} : vector<8x192xf32> to vector<8x64xf32>
    %120 = vector.extract_strided_slice %117 {offsets = [0, 128], sizes = [8, 64], strides = [1, 1]} : vector<8x192xf32> to vector<8x64xf32>
    %121 = vector.extract_strided_slice %111 {offsets = [0, 192], sizes = [8, 64], strides = [1, 1]} : vector<8x256xf32> to vector<8x64xf32>
    %122 = math.tanh %121 : vector<8x64xf32>
    %123 = arith.mulf %119, %106 : vector<8x64xf32>
    %124 = arith.mulf %118, %122 : vector<8x64xf32>
    %125 = arith.addf %123, %124 : vector<8x64xf32>
    %126 = math.tanh %125 : vector<8x64xf32>
    %127 = arith.mulf %120, %126 : vector<8x64xf32>
    %c40 = arith.constant 40 : index
    %c0_37 = arith.constant 0 : index
    %128 = vector.load %arg21[%c40, %c0_37] : memref<64x256xf32, #tpu.memory_space<vmem>>, vector<8x256xf32>
    %cst_38 = arith.constant dense<0.000000e+00> : vector<8x256xf32>
    %129 = tpu.matmul %127, %30, %cst_38 {dimension_numbers = #tpu.dot_dimension_numbers<[1], [0], [0], [1], [0, 0, 1, 1], [], []>} : vector<8x64xf32>, vector<64x256xf32>, vector<8x256xf32> -> vector<8x256xf32>
    %130 = arith.addf %128, %129 : vector<8x256xf32>
    %131 = vector.extract_strided_slice %130 {offsets = [0, 0], sizes = [8, 192], strides = [1, 1]} : vector<8x256xf32> to vector<8x192xf32>
    %132 = arith.negf %131 : vector<8x192xf32>
    %133 = math.exp %132 : vector<8x192xf32>
    %cst_39 = arith.constant 1.000000e+00 : f32
    %134 = vector.broadcast %cst_39 : f32 to vector<8x192xf32>
    %135 = arith.addf %134, %133 : vector<8x192xf32>
    %136 = arith.divf %134, %135 : vector<8x192xf32>
    %137 = vector.extract_strided_slice %136 {offsets = [0, 0], sizes = [8, 64], strides = [1, 1]} : vector<8x192xf32> to vector<8x64xf32>
    %138 = vector.extract_strided_slice %136 {offsets = [0, 64], sizes = [8, 64], strides = [1, 1]} : vector<8x192xf32> to vector<8x64xf32>
    %139 = vector.extract_strided_slice %136 {offsets = [0, 128], sizes = [8, 64], strides = [1, 1]} : vector<8x192xf32> to vector<8x64xf32>
    %140 = vector.extract_strided_slice %130 {offsets = [0, 192], sizes = [8, 64], strides = [1, 1]} : vector<8x256xf32> to vector<8x64xf32>
    %141 = math.tanh %140 : vector<8x64xf32>
    %142 = arith.mulf %138, %125 : vector<8x64xf32>
    %143 = arith.mulf %137, %141 : vector<8x64xf32>
    %144 = arith.addf %142, %143 : vector<8x64xf32>
    %145 = math.tanh %144 : vector<8x64xf32>
    %146 = arith.mulf %139, %145 : vector<8x64xf32>
    %c48 = arith.constant 48 : index
    %c0_40 = arith.constant 0 : index
    %147 = vector.load %arg21[%c48, %c0_40] : memref<64x256xf32, #tpu.memory_space<vmem>>, vector<8x256xf32>
    %cst_41 = arith.constant dense<0.000000e+00> : vector<8x256xf32>
    %148 = tpu.matmul %146, %30, %cst_41 {dimension_numbers = #tpu.dot_dimension_numbers<[1], [0], [0], [1], [0, 0, 1, 1], [], []>} : vector<8x64xf32>, vector<64x256xf32>, vector<8x256xf32> -> vector<8x256xf32>
    %149 = arith.addf %147, %148 : vector<8x256xf32>
    %150 = vector.extract_strided_slice %149 {offsets = [0, 0], sizes = [8, 192], strides = [1, 1]} : vector<8x256xf32> to vector<8x192xf32>
    %151 = arith.negf %150 : vector<8x192xf32>
    %152 = math.exp %151 : vector<8x192xf32>
    %cst_42 = arith.constant 1.000000e+00 : f32
    %153 = vector.broadcast %cst_42 : f32 to vector<8x192xf32>
    %154 = arith.addf %153, %152 : vector<8x192xf32>
    %155 = arith.divf %153, %154 : vector<8x192xf32>
    %156 = vector.extract_strided_slice %155 {offsets = [0, 0], sizes = [8, 64], strides = [1, 1]} : vector<8x192xf32> to vector<8x64xf32>
    %157 = vector.extract_strided_slice %155 {offsets = [0, 64], sizes = [8, 64], strides = [1, 1]} : vector<8x192xf32> to vector<8x64xf32>
    %158 = vector.extract_strided_slice %155 {offsets = [0, 128], sizes = [8, 64], strides = [1, 1]} : vector<8x192xf32> to vector<8x64xf32>
    %159 = vector.extract_strided_slice %149 {offsets = [0, 192], sizes = [8, 64], strides = [1, 1]} : vector<8x256xf32> to vector<8x64xf32>
    %160 = math.tanh %159 : vector<8x64xf32>
    %161 = arith.mulf %157, %144 : vector<8x64xf32>
    %162 = arith.mulf %156, %160 : vector<8x64xf32>
    %163 = arith.addf %161, %162 : vector<8x64xf32>
    %164 = math.tanh %163 : vector<8x64xf32>
    %165 = arith.mulf %158, %164 : vector<8x64xf32>
    %c56 = arith.constant 56 : index
    %c0_43 = arith.constant 0 : index
    %166 = vector.load %arg21[%c56, %c0_43] : memref<64x256xf32, #tpu.memory_space<vmem>>, vector<8x256xf32>
    %cst_44 = arith.constant dense<0.000000e+00> : vector<8x256xf32>
    %167 = tpu.matmul %165, %30, %cst_44 {dimension_numbers = #tpu.dot_dimension_numbers<[1], [0], [0], [1], [0, 0, 1, 1], [], []>} : vector<8x64xf32>, vector<64x256xf32>, vector<8x256xf32> -> vector<8x256xf32>
    %168 = arith.addf %166, %167 : vector<8x256xf32>
    %169 = vector.extract_strided_slice %168 {offsets = [0, 0], sizes = [8, 192], strides = [1, 1]} : vector<8x256xf32> to vector<8x192xf32>
    %170 = arith.negf %169 : vector<8x192xf32>
    %171 = math.exp %170 : vector<8x192xf32>
    %cst_45 = arith.constant 1.000000e+00 : f32
    %172 = vector.broadcast %cst_45 : f32 to vector<8x192xf32>
    %173 = arith.addf %172, %171 : vector<8x192xf32>
    %174 = arith.divf %172, %173 : vector<8x192xf32>
    %175 = vector.extract_strided_slice %174 {offsets = [0, 0], sizes = [8, 64], strides = [1, 1]} : vector<8x192xf32> to vector<8x64xf32>
    %176 = vector.extract_strided_slice %174 {offsets = [0, 64], sizes = [8, 64], strides = [1, 1]} : vector<8x192xf32> to vector<8x64xf32>
    %177 = vector.extract_strided_slice %174 {offsets = [0, 128], sizes = [8, 64], strides = [1, 1]} : vector<8x192xf32> to vector<8x64xf32>
    %178 = vector.extract_strided_slice %168 {offsets = [0, 192], sizes = [8, 64], strides = [1, 1]} : vector<8x256xf32> to vector<8x64xf32>
    %179 = math.tanh %178 : vector<8x64xf32>
    %180 = arith.mulf %176, %163 : vector<8x64xf32>
    %181 = arith.mulf %175, %179 : vector<8x64xf32>
    %182 = arith.addf %180, %181 : vector<8x64xf32>
    %183 = math.tanh %182 : vector<8x64xf32>
    %184 = arith.mulf %177, %183 : vector<8x64xf32>
    %185 = vector.extract_strided_slice %51 {offsets = [0, 0], sizes = [8, 32], strides = [1, 1]} : vector<8x64xf32> to vector<8x32xf32>
    %186 = vector.extract_strided_slice %184 {offsets = [0, 32], sizes = [8, 32], strides = [1, 1]} : vector<8x64xf32> to vector<8x32xf32>
    %187 = tpu.concatenate %185, %186 in 1 : vector<8x32xf32>, vector<8x32xf32> -> vector<8x64xf32>
    %188 = vector.extract_strided_slice %70 {offsets = [0, 0], sizes = [8, 32], strides = [1, 1]} : vector<8x64xf32> to vector<8x32xf32>
    %189 = vector.extract_strided_slice %165 {offsets = [0, 32], sizes = [8, 32], strides = [1, 1]} : vector<8x64xf32> to vector<8x32xf32>
    %190 = tpu.concatenate %188, %189 in 1 : vector<8x32xf32>, vector<8x32xf32> -> vector<8x64xf32>
    %191 = vector.extract_strided_slice %89 {offsets = [0, 0], sizes = [8, 32], strides = [1, 1]} : vector<8x64xf32> to vector<8x32xf32>
    %192 = vector.extract_strided_slice %146 {offsets = [0, 32], sizes = [8, 32], strides = [1, 1]} : vector<8x64xf32> to vector<8x32xf32>
    %193 = tpu.concatenate %191, %192 in 1 : vector<8x32xf32>, vector<8x32xf32> -> vector<8x64xf32>
    %194 = vector.extract_strided_slice %108 {offsets = [0, 0], sizes = [8, 32], strides = [1, 1]} : vector<8x64xf32> to vector<8x32xf32>
    %195 = vector.extract_strided_slice %127 {offsets = [0, 32], sizes = [8, 32], strides = [1, 1]} : vector<8x64xf32> to vector<8x32xf32>
    %196 = tpu.concatenate %194, %195 in 1 : vector<8x32xf32>, vector<8x32xf32> -> vector<8x64xf32>
    %197 = vector.extract_strided_slice %127 {offsets = [0, 0], sizes = [8, 32], strides = [1, 1]} : vector<8x64xf32> to vector<8x32xf32>
    %198 = vector.extract_strided_slice %108 {offsets = [0, 32], sizes = [8, 32], strides = [1, 1]} : vector<8x64xf32> to vector<8x32xf32>
    %199 = tpu.concatenate %197, %198 in 1 : vector<8x32xf32>, vector<8x32xf32> -> vector<8x64xf32>
    %200 = vector.extract_strided_slice %146 {offsets = [0, 0], sizes = [8, 32], strides = [1, 1]} : vector<8x64xf32> to vector<8x32xf32>
    %201 = vector.extract_strided_slice %89 {offsets = [0, 32], sizes = [8, 32], strides = [1, 1]} : vector<8x64xf32> to vector<8x32xf32>
    %202 = tpu.concatenate %200, %201 in 1 : vector<8x32xf32>, vector<8x32xf32> -> vector<8x64xf32>
    %203 = vector.extract_strided_slice %165 {offsets = [0, 0], sizes = [8, 32], strides = [1, 1]} : vector<8x64xf32> to vector<8x32xf32>
    %204 = vector.extract_strided_slice %70 {offsets = [0, 32], sizes = [8, 32], strides = [1, 1]} : vector<8x64xf32> to vector<8x32xf32>
    %205 = tpu.concatenate %203, %204 in 1 : vector<8x32xf32>, vector<8x32xf32> -> vector<8x64xf32>
    %206 = vector.extract_strided_slice %184 {offsets = [0, 0], sizes = [8, 32], strides = [1, 1]} : vector<8x64xf32> to vector<8x32xf32>
    %207 = vector.extract_strided_slice %51 {offsets = [0, 32], sizes = [8, 32], strides = [1, 1]} : vector<8x64xf32> to vector<8x32xf32>
    %208 = tpu.concatenate %206, %207 in 1 : vector<8x32xf32>, vector<8x32xf32> -> vector<8x64xf32>
    %209 = tpu.concatenate %187, %190, %193, %196, %199, %202, %205, %208 in 0 : vector<8x64xf32>, vector<8x64xf32>, vector<8x64xf32>, vector<8x64xf32>, vector<8x64xf32>, vector<8x64xf32>, vector<8x64xf32>, vector<8x64xf32> -> vector<64x64xf32>
    %210 = vector.extract_strided_slice %209 {offsets = [56, 0], sizes = [8, 64], strides = [1, 1]} : vector<64x64xf32> to vector<8x64xf32>
    %211 = vector.extract_strided_slice %209 {offsets = [48, 0], sizes = [8, 64], strides = [1, 1]} : vector<64x64xf32> to vector<8x64xf32>
    %212 = vector.extract_strided_slice %209 {offsets = [40, 0], sizes = [8, 64], strides = [1, 1]} : vector<64x64xf32> to vector<8x64xf32>
    %213 = vector.extract_strided_slice %209 {offsets = [32, 0], sizes = [8, 64], strides = [1, 1]} : vector<64x64xf32> to vector<8x64xf32>
    %214 = vector.extract_strided_slice %209 {offsets = [24, 0], sizes = [8, 64], strides = [1, 1]} : vector<64x64xf32> to vector<8x64xf32>
    %215 = vector.extract_strided_slice %209 {offsets = [16, 0], sizes = [8, 64], strides = [1, 1]} : vector<64x64xf32> to vector<8x64xf32>
    %216 = vector.extract_strided_slice %209 {offsets = [8, 0], sizes = [8, 64], strides = [1, 1]} : vector<64x64xf32> to vector<8x64xf32>
    %217 = vector.extract_strided_slice %209 {offsets = [0, 0], sizes = [8, 64], strides = [1, 1]} : vector<64x64xf32> to vector<8x64xf32>
    %218 = tpu.concatenate %210, %211, %212, %213, %214, %215, %216, %217 in 0 : vector<8x64xf32>, vector<8x64xf32>, vector<8x64xf32>, vector<8x64xf32>, vector<8x64xf32>, vector<8x64xf32>, vector<8x64xf32>, vector<8x64xf32> -> vector<64x64xf32>
    %219 = tpu.concatenate %209, %218 in 1 : vector<64x64xf32>, vector<64x64xf32> -> vector<64x128xf32>
    %c0_46 = arith.constant 0 : index
    %c0_47 = arith.constant 0 : index
    %220 = vector.load %arg9[%c0_46, %c0_47] : memref<128x256xf32, #tpu.memory_space<vmem>>, vector<128x256xf32>
    %cst_48 = arith.constant dense<0.000000e+00> : vector<64x256xf32>
    %221 = tpu.matmul %219, %220, %cst_48 {dimension_numbers = #tpu.dot_dimension_numbers<[1], [0], [0], [1], [0, 0, 1, 1], [], []>} : vector<64x128xf32>, vector<128x256xf32>, vector<64x256xf32> -> vector<64x256xf32>
    %c0_49 = arith.constant 0 : index
    %c0_50 = arith.constant 0 : index
    %222 = vector.load %arg11[%c0_49, %c0_50] : memref<1x256xf32, #tpu.memory_space<vmem>>, vector<1x256xf32>
    %223 = vector.broadcast %222 : vector<1x256xf32> to vector<64x256xf32>
    %224 = arith.addf %221, %223 : vector<64x256xf32>
    %c0_51 = arith.constant 0 : index
    %c0_52 = arith.constant 0 : index
    %225 = vector.load %arg21[%c0_51, %c0_52] : memref<64x256xf32, #tpu.memory_space<vmem>>, vector<64x256xf32>
    tpu.vector_store %arg21[%c0_51, %c0_52], %224 {strides = array<i32>} : memref<64x256xf32, #tpu.memory_space<vmem>>, vector<64x256xf32>,
    %c0_53 = arith.constant 0 : index
    %c0_54 = arith.constant 0 : index
    %226 = vector.load %arg10[%c0_53, %c0_54] : memref<64x256xf32, #tpu.memory_space<vmem>>, vector<64x256xf32>
    %cst_55 = arith.constant 0.000000e+00 : f32
    %227 = vector.broadcast %cst_55 : f32 to vector<8x64xf32>
    %cst_56 = arith.constant 0.000000e+00 : f32
    %228 = vector.broadcast %cst_56 : f32 to vector<8x64xf32>
    %c0_57 = arith.constant 0 : index
    %c0_58 = arith.constant 0 : index
    %229 = vector.load %arg21[%c0_57, %c0_58] : memref<64x256xf32, #tpu.memory_space<vmem>>, vector<8x256xf32>
    %cst_59 = arith.constant dense<0.000000e+00> : vector<8x256xf32>
    %230 = tpu.matmul %227, %226, %cst_59 {dimension_numbers = #tpu.dot_dimension_numbers<[1], [0], [0], [1], [0, 0, 1, 1], [], []>} : vector<8x64xf32>, vector<64x256xf32>, vector<8x256xf32> -> vector<8x256xf32>
    %231 = arith.addf %229, %230 : vector<8x256xf32>
    %232 = vector.extract_strided_slice %231 {offsets = [0, 0], sizes = [8, 192], strides = [1, 1]} : vector<8x256xf32> to vector<8x192xf32>
    %233 = arith.negf %232 : vector<8x192xf32>
    %234 = math.exp %233 : vector<8x192xf32>
    %cst_60 = arith.constant 1.000000e+00 : f32
    %235 = vector.broadcast %cst_60 : f32 to vector<8x192xf32>
    %236 = arith.addf %235, %234 : vector<8x192xf32>
    %237 = arith.divf %235, %236 : vector<8x192xf32>
    %238 = vector.extract_strided_slice %237 {offsets = [0, 0], sizes = [8, 64], strides = [1, 1]} : vector<8x192xf32> to vector<8x64xf32>
    %239 = vector.extract_strided_slice %237 {offsets = [0, 64], sizes = [8, 64], strides = [1, 1]} : vector<8x192xf32> to vector<8x64xf32>
    %240 = vector.extract_strided_slice %237 {offsets = [0, 128], sizes = [8, 64], strides = [1, 1]} : vector<8x192xf32> to vector<8x64xf32>
    %241 = vector.extract_strided_slice %231 {offsets = [0, 192], sizes = [8, 64], strides = [1, 1]} : vector<8x256xf32> to vector<8x64xf32>
    %242 = math.tanh %241 : vector<8x64xf32>
    %243 = arith.mulf %239, %228 : vector<8x64xf32>
    %244 = arith.mulf %238, %242 : vector<8x64xf32>
    %245 = arith.addf %243, %244 : vector<8x64xf32>
    %246 = math.tanh %245 : vector<8x64xf32>
    %247 = arith.mulf %240, %246 : vector<8x64xf32>
    %c8_61 = arith.constant 8 : index
    %c0_62 = arith.constant 0 : index
    %248 = vector.load %arg21[%c8_61, %c0_62] : memref<64x256xf32, #tpu.memory_space<vmem>>, vector<8x256xf32>
    %cst_63 = arith.constant dense<0.000000e+00> : vector<8x256xf32>
    %249 = tpu.matmul %247, %226, %cst_63 {dimension_numbers = #tpu.dot_dimension_numbers<[1], [0], [0], [1], [0, 0, 1, 1], [], []>} : vector<8x64xf32>, vector<64x256xf32>, vector<8x256xf32> -> vector<8x256xf32>
    %250 = arith.addf %248, %249 : vector<8x256xf32>
    %251 = vector.extract_strided_slice %250 {offsets = [0, 0], sizes = [8, 192], strides = [1, 1]} : vector<8x256xf32> to vector<8x192xf32>
    %252 = arith.negf %251 : vector<8x192xf32>
    %253 = math.exp %252 : vector<8x192xf32>
    %cst_64 = arith.constant 1.000000e+00 : f32
    %254 = vector.broadcast %cst_64 : f32 to vector<8x192xf32>
    %255 = arith.addf %254, %253 : vector<8x192xf32>
    %256 = arith.divf %254, %255 : vector<8x192xf32>
    %257 = vector.extract_strided_slice %256 {offsets = [0, 0], sizes = [8, 64], strides = [1, 1]} : vector<8x192xf32> to vector<8x64xf32>
    %258 = vector.extract_strided_slice %256 {offsets = [0, 64], sizes = [8, 64], strides = [1, 1]} : vector<8x192xf32> to vector<8x64xf32>
    %259 = vector.extract_strided_slice %256 {offsets = [0, 128], sizes = [8, 64], strides = [1, 1]} : vector<8x192xf32> to vector<8x64xf32>
    %260 = vector.extract_strided_slice %250 {offsets = [0, 192], sizes = [8, 64], strides = [1, 1]} : vector<8x256xf32> to vector<8x64xf32>
    %261 = math.tanh %260 : vector<8x64xf32>
    %262 = arith.mulf %258, %245 : vector<8x64xf32>
    %263 = arith.mulf %257, %261 : vector<8x64xf32>
    %264 = arith.addf %262, %263 : vector<8x64xf32>
    %265 = math.tanh %264 : vector<8x64xf32>
    %266 = arith.mulf %259, %265 : vector<8x64xf32>
    %c16_65 = arith.constant 16 : index
    %c0_66 = arith.constant 0 : index
    %267 = vector.load %arg21[%c16_65, %c0_66] : memref<64x256xf32, #tpu.memory_space<vmem>>, vector<8x256xf32>
    %cst_67 = arith.constant dense<0.000000e+00> : vector<8x256xf32>
    %268 = tpu.matmul %266, %226, %cst_67 {dimension_numbers = #tpu.dot_dimension_numbers<[1], [0], [0], [1], [0, 0, 1, 1], [], []>} : vector<8x64xf32>, vector<64x256xf32>, vector<8x256xf32> -> vector<8x256xf32>
    %269 = arith.addf %267, %268 : vector<8x256xf32>
    %270 = vector.extract_strided_slice %269 {offsets = [0, 0], sizes = [8, 192], strides = [1, 1]} : vector<8x256xf32> to vector<8x192xf32>
    %271 = arith.negf %270 : vector<8x192xf32>
    %272 = math.exp %271 : vector<8x192xf32>
    %cst_68 = arith.constant 1.000000e+00 : f32
    %273 = vector.broadcast %cst_68 : f32 to vector<8x192xf32>
    %274 = arith.addf %273, %272 : vector<8x192xf32>
    %275 = arith.divf %273, %274 : vector<8x192xf32>
    %276 = vector.extract_strided_slice %275 {offsets = [0, 0], sizes = [8, 64], strides = [1, 1]} : vector<8x192xf32> to vector<8x64xf32>
    %277 = vector.extract_strided_slice %275 {offsets = [0, 64], sizes = [8, 64], strides = [1, 1]} : vector<8x192xf32> to vector<8x64xf32>
    %278 = vector.extract_strided_slice %275 {offsets = [0, 128], sizes = [8, 64], strides = [1, 1]} : vector<8x192xf32> to vector<8x64xf32>
    %279 = vector.extract_strided_slice %269 {offsets = [0, 192], sizes = [8, 64], strides = [1, 1]} : vector<8x256xf32> to vector<8x64xf32>
    %280 = math.tanh %279 : vector<8x64xf32>
    %281 = arith.mulf %277, %264 : vector<8x64xf32>
    %282 = arith.mulf %276, %280 : vector<8x64xf32>
    %283 = arith.addf %281, %282 : vector<8x64xf32>
    %284 = math.tanh %283 : vector<8x64xf32>
    %285 = arith.mulf %278, %284 : vector<8x64xf32>
    %c24_69 = arith.constant 24 : index
    %c0_70 = arith.constant 0 : index
    %286 = vector.load %arg21[%c24_69, %c0_70] : memref<64x256xf32, #tpu.memory_space<vmem>>, vector<8x256xf32>
    %cst_71 = arith.constant dense<0.000000e+00> : vector<8x256xf32>
    %287 = tpu.matmul %285, %226, %cst_71 {dimension_numbers = #tpu.dot_dimension_numbers<[1], [0], [0], [1], [0, 0, 1, 1], [], []>} : vector<8x64xf32>, vector<64x256xf32>, vector<8x256xf32> -> vector<8x256xf32>
    %288 = arith.addf %286, %287 : vector<8x256xf32>
    %289 = vector.extract_strided_slice %288 {offsets = [0, 0], sizes = [8, 192], strides = [1, 1]} : vector<8x256xf32> to vector<8x192xf32>
    %290 = arith.negf %289 : vector<8x192xf32>
    %291 = math.exp %290 : vector<8x192xf32>
    %cst_72 = arith.constant 1.000000e+00 : f32
    %292 = vector.broadcast %cst_72 : f32 to vector<8x192xf32>
    %293 = arith.addf %292, %291 : vector<8x192xf32>
    %294 = arith.divf %292, %293 : vector<8x192xf32>
    %295 = vector.extract_strided_slice %294 {offsets = [0, 0], sizes = [8, 64], strides = [1, 1]} : vector<8x192xf32> to vector<8x64xf32>
    %296 = vector.extract_strided_slice %294 {offsets = [0, 64], sizes = [8, 64], strides = [1, 1]} : vector<8x192xf32> to vector<8x64xf32>
    %297 = vector.extract_strided_slice %294 {offsets = [0, 128], sizes = [8, 64], strides = [1, 1]} : vector<8x192xf32> to vector<8x64xf32>
    %298 = vector.extract_strided_slice %288 {offsets = [0, 192], sizes = [8, 64], strides = [1, 1]} : vector<8x256xf32> to vector<8x64xf32>
    %299 = math.tanh %298 : vector<8x64xf32>
    %300 = arith.mulf %296, %283 : vector<8x64xf32>
    %301 = arith.mulf %295, %299 : vector<8x64xf32>
    %302 = arith.addf %300, %301 : vector<8x64xf32>
    %303 = math.tanh %302 : vector<8x64xf32>
    %304 = arith.mulf %297, %303 : vector<8x64xf32>
    %c32_73 = arith.constant 32 : index
    %c0_74 = arith.constant 0 : index
    %305 = vector.load %arg21[%c32_73, %c0_74] : memref<64x256xf32, #tpu.memory_space<vmem>>, vector<8x256xf32>
    %cst_75 = arith.constant dense<0.000000e+00> : vector<8x256xf32>
    %306 = tpu.matmul %304, %226, %cst_75 {dimension_numbers = #tpu.dot_dimension_numbers<[1], [0], [0], [1], [0, 0, 1, 1], [], []>} : vector<8x64xf32>, vector<64x256xf32>, vector<8x256xf32> -> vector<8x256xf32>
    %307 = arith.addf %305, %306 : vector<8x256xf32>
    %308 = vector.extract_strided_slice %307 {offsets = [0, 0], sizes = [8, 192], strides = [1, 1]} : vector<8x256xf32> to vector<8x192xf32>
    %309 = arith.negf %308 : vector<8x192xf32>
    %310 = math.exp %309 : vector<8x192xf32>
    %cst_76 = arith.constant 1.000000e+00 : f32
    %311 = vector.broadcast %cst_76 : f32 to vector<8x192xf32>
    %312 = arith.addf %311, %310 : vector<8x192xf32>
    %313 = arith.divf %311, %312 : vector<8x192xf32>
    %314 = vector.extract_strided_slice %313 {offsets = [0, 0], sizes = [8, 64], strides = [1, 1]} : vector<8x192xf32> to vector<8x64xf32>
    %315 = vector.extract_strided_slice %313 {offsets = [0, 64], sizes = [8, 64], strides = [1, 1]} : vector<8x192xf32> to vector<8x64xf32>
    %316 = vector.extract_strided_slice %313 {offsets = [0, 128], sizes = [8, 64], strides = [1, 1]} : vector<8x192xf32> to vector<8x64xf32>
    %317 = vector.extract_strided_slice %307 {offsets = [0, 192], sizes = [8, 64], strides = [1, 1]} : vector<8x256xf32> to vector<8x64xf32>
    %318 = math.tanh %317 : vector<8x64xf32>
    %319 = arith.mulf %315, %302 : vector<8x64xf32>
    %320 = arith.mulf %314, %318 : vector<8x64xf32>
    %321 = arith.addf %319, %320 : vector<8x64xf32>
    %322 = math.tanh %321 : vector<8x64xf32>
    %323 = arith.mulf %316, %322 : vector<8x64xf32>
    %c40_77 = arith.constant 40 : index
    %c0_78 = arith.constant 0 : index
    %324 = vector.load %arg21[%c40_77, %c0_78] : memref<64x256xf32, #tpu.memory_space<vmem>>, vector<8x256xf32>
    %cst_79 = arith.constant dense<0.000000e+00> : vector<8x256xf32>
    %325 = tpu.matmul %323, %226, %cst_79 {dimension_numbers = #tpu.dot_dimension_numbers<[1], [0], [0], [1], [0, 0, 1, 1], [], []>} : vector<8x64xf32>, vector<64x256xf32>, vector<8x256xf32> -> vector<8x256xf32>
    %326 = arith.addf %324, %325 : vector<8x256xf32>
    %327 = vector.extract_strided_slice %326 {offsets = [0, 0], sizes = [8, 192], strides = [1, 1]} : vector<8x256xf32> to vector<8x192xf32>
    %328 = arith.negf %327 : vector<8x192xf32>
    %329 = math.exp %328 : vector<8x192xf32>
    %cst_80 = arith.constant 1.000000e+00 : f32
    %330 = vector.broadcast %cst_80 : f32 to vector<8x192xf32>
    %331 = arith.addf %330, %329 : vector<8x192xf32>
    %332 = arith.divf %330, %331 : vector<8x192xf32>
    %333 = vector.extract_strided_slice %332 {offsets = [0, 0], sizes = [8, 64], strides = [1, 1]} : vector<8x192xf32> to vector<8x64xf32>
    %334 = vector.extract_strided_slice %332 {offsets = [0, 64], sizes = [8, 64], strides = [1, 1]} : vector<8x192xf32> to vector<8x64xf32>
    %335 = vector.extract_strided_slice %332 {offsets = [0, 128], sizes = [8, 64], strides = [1, 1]} : vector<8x192xf32> to vector<8x64xf32>
    %336 = vector.extract_strided_slice %326 {offsets = [0, 192], sizes = [8, 64], strides = [1, 1]} : vector<8x256xf32> to vector<8x64xf32>
    %337 = math.tanh %336 : vector<8x64xf32>
    %338 = arith.mulf %334, %321 : vector<8x64xf32>
    %339 = arith.mulf %333, %337 : vector<8x64xf32>
    %340 = arith.addf %338, %339 : vector<8x64xf32>
    %341 = math.tanh %340 : vector<8x64xf32>
    %342 = arith.mulf %335, %341 : vector<8x64xf32>
    %c48_81 = arith.constant 48 : index
    %c0_82 = arith.constant 0 : index
    %343 = vector.load %arg21[%c48_81, %c0_82] : memref<64x256xf32, #tpu.memory_space<vmem>>, vector<8x256xf32>
    %cst_83 = arith.constant dense<0.000000e+00> : vector<8x256xf32>
    %344 = tpu.matmul %342, %226, %cst_83 {dimension_numbers = #tpu.dot_dimension_numbers<[1], [0], [0], [1], [0, 0, 1, 1], [], []>} : vector<8x64xf32>, vector<64x256xf32>, vector<8x256xf32> -> vector<8x256xf32>
    %345 = arith.addf %343, %344 : vector<8x256xf32>
    %346 = vector.extract_strided_slice %345 {offsets = [0, 0], sizes = [8, 192], strides = [1, 1]} : vector<8x256xf32> to vector<8x192xf32>
    %347 = arith.negf %346 : vector<8x192xf32>
    %348 = math.exp %347 : vector<8x192xf32>
    %cst_84 = arith.constant 1.000000e+00 : f32
    %349 = vector.broadcast %cst_84 : f32 to vector<8x192xf32>
    %350 = arith.addf %349, %348 : vector<8x192xf32>
    %351 = arith.divf %349, %350 : vector<8x192xf32>
    %352 = vector.extract_strided_slice %351 {offsets = [0, 0], sizes = [8, 64], strides = [1, 1]} : vector<8x192xf32> to vector<8x64xf32>
    %353 = vector.extract_strided_slice %351 {offsets = [0, 64], sizes = [8, 64], strides = [1, 1]} : vector<8x192xf32> to vector<8x64xf32>
    %354 = vector.extract_strided_slice %351 {offsets = [0, 128], sizes = [8, 64], strides = [1, 1]} : vector<8x192xf32> to vector<8x64xf32>
    %355 = vector.extract_strided_slice %345 {offsets = [0, 192], sizes = [8, 64], strides = [1, 1]} : vector<8x256xf32> to vector<8x64xf32>
    %356 = math.tanh %355 : vector<8x64xf32>
    %357 = arith.mulf %353, %340 : vector<8x64xf32>
    %358 = arith.mulf %352, %356 : vector<8x64xf32>
    %359 = arith.addf %357, %358 : vector<8x64xf32>
    %360 = math.tanh %359 : vector<8x64xf32>
    %361 = arith.mulf %354, %360 : vector<8x64xf32>
    %c56_85 = arith.constant 56 : index
    %c0_86 = arith.constant 0 : index
    %362 = vector.load %arg21[%c56_85, %c0_86] : memref<64x256xf32, #tpu.memory_space<vmem>>, vector<8x256xf32>
    %cst_87 = arith.constant dense<0.000000e+00> : vector<8x256xf32>
    %363 = tpu.matmul %361, %226, %cst_87 {dimension_numbers = #tpu.dot_dimension_numbers<[1], [0], [0], [1], [0, 0, 1, 1], [], []>} : vector<8x64xf32>, vector<64x256xf32>, vector<8x256xf32> -> vector<8x256xf32>
    %364 = arith.addf %362, %363 : vector<8x256xf32>
    %365 = vector.extract_strided_slice %364 {offsets = [0, 0], sizes = [8, 192], strides = [1, 1]} : vector<8x256xf32> to vector<8x192xf32>
    %366 = arith.negf %365 : vector<8x192xf32>
    %367 = math.exp %366 : vector<8x192xf32>
    %cst_88 = arith.constant 1.000000e+00 : f32
    %368 = vector.broadcast %cst_88 : f32 to vector<8x192xf32>
    %369 = arith.addf %368, %367 : vector<8x192xf32>
    %370 = arith.divf %368, %369 : vector<8x192xf32>
    %371 = vector.extract_strided_slice %370 {offsets = [0, 0], sizes = [8, 64], strides = [1, 1]} : vector<8x192xf32> to vector<8x64xf32>
    %372 = vector.extract_strided_slice %370 {offsets = [0, 64], sizes = [8, 64], strides = [1, 1]} : vector<8x192xf32> to vector<8x64xf32>
    %373 = vector.extract_strided_slice %370 {offsets = [0, 128], sizes = [8, 64], strides = [1, 1]} : vector<8x192xf32> to vector<8x64xf32>
    %374 = vector.extract_strided_slice %364 {offsets = [0, 192], sizes = [8, 64], strides = [1, 1]} : vector<8x256xf32> to vector<8x64xf32>
    %375 = math.tanh %374 : vector<8x64xf32>
    %376 = arith.mulf %372, %359 : vector<8x64xf32>
    %377 = arith.mulf %371, %375 : vector<8x64xf32>
    %378 = arith.addf %376, %377 : vector<8x64xf32>
    %379 = math.tanh %378 : vector<8x64xf32>
    %380 = arith.mulf %373, %379 : vector<8x64xf32>
    %381 = vector.extract_strided_slice %247 {offsets = [0, 0], sizes = [8, 32], strides = [1, 1]} : vector<8x64xf32> to vector<8x32xf32>
    %382 = vector.extract_strided_slice %380 {offsets = [0, 32], sizes = [8, 32], strides = [1, 1]} : vector<8x64xf32> to vector<8x32xf32>
    %383 = tpu.concatenate %381, %382 in 1 : vector<8x32xf32>, vector<8x32xf32> -> vector<8x64xf32>
    %384 = vector.extract_strided_slice %266 {offsets = [0, 0], sizes = [8, 32], strides = [1, 1]} : vector<8x64xf32> to vector<8x32xf32>
    %385 = vector.extract_strided_slice %361 {offsets = [0, 32], sizes = [8, 32], strides = [1, 1]} : vector<8x64xf32> to vector<8x32xf32>
    %386 = tpu.concatenate %384, %385 in 1 : vector<8x32xf32>, vector<8x32xf32> -> vector<8x64xf32>
    %387 = vector.extract_strided_slice %285 {offsets = [0, 0], sizes = [8, 32], strides = [1, 1]} : vector<8x64xf32> to vector<8x32xf32>
    %388 = vector.extract_strided_slice %342 {offsets = [0, 32], sizes = [8, 32], strides = [1, 1]} : vector<8x64xf32> to vector<8x32xf32>
    %389 = tpu.concatenate %387, %388 in 1 : vector<8x32xf32>, vector<8x32xf32> -> vector<8x64xf32>
    %390 = vector.extract_strided_slice %304 {offsets = [0, 0], sizes = [8, 32], strides = [1, 1]} : vector<8x64xf32> to vector<8x32xf32>
    %391 = vector.extract_strided_slice %323 {offsets = [0, 32], sizes = [8, 32], strides = [1, 1]} : vector<8x64xf32> to vector<8x32xf32>
    %392 = tpu.concatenate %390, %391 in 1 : vector<8x32xf32>, vector<8x32xf32> -> vector<8x64xf32>
    %393 = vector.extract_strided_slice %323 {offsets = [0, 0], sizes = [8, 32], strides = [1, 1]} : vector<8x64xf32> to vector<8x32xf32>
    %394 = vector.extract_strided_slice %304 {offsets = [0, 32], sizes = [8, 32], strides = [1, 1]} : vector<8x64xf32> to vector<8x32xf32>
    %395 = tpu.concatenate %393, %394 in 1 : vector<8x32xf32>, vector<8x32xf32> -> vector<8x64xf32>
    %396 = vector.extract_strided_slice %342 {offsets = [0, 0], sizes = [8, 32], strides = [1, 1]} : vector<8x64xf32> to vector<8x32xf32>
    %397 = vector.extract_strided_slice %285 {offsets = [0, 32], sizes = [8, 32], strides = [1, 1]} : vector<8x64xf32> to vector<8x32xf32>
    %398 = tpu.concatenate %396, %397 in 1 : vector<8x32xf32>, vector<8x32xf32> -> vector<8x64xf32>
    %399 = vector.extract_strided_slice %361 {offsets = [0, 0], sizes = [8, 32], strides = [1, 1]} : vector<8x64xf32> to vector<8x32xf32>
    %400 = vector.extract_strided_slice %266 {offsets = [0, 32], sizes = [8, 32], strides = [1, 1]} : vector<8x64xf32> to vector<8x32xf32>
    %401 = tpu.concatenate %399, %400 in 1 : vector<8x32xf32>, vector<8x32xf32> -> vector<8x64xf32>
    %402 = vector.extract_strided_slice %380 {offsets = [0, 0], sizes = [8, 32], strides = [1, 1]} : vector<8x64xf32> to vector<8x32xf32>
    %403 = vector.extract_strided_slice %247 {offsets = [0, 32], sizes = [8, 32], strides = [1, 1]} : vector<8x64xf32> to vector<8x32xf32>
    %404 = tpu.concatenate %402, %403 in 1 : vector<8x32xf32>, vector<8x32xf32> -> vector<8x64xf32>
    %405 = tpu.concatenate %383, %386, %389, %392, %395, %398, %401, %404 in 0 : vector<8x64xf32>, vector<8x64xf32>, vector<8x64xf32>, vector<8x64xf32>, vector<8x64xf32>, vector<8x64xf32>, vector<8x64xf32>, vector<8x64xf32> -> vector<64x64xf32>
    %c0_89 = arith.constant 0 : index
    %c0_90 = arith.constant 0 : index
    %406 = vector.load %arg12[%c0_89, %c0_90] : memref<1x64xf32, #tpu.memory_space<vmem>>, vector<1x64xf32>
    %407 = vector.broadcast %406 : vector<1x64xf32> to vector<64x64xf32>
    %408 = arith.mulf %405, %407 : vector<64x64xf32>
    %cst_91 = arith.constant dense<0.000000e+00> : vector<64xf32>
    %409 = vector.multi_reduction <add>, %408, %cst_91 [1] : vector<64x64xf32> to vector<64xf32>
    %410 = vector.shape_cast %409 : vector<64xf32> to vector<64x1xf32>
    %c0_92 = arith.constant 0 : index
    %c0_93 = arith.constant 0 : index
    %411 = vector.load %arg13[%c0_92, %c0_93] : memref<1x1xf32, #tpu.memory_space<vmem>>, vector<1x1xf32>
    %412 = vector.broadcast %411 : vector<1x1xf32> to vector<64x1xf32>
    %413 = arith.addf %410, %412 : vector<64x1xf32>
    %414 = math.tanh %413 : vector<64x1xf32>
    %415 = vector.extract_strided_slice %414 {offsets = [0, 0], sizes = [8, 1], strides = [1, 1]} : vector<64x1xf32> to vector<8x1xf32>
    %416 = vector.extract_strided_slice %414 {offsets = [8, 0], sizes = [8, 1], strides = [1, 1]} : vector<64x1xf32> to vector<8x1xf32>
    %417 = vector.extract_strided_slice %414 {offsets = [16, 0], sizes = [8, 1], strides = [1, 1]} : vector<64x1xf32> to vector<8x1xf32>
    %418 = vector.extract_strided_slice %414 {offsets = [24, 0], sizes = [8, 1], strides = [1, 1]} : vector<64x1xf32> to vector<8x1xf32>
    %419 = vector.extract_strided_slice %414 {offsets = [32, 0], sizes = [8, 1], strides = [1, 1]} : vector<64x1xf32> to vector<8x1xf32>
    %420 = vector.extract_strided_slice %414 {offsets = [40, 0], sizes = [8, 1], strides = [1, 1]} : vector<64x1xf32> to vector<8x1xf32>
    %421 = vector.extract_strided_slice %414 {offsets = [48, 0], sizes = [8, 1], strides = [1, 1]} : vector<64x1xf32> to vector<8x1xf32>
    %422 = vector.extract_strided_slice %414 {offsets = [56, 0], sizes = [8, 1], strides = [1, 1]} : vector<64x1xf32> to vector<8x1xf32>
    %423 = arith.maximumf %415, %416 : vector<8x1xf32>
    %424 = arith.maximumf %423, %417 : vector<8x1xf32>
    %425 = arith.maximumf %424, %418 : vector<8x1xf32>
    %426 = arith.maximumf %425, %419 : vector<8x1xf32>
    %427 = arith.maximumf %426, %420 : vector<8x1xf32>
    %428 = arith.maximumf %427, %421 : vector<8x1xf32>
    %429 = arith.maximumf %428, %422 : vector<8x1xf32>
    %cst_94 = arith.constant 0.000000e+00 : f32
    %430 = vector.broadcast %cst_94 : f32 to vector<8x1xf32>
    %cst_95 = arith.constant 0.000000e+00 : f32
    %431 = vector.broadcast %cst_95 : f32 to vector<8x64xf32>
    %432 = arith.subf %415, %429 : vector<8x1xf32>
    %433 = math.exp %432 : vector<8x1xf32>
    %434 = arith.addf %430, %433 : vector<8x1xf32>
    %435 = vector.extract_strided_slice %405 {offsets = [0, 0], sizes = [8, 64], strides = [1, 1]} : vector<64x64xf32> to vector<8x64xf32>
    %436 = vector.broadcast %433 : vector<8x1xf32> to vector<8x64xf32>
    %437 = arith.mulf %436, %435 : vector<8x64xf32>
    %438 = arith.addf %431, %437 : vector<8x64xf32>
    %439 = arith.subf %416, %429 : vector<8x1xf32>
    %440 = math.exp %439 : vector<8x1xf32>
    %441 = arith.addf %434, %440 : vector<8x1xf32>
    %442 = vector.extract_strided_slice %405 {offsets = [8, 0], sizes = [8, 64], strides = [1, 1]} : vector<64x64xf32> to vector<8x64xf32>
    %443 = vector.broadcast %440 : vector<8x1xf32> to vector<8x64xf32>
    %444 = arith.mulf %443, %442 : vector<8x64xf32>
    %445 = arith.addf %438, %444 : vector<8x64xf32>
    %446 = arith.subf %417, %429 : vector<8x1xf32>
    %447 = math.exp %446 : vector<8x1xf32>
    %448 = arith.addf %441, %447 : vector<8x1xf32>
    %449 = vector.extract_strided_slice %405 {offsets = [16, 0], sizes = [8, 64], strides = [1, 1]} : vector<64x64xf32> to vector<8x64xf32>
    %450 = vector.broadcast %447 : vector<8x1xf32> to vector<8x64xf32>
    %451 = arith.mulf %450, %449 : vector<8x64xf32>
    %452 = arith.addf %445, %451 : vector<8x64xf32>
    %453 = arith.subf %418, %429 : vector<8x1xf32>
    %454 = math.exp %453 : vector<8x1xf32>
    %455 = arith.addf %448, %454 : vector<8x1xf32>
    %456 = vector.extract_strided_slice %405 {offsets = [24, 0], sizes = [8, 64], strides = [1, 1]} : vector<64x64xf32> to vector<8x64xf32>
    %457 = vector.broadcast %454 : vector<8x1xf32> to vector<8x64xf32>
    %458 = arith.mulf %457, %456 : vector<8x64xf32>
    %459 = arith.addf %452, %458 : vector<8x64xf32>
    %460 = arith.subf %419, %429 : vector<8x1xf32>
    %461 = math.exp %460 : vector<8x1xf32>
    %462 = arith.addf %455, %461 : vector<8x1xf32>
    %463 = vector.extract_strided_slice %405 {offsets = [32, 0], sizes = [8, 64], strides = [1, 1]} : vector<64x64xf32> to vector<8x64xf32>
    %464 = vector.broadcast %461 : vector<8x1xf32> to vector<8x64xf32>
    %465 = arith.mulf %464, %463 : vector<8x64xf32>
    %466 = arith.addf %459, %465 : vector<8x64xf32>
    %467 = arith.subf %420, %429 : vector<8x1xf32>
    %468 = math.exp %467 : vector<8x1xf32>
    %469 = arith.addf %462, %468 : vector<8x1xf32>
    %470 = vector.extract_strided_slice %405 {offsets = [40, 0], sizes = [8, 64], strides = [1, 1]} : vector<64x64xf32> to vector<8x64xf32>
    %471 = vector.broadcast %468 : vector<8x1xf32> to vector<8x64xf32>
    %472 = arith.mulf %471, %470 : vector<8x64xf32>
    %473 = arith.addf %466, %472 : vector<8x64xf32>
    %474 = arith.subf %421, %429 : vector<8x1xf32>
    %475 = math.exp %474 : vector<8x1xf32>
    %476 = arith.addf %469, %475 : vector<8x1xf32>
    %477 = vector.extract_strided_slice %405 {offsets = [48, 0], sizes = [8, 64], strides = [1, 1]} : vector<64x64xf32> to vector<8x64xf32>
    %478 = vector.broadcast %475 : vector<8x1xf32> to vector<8x64xf32>
    %479 = arith.mulf %478, %477 : vector<8x64xf32>
    %480 = arith.addf %473, %479 : vector<8x64xf32>
    %481 = arith.subf %422, %429 : vector<8x1xf32>
    %482 = math.exp %481 : vector<8x1xf32>
    %483 = arith.addf %476, %482 : vector<8x1xf32>
    %484 = vector.extract_strided_slice %405 {offsets = [56, 0], sizes = [8, 64], strides = [1, 1]} : vector<64x64xf32> to vector<8x64xf32>
    %485 = vector.broadcast %482 : vector<8x1xf32> to vector<8x64xf32>
    %486 = arith.mulf %485, %484 : vector<8x64xf32>
    %487 = arith.addf %480, %486 : vector<8x64xf32>
    %488 = vector.broadcast %483 : vector<8x1xf32> to vector<8x64xf32>
    %489 = arith.divf %487, %488 : vector<8x64xf32>
    %c0_96 = arith.constant 0 : index
    %c0_97 = arith.constant 0 : index
    %490 = vector.load %arg14[%c0_96, %c0_97] : memref<64x32xf32, #tpu.memory_space<vmem>>, vector<64x32xf32>
    %cst_98 = arith.constant dense<0.000000e+00> : vector<8x32xf32>
    %491 = tpu.matmul %489, %490, %cst_98 {dimension_numbers = #tpu.dot_dimension_numbers<[1], [0], [0], [1], [0, 0, 1, 1], [], []>} : vector<8x64xf32>, vector<64x32xf32>, vector<8x32xf32> -> vector<8x32xf32>
    %c0_99 = arith.constant 0 : index
    %c0_100 = arith.constant 0 : index
    %492 = vector.load %arg15[%c0_99, %c0_100] : memref<1x32xf32, #tpu.memory_space<vmem>>, vector<1x32xf32>
    %493 = vector.broadcast %492 : vector<1x32xf32> to vector<8x32xf32>
    %494 = arith.addf %491, %493 : vector<8x32xf32>
    %c0_101 = arith.constant 0 : index
    %c0_102 = arith.constant 0 : index
    %495 = vector.load %arg16[%c0_101, %c0_102] : memref<1x32xf32, #tpu.memory_space<vmem>>, vector<1x32xf32>
    %496 = vector.broadcast %495 : vector<1x32xf32> to vector<8x32xf32>
    %497 = arith.mulf %494, %496 : vector<8x32xf32>
    %c0_103 = arith.constant 0 : index
    %c0_104 = arith.constant 0 : index
    %498 = vector.load %arg17[%c0_103, %c0_104] : memref<1x32xf32, #tpu.memory_space<vmem>>, vector<1x32xf32>
    %499 = vector.broadcast %498 : vector<1x32xf32> to vector<8x32xf32>
    %500 = arith.addf %497, %499 : vector<8x32xf32>
    %cst_105 = arith.constant 0.000000e+00 : f32
    %501 = vector.broadcast %cst_105 : f32 to vector<8x32xf32>
    %502 = arith.maximumf %500, %501 : vector<8x32xf32>
    %c0_106 = arith.constant 0 : index
    %c0_107 = arith.constant 0 : index
    %503 = vector.load %arg18[%c0_106, %c0_107] : memref<32x128xf32, #tpu.memory_space<vmem>>, vector<32x128xf32>
    %cst_108 = arith.constant dense<0.000000e+00> : vector<8x128xf32>
    %504 = tpu.matmul %502, %503, %cst_108 {dimension_numbers = #tpu.dot_dimension_numbers<[1], [0], [0], [1], [0, 0, 1, 1], [], []>} : vector<8x32xf32>, vector<32x128xf32>, vector<8x128xf32> -> vector<8x128xf32>
    %c0_109 = arith.constant 0 : index
    %c0_110 = arith.constant 0 : index
    %505 = vector.load %arg19[%c0_109, %c0_110] : memref<1x128xf32, #tpu.memory_space<vmem>>, vector<1x128xf32>
    %506 = vector.broadcast %505 : vector<1x128xf32> to vector<8x128xf32>
    %507 = arith.addf %504, %506 : vector<8x128xf32>
    %c0_111 = arith.constant 0 : index
    %c0_112 = arith.constant 0 : index
    %508 = vector.load %arg20[%c0_111, %c0_112] : memref<8x128xf32, #tpu.memory_space<vmem>>, vector<8x128xf32>
    tpu.vector_store %arg20[%c0_111, %c0_112], %507 {strides = array<i32>} : memref<8x128xf32, #tpu.memory_space<vmem>>, vector<8x128xf32>,
    return
  }
  func.func @transform_0(%arg0: i32) -> (i32, i32) {
    %c0_i32 = arith.constant 0 : i32
    %c0_i32_0 = arith.constant 0 : i32
    return %arg0, %c0_i32 : i32, i32
  }
  func.func @transform_1(%arg0: i32) -> (i32, i32) {
    %c0_i32 = arith.constant 0 : i32
    %c0_i32_0 = arith.constant 0 : i32
    %c0_i32_1 = arith.constant 0 : i32
    return %c0_i32, %c0_i32_0 : i32, i32
  }
  func.func @transform_2(%arg0: i32) -> (i32, i32) {
    %c0_i32 = arith.constant 0 : i32
    %c0_i32_0 = arith.constant 0 : i32
    %c0_i32_1 = arith.constant 0 : i32
    return %c0_i32, %c0_i32_0 : i32, i32
  }
  func.func @transform_3(%arg0: i32) -> (i32, i32) {
    %c0_i32 = arith.constant 0 : i32
    %c0_i32_0 = arith.constant 0 : i32
    %c0_i32_1 = arith.constant 0 : i32
    return %c0_i32, %c0_i32_0 : i32, i32
  }
  func.func @transform_4(%arg0: i32) -> (i32, i32) {
    %c0_i32 = arith.constant 0 : i32
    %c0_i32_0 = arith.constant 0 : i32
    %c0_i32_1 = arith.constant 0 : i32
    return %c0_i32, %c0_i32_0 : i32, i32
  }
  func.func @transform_5(%arg0: i32) -> (i32, i32) {
    %c0_i32 = arith.constant 0 : i32
    %c0_i32_0 = arith.constant 0 : i32
    %c0_i32_1 = arith.constant 0 : i32
    return %c0_i32, %c0_i32_0 : i32, i32
  }
  func.func @transform_6(%arg0: i32) -> (i32, i32) {
    %c0_i32 = arith.constant 0 : i32
    %c0_i32_0 = arith.constant 0 : i32
    %c0_i32_1 = arith.constant 0 : i32
    return %c0_i32, %c0_i32_0 : i32, i32
  }
  func.func @transform_7(%arg0: i32) -> (i32, i32) {
    %c0_i32 = arith.constant 0 : i32
    %c0_i32_0 = arith.constant 0 : i32
    %c0_i32_1 = arith.constant 0 : i32
    return %c0_i32, %c0_i32_0 : i32, i32
  }
  func.func @transform_8(%arg0: i32) -> (i32, i32) {
    %c0_i32 = arith.constant 0 : i32
    %c0_i32_0 = arith.constant 0 : i32
    %c0_i32_1 = arith.constant 0 : i32
    return %c0_i32, %c0_i32_0 : i32, i32
  }
  func.func @transform_9(%arg0: i32) -> (i32, i32) {
    %c0_i32 = arith.constant 0 : i32
    %c0_i32_0 = arith.constant 0 : i32
    %c0_i32_1 = arith.constant 0 : i32
    return %c0_i32, %c0_i32_0 : i32, i32
  }
  func.func @transform_10(%arg0: i32) -> (i32, i32) {
    %c0_i32 = arith.constant 0 : i32
    %c0_i32_0 = arith.constant 0 : i32
    %c0_i32_1 = arith.constant 0 : i32
    return %c0_i32, %c0_i32_0 : i32, i32
  }
  func.func @transform_11(%arg0: i32) -> (i32, i32) {
    %c0_i32 = arith.constant 0 : i32
    %c0_i32_0 = arith.constant 0 : i32
    %c0_i32_1 = arith.constant 0 : i32
    return %c0_i32, %c0_i32_0 : i32, i32
  }
  func.func @transform_12(%arg0: i32) -> (i32, i32) {
    %c0_i32 = arith.constant 0 : i32
    %c0_i32_0 = arith.constant 0 : i32
    %c0_i32_1 = arith.constant 0 : i32
    return %c0_i32, %c0_i32_0 : i32, i32
  }
  func.func @transform_13(%arg0: i32) -> (i32, i32) {
    %c0_i32 = arith.constant 0 : i32
    %c0_i32_0 = arith.constant 0 : i32
    %c0_i32_1 = arith.constant 0 : i32
    return %c0_i32, %c0_i32_0 : i32, i32
  }
  func.func @transform_14(%arg0: i32) -> (i32, i32) {
    %c0_i32 = arith.constant 0 : i32
    %c0_i32_0 = arith.constant 0 : i32
    %c0_i32_1 = arith.constant 0 : i32
    return %c0_i32, %c0_i32_0 : i32, i32
  }
  func.func @transform_15(%arg0: i32) -> (i32, i32) {
    %c0_i32 = arith.constant 0 : i32
    %c0_i32_0 = arith.constant 0 : i32
    %c0_i32_1 = arith.constant 0 : i32
    return %c0_i32, %c0_i32_0 : i32, i32
  }
  func.func @transform_16(%arg0: i32) -> (i32, i32) {
    %c0_i32 = arith.constant 0 : i32
    %c0_i32_0 = arith.constant 0 : i32
    %c0_i32_1 = arith.constant 0 : i32
    return %c0_i32, %c0_i32_0 : i32, i32
  }
  func.func @transform_17(%arg0: i32) -> (i32, i32) {
    %c0_i32 = arith.constant 0 : i32
    %c0_i32_0 = arith.constant 0 : i32
    %c0_i32_1 = arith.constant 0 : i32
    return %c0_i32, %c0_i32_0 : i32, i32
  }
  func.func @transform_18(%arg0: i32) -> (i32, i32) {
    %c0_i32 = arith.constant 0 : i32
    %c0_i32_0 = arith.constant 0 : i32
    %c0_i32_1 = arith.constant 0 : i32
    return %c0_i32, %c0_i32_0 : i32, i32
  }
  func.func @transform_19(%arg0: i32) -> (i32, i32) {
    %c0_i32 = arith.constant 0 : i32
    %c0_i32_0 = arith.constant 0 : i32
    return %arg0, %c0_i32 : i32, i32
  }
}

</mosaic_0001>

<llo_original>
// kernel: tpu_custom_call.1
$region0: #{tpu_custom_call.1}
  #allocation0 [shape = 'u32[]', space=smem, size = 0x4, offset = 0x4, fixed_abs, tag = 'smem constant byte address 0x4 - core index']
  #allocation1 [shape = 'u32[72,128]{1,0:T(1,128)}', space=vmem, size = 0x9000, scoped, tag = 'internal scratch']
  #allocation2 [shape = 'f32[64,256]{1,0:T(8,128)}', space=vmem, size = 0x10000, scoped, tag = 'scratch operand']
  #allocation3 [shape = 'f32[1,1]{1,0:T(1,128)S(1)}', space=vmem, size = 0x200, scoped, tag = 'scoped memory for tpu_custom_call.1']
  %s0 = inlined_call_operand.vmem [shape: f32[64,24], index: 0, kind: input, shape index: {}]
  %s1 = inlined_call_operand.hbm [shape: f32[24,32], index: 1, kind: input, shape index: {}]
  %s2 = inlined_call_operand.hbm [shape: f32[1,32], index: 2, kind: input, shape index: {}]
  %s3 = inlined_call_operand.hbm [shape: f32[1,32], index: 3, kind: input, shape index: {}]
  %s4 = inlined_call_operand.hbm [shape: f32[1,32], index: 4, kind: input, shape index: {}]
  %s5 = inlined_call_operand.vmem [shape: f32[64,256], index: 5, kind: input, shape index: {}]
  %s6 = inlined_call_operand.hbm [shape: f32[64,256], index: 6, kind: input, shape index: {}]
  %s7 = inlined_call_operand.hbm [shape: f32[1,256], index: 7, kind: input, shape index: {}]
  %s8 = inlined_call_operand.hbm [shape: f32[128,256], index: 8, kind: input, shape index: {}]
  %s9 = inlined_call_operand.hbm [shape: f32[64,256], index: 9, kind: input, shape index: {}]
  %s10 = inlined_call_operand.vmem [shape: f32[1,256], index: 10, kind: input, shape index: {}]
  %s11 = inlined_call_operand.hbm [shape: f32[1,64], index: 11, kind: input, shape index: {}]
  %s12 = inlined_call_operand.<no memory space> [shape: f32[1,1], index: 12, kind: input, shape index: {}]
  %s13 = inlined_call_operand.vmem [shape: f32[64,32], index: 13, kind: input, shape index: {}]
  %s14 = inlined_call_operand.vmem [shape: f32[1,32], index: 14, kind: input, shape index: {}]
  %s15 = inlined_call_operand.vmem [shape: f32[1,32], index: 15, kind: input, shape index: {}]
  %s16 = inlined_call_operand.vmem [shape: f32[1,32], index: 16, kind: input, shape index: {}]
  %s17 = inlined_call_operand.vmem [shape: f32[32,128], index: 17, kind: input, shape index: {}]
  %s18 = inlined_call_operand.vmem [shape: f32[1,128], index: 18, kind: input, shape index: {}]
  %s19 = inlined_call_operand.hbm [shape: f32[8,128], index: 19, kind: output, shape index: {}]
  %s20 = sld [smem:[#allocation0]]
  $region122: #{tpu_custom_call.1} parent=0
    _
  %s22 = ssub.s32 1, %s20
  %s23 = scalar_select 0, %s22, %s20
  %v24 = vstv %s12
  %25 = vst [vmem:[#allocation3] sm:$0x1] %v24
  $region1: #{tpu_custom_call.1} parent=0
    #allocation4 [shape = 'u8[12288]{0}', space=vmem, size = 0x3000, scoped, tag = 'input window, operand 1, single buffered']
    #allocation5 [shape = 's32[1]{0}', space=sflag, size = 0x4, scoped, tag = 'scoped memory for tpu_custom_call.1']
    #allocation6 [shape = 's32[1]{0}', space=sflag, size = 0x4, scoped, tag = 'scoped memory for tpu_custom_call.1']
    #allocation7 [shape = 'u8[512]{0}', space=vmem, size = 0x400, scoped, tag = 'input window, operand 2, single buffered']
    #allocation8 [shape = 's32[1]{0}', space=sflag, size = 0x4, scoped, tag = 'scoped memory for tpu_custom_call.1']
    #allocation9 [shape = 'u8[512]{0}', space=vmem, size = 0x400, scoped, tag = 'input window, operand 3, single buffered']
    #allocation10 [shape = 'u8[512]{0}', space=vmem, size = 0x400, scoped, tag = 'input window, operand 4, single buffered']
    #allocation11 [shape = 's32[1]{0}', space=sflag, size = 0x4, scoped, tag = 'scoped memory for tpu_custom_call.1']
    #allocation12 [shape = 'u8[65536]{0}', space=vmem, size = 0x10000, scoped, tag = 'input window, operand 6, single buffered']
    #allocation13 [shape = 'u8[1024]{0}', space=vmem, size = 0x400, scoped, tag = 'input window, operand 7, single buffered']
    #allocation14 [shape = 's32[1]{0}', space=sflag, size = 0x4, scoped, tag = 'scoped memory for tpu_custom_call.1']
    #allocation15 [shape = 'u8[131072]{0}', space=vmem, size = 0x20000, scoped, tag = 'input window, operand 8, single buffered']
    #allocation16 [shape = 'u8[65536]{0}', space=vmem, size = 0x10000, scoped, tag = 'input window, operand 9, single buffered']
    #allocation17 [shape = 's32[1]{0}', space=sflag, size = 0x4, scoped, tag = 'scoped memory for tpu_custom_call.1']
    #allocation18 [shape = 'u8[512]{0}', space=vmem, size = 0x400, scoped, tag = 'input window, operand 11, single buffered']
    #allocation19 [shape = 'u8[4096]{0}', space=vmem, size = 0x1000, scoped, tag = 'output window, operand 0, single buffered']
    %26 = vsyncpa [#allocation5], 0
    %27 = vsyncpa [#allocation8], 0
    %28 = vsyncpa [#allocation11], 0
    %29 = vsyncpa [#allocation14], 0
    %30 = vsyncpa [#allocation17], 0
    %31 = vsyncpa [#allocation6], 0
    // Predicated region
    $region2: #{tpu_custom_call.1} parent=1 // pred_check
      _
    $region3: #{tpu_custom_call.1} parent=1 // pred_check_branch
      %33 = sbr.rel (0) target = $region5
    $region4: #{tpu_custom_call.1} parent=1 // pred_region
      _
    $region5: #{tpu_custom_call.1} parent=1 // pred_fallthru
      _
    // Predicated region
    $region6: #{tpu_custom_call.1} parent=1 // pred_check
      _
    $region7: #{tpu_custom_call.1} parent=1 // pred_check_branch
      %35 = sbr.rel (0) target = $region9
    $region8: #{tpu_custom_call.1} parent=1 // pred_region
      %37 = vsyncadd [#allocation5], 0
      %s38 = sshll.u32 %s1, 4
      %s39 = int_to_ptr.hbm [resolvable:$true] %s38
      %s40 = sshll.u32 [#allocation4], 4
      %s41 = int_to_ptr.vmem [resolvable:$true] %s40
      %46 = dma.hbm_to_vmem [thread:$0]  %s39, 384, %s41, [#allocation5], 128, 128, 8
    $region9: #{tpu_custom_call.1} parent=1 // pred_fallthru
      _
    // Predicated region
    $region10: #{tpu_custom_call.1} parent=1 // pred_check
      _
    $region11: #{tpu_custom_call.1} parent=1 // pred_check_branch
      %48 = sbr.rel (0) target = $region13
    $region12: #{tpu_custom_call.1} parent=1 // pred_region
      %50 = vsyncadd [#allocation8], 0
      %s52 = sshll.u32 %s2, 4
      %s53 = int_to_ptr.hbm [resolvable:$true] %s52
      %s54 = sshll.u32 [#allocation7], 4
      %s55 = int_to_ptr.vmem [resolvable:$true] %s54
      %57 = dma.hbm_to_vmem [thread:$0]  %s53, 16, %s55, [#allocation8]
    $region13: #{tpu_custom_call.1} parent=1 // pred_fallthru
      _
    // Predicated region
    $region14: #{tpu_custom_call.1} parent=1 // pred_check
      _
    $region15: #{tpu_custom_call.1} parent=1 // pred_check_branch
      %59 = sbr.rel (0) target = $region17
    $region16: #{tpu_custom_call.1} parent=1 // pred_region
      %61 = vsyncadd [#allocation8], 0
      %s63 = sshll.u32 %s3, 4
      %s64 = int_to_ptr.hbm [resolvable:$true] %s63
      %s65 = sshll.u32 [#allocation9], 4
      %s66 = int_to_ptr.vmem [resolvable:$true] %s65
      %68 = dma.hbm_to_vmem [thread:$0]  %s64, 16, %s66, [#allocation8]
    $region17: #{tpu_custom_call.1} parent=1 // pred_fallthru
      _
    // Predicated region
    $region18: #{tpu_custom_call.1} parent=1 // pred_check
      _
    $region19: #{tpu_custom_call.1} parent=1 // pred_check_branch
      %70 = sbr.rel (0) target = $region21
    $region20: #{tpu_custom_call.1} parent=1 // pred_region
      %72 = vsyncadd [#allocation11], 0
      %s74 = sshll.u32 %s4, 4
      %s75 = int_to_ptr.hbm [resolvable:$true] %s74
      %s76 = sshll.u32 [#allocation10], 4
      %s77 = int_to_ptr.vmem [resolvable:$true] %s76
      %79 = dma.hbm_to_vmem [thread:$0]  %s75, 16, %s77, [#allocation11]
    $region21: #{tpu_custom_call.1} parent=1 // pred_fallthru
      _
    // Predicated region
    $region22: #{tpu_custom_call.1} parent=1 // pred_check
      _
    $region23: #{tpu_custom_call.1} parent=1 // pred_check_branch
      %81 = sbr.rel (0) target = $region25
    $region24: #{tpu_custom_call.1} parent=1 // pred_region
      _
    $region25: #{tpu_custom_call.1} parent=1 // pred_fallthru
      _
    // Predicated region
    $region26: #{tpu_custom_call.1} parent=1 // pred_check
      _
    $region27: #{tpu_custom_call.1} parent=1 // pred_check_branch
      %83 = sbr.rel (0) target = $region29
    $region28: #{tpu_custom_call.1} parent=1 // pred_region
      %85 = vsyncadd [#allocation11], 0
      %s86 = sshll.u32 %s6, 4
      %s87 = int_to_ptr.hbm [resolvable:$true] %s86
      %s88 = sshll.u32 [#allocation12], 4
      %s89 = int_to_ptr.vmem [resolvable:$true] %s88
      %94 = dma.hbm_to_vmem [thread:$0]  %s87, 2048, %s89, [#allocation11], 256, 256, 16
    $region29: #{tpu_custom_call.1} parent=1 // pred_fallthru
      _
    // Predicated region
    $region30: #{tpu_custom_call.1} parent=1 // pred_check
      _
    $region31: #{tpu_custom_call.1} parent=1 // pred_check_branch
      %96 = sbr.rel (0) target = $region33
    $region32: #{tpu_custom_call.1} parent=1 // pred_region
      %98 = vsyncadd [#allocation14], 0
      %s100 = sshll.u32 %s7, 4
      %s101 = int_to_ptr.hbm [resolvable:$true] %s100
      %s102 = sshll.u32 [#allocation13], 4
      %s103 = int_to_ptr.vmem [resolvable:$true] %s102
      %105 = dma.hbm_to_vmem [thread:$0]  %s101, 32, %s103, [#allocation14]
    $region33: #{tpu_custom_call.1} parent=1 // pred_fallthru
      _
    // Predicated region
    $region34: #{tpu_custom_call.1} parent=1 // pred_check
      _
    $region35: #{tpu_custom_call.1} parent=1 // pred_check_branch
      %107 = sbr.rel (0) target = $region37
    $region36: #{tpu_custom_call.1} parent=1 // pred_region
      %109 = vsyncadd [#allocation14], 0
      %s110 = sshll.u32 %s8, 4
      %s111 = int_to_ptr.hbm [resolvable:$true] %s110
      %s112 = sshll.u32 [#allocation15], 4
      %s113 = int_to_ptr.vmem [resolvable:$true] %s112
      %118 = dma.hbm_to_vmem [thread:$0]  %s111, 4096, %s113, [#allocation14], 256, 256, 16
    $region37: #{tpu_custom_call.1} parent=1 // pred_fallthru
      _
    // Predicated region
    $region38: #{tpu_custom_call.1} parent=1 // pred_check
      _
    $region39: #{tpu_custom_call.1} parent=1 // pred_check_branch
      %120 = sbr.rel (0) target = $region41
    $region40: #{tpu_custom_call.1} parent=1 // pred_region
      %122 = vsyncadd [#allocation17], 0
      %s123 = sshll.u32 %s9, 4
      %s124 = int_to_ptr.hbm [resolvable:$true] %s123
      %s125 = sshll.u32 [#allocation16], 4
      %s126 = int_to_ptr.vmem [resolvable:$true] %s125
      %131 = dma.hbm_to_vmem [thread:$0]  %s124, 2048, %s126, [#allocation17], 256, 256, 16
    $region41: #{tpu_custom_call.1} parent=1 // pred_fallthru
      _
    // Predicated region
    $region42: #{tpu_custom_call.1} parent=1 // pred_check
      _
    $region43: #{tpu_custom_call.1} parent=1 // pred_check_branch
      %133 = sbr.rel (0) target = $region45
    $region44: #{tpu_custom_call.1} parent=1 // pred_region
      _
    $region45: #{tpu_custom_call.1} parent=1 // pred_fallthru
      _
    // Predicated region
    $region46: #{tpu_custom_call.1} parent=1 // pred_check
      _
    $region47: #{tpu_custom_call.1} parent=1 // pred_check_branch
      %135 = sbr.rel (0) target = $region49
    $region48: #{tpu_custom_call.1} parent=1 // pred_region
      %137 = vsyncadd [#allocation17], 0
      %s139 = sshll.u32 %s11, 4
      %s140 = int_to_ptr.hbm [resolvable:$true] %s139
      %s141 = sshll.u32 [#allocation18], 4
      %s142 = int_to_ptr.vmem [resolvable:$true] %s141
      %144 = dma.hbm_to_vmem [thread:$0]  %s140, 16, %s142, [#allocation17]
    $region49: #{tpu_custom_call.1} parent=1 // pred_fallthru
      _
    // Predicated region
    $region50: #{tpu_custom_call.1} parent=1 // pred_check
      _
    $region51: #{tpu_custom_call.1} parent=1 // pred_check_branch
      %146 = sbr.rel (0) target = $region53
    $region52: #{tpu_custom_call.1} parent=1 // pred_region
      _
    $region53: #{tpu_custom_call.1} parent=1 // pred_fallthru
      _
    // Predicated region
    $region54: #{tpu_custom_call.1} parent=1 // pred_check
      _
    $region55: #{tpu_custom_call.1} parent=1 // pred_check_branch
      %148 = sbr.rel (0) target = $region57
    $region56: #{tpu_custom_call.1} parent=1 // pred_region
      _
    $region57: #{tpu_custom_call.1} parent=1 // pred_fallthru
      _
    // Predicated region
    $region58: #{tpu_custom_call.1} parent=1 // pred_check
      _
    $region59: #{tpu_custom_call.1} parent=1 // pred_check_branch
      %150 = sbr.rel (0) target = $region61
    $region60: #{tpu_custom_call.1} parent=1 // pred_region
      _
    $region61: #{tpu_custom_call.1} parent=1 // pred_fallthru
      _
    // Predicated region
    $region62: #{tpu_custom_call.1} parent=1 // pred_check
      _
    $region63: #{tpu_custom_call.1} parent=1 // pred_check_branch
      %152 = sbr.rel (0) target = $region65
    $region64: #{tpu_custom_call.1} parent=1 // pred_region
      _
    $region65: #{tpu_custom_call.1} parent=1 // pred_fallthru
      _
    // Predicated region
    $region66: #{tpu_custom_call.1} parent=1 // pred_check
      _
    $region67: #{tpu_custom_call.1} parent=1 // pred_check_branch
      %154 = sbr.rel (0) target = $region69
    $region68: #{tpu_custom_call.1} parent=1 // pred_region
      _
    $region69: #{tpu_custom_call.1} parent=1 // pred_fallthru
      _
    // Predicated region
    $region70: #{tpu_custom_call.1} parent=1 // pred_check
      _
    $region71: #{tpu_custom_call.1} parent=1 // pred_check_branch
      %156 = sbr.rel (0) target = $region73
    $region72: #{tpu_custom_call.1} parent=1 // pred_region
      _
    $region73: #{tpu_custom_call.1} parent=1 // pred_fallthru
      _
    // Predicated region
    $region74: #{tpu_custom_call.1} parent=1 // pred_check
      _
    $region75: #{tpu_custom_call.1} parent=1 // pred_check_branch
      %158 = sbr.rel (0) target = $region77
    $region76: #{tpu_custom_call.1} parent=1 // pred_region
      _
    $region77: #{tpu_custom_call.1} parent=1 // pred_fallthru
      _
    // Predicated region
    $region78: #{tpu_custom_call.1} parent=1 // pred_check
      _
    $region79: #{tpu_custom_call.1} parent=1 // pred_check_branch
      %160 = sbr.rel (0) target = $region81
    $region80: #{tpu_custom_call.1} parent=1 // pred_region
      %162 = dma.done [#allocation5], 384
    $region81: #{tpu_custom_call.1} parent=1 // pred_fallthru
      _
    // Predicated region
    $region82: #{tpu_custom_call.1} parent=1 // pred_check
      _
    $region83: #{tpu_custom_call.1} parent=1 // pred_check_branch
      %164 = sbr.rel (0) target = $region85
    $region84: #{tpu_custom_call.1} parent=1 // pred_region
      %166 = dma.done [#allocation8], 16
    $region85: #{tpu_custom_call.1} parent=1 // pred_fallthru
      _
    // Predicated region
    $region86: #{tpu_custom_call.1} parent=1 // pred_check
      _
    $region87: #{tpu_custom_call.1} parent=1 // pred_check_branch
      %168 = sbr.rel (0) target = $region89
    $region88: #{tpu_custom_call.1} parent=1 // pred_region
      %170 = dma.done [#allocation8], 16
    $region89: #{tpu_custom_call.1} parent=1 // pred_fallthru
      _
    // Predicated region
    $region90: #{tpu_custom_call.1} parent=1 // pred_check
      _
    $region91: #{tpu_custom_call.1} parent=1 // pred_check_branch
      %172 = sbr.rel (0) target = $region93
    $region92: #{tpu_custom_call.1} parent=1 // pred_region
      %174 = dma.done [#allocation11], 16
    $region93: #{tpu_custom_call.1} parent=1 // pred_fallthru
      _
    // Predicated region
    $region94: #{tpu_custom_call.1} parent=1 // pred_check
      _
    $region95: #{tpu_custom_call.1} parent=1 // pred_check_branch
      %176 = sbr.rel (0) target = $region97
    $region96: #{tpu_custom_call.1} parent=1 // pred_region
      %178 = dma.done [#allocation11], 2048
    $region97: #{tpu_custom_call.1} parent=1 // pred_fallthru
      _
    // Predicated region
    $region98: #{tpu_custom_call.1} parent=1 // pred_check
      _
    $region99: #{tpu_custom_call.1} parent=1 // pred_check_branch
      %180 = sbr.rel (0) target = $region101
    $region100: #{tpu_custom_call.1} parent=1 // pred_region
      %182 = dma.done [#allocation14], 32
    $region101: #{tpu_custom_call.1} parent=1 // pred_fallthru
      _
    // Predicated region
    $region102: #{tpu_custom_call.1} parent=1 // pred_check
      _
    $region103: #{tpu_custom_call.1} parent=1 // pred_check_branch
      %184 = sbr.rel (0) target = $region105
    $region104: #{tpu_custom_call.1} parent=1 // pred_region
      %186 = dma.done [#allocation14], 4096
    $region105: #{tpu_custom_call.1} parent=1 // pred_fallthru
      _
    // Predicated region
    $region106: #{tpu_custom_call.1} parent=1 // pred_check
      _
    $region107: #{tpu_custom_call.1} parent=1 // pred_check_branch
      %188 = sbr.rel (0) target = $region109
    $region108: #{tpu_custom_call.1} parent=1 // pred_region
      %190 = dma.done [#allocation17], 2048
    $region109: #{tpu_custom_call.1} parent=1 // pred_fallthru
      _
    // Predicated region
    $region110: #{tpu_custom_call.1} parent=1 // pred_check
      _
    $region111: #{tpu_custom_call.1} parent=1 // pred_check_branch
      %192 = sbr.rel (0) target = $region113
    $region112: #{tpu_custom_call.1} parent=1 // pred_region
      %194 = dma.done [#allocation17], 16
    $region113: #{tpu_custom_call.1} parent=1 // pred_fallthru
      _
    %v195 = vld [vmem:[%s0] sm:$0xff]
    %v196 = vld [vmem:[%s0 + $0x8] sm:$0xff]
    %v197 = vld [vmem:[%s0 + $0x10] sm:$0xff]
    %v198 = vld [vmem:[%s0 + $0x18] sm:$0xff]
    %v199 = vld [vmem:[%s0 + $0x20] sm:$0xff]
    %v200 = vld [vmem:[%s0 + $0x28] sm:$0xff]
    %v201 = vld [vmem:[%s0 + $0x30] sm:$0xff]
    %v202 = vld [vmem:[%s0 + $0x38] sm:$0xff]
    %v203 = vld [vmem:[#allocation4] sm:$0xff]
    %v204 = vld [vmem:[#allocation4 + $0x8] sm:$0xff]
    %v205 = vld [vmem:[#allocation4 + $0x10] sm:$0xff]
    %v206 = vld [vmem:[#allocation7] sm:$0x1]
    %v208 = vperm.slane %v206, 0
    %vm210 = vcmask 195584
    %v212 = vsel %vm210, %v195, 0
    %v215 = vsel %vm210, %v196, 0
    %v218 = vsel %vm210, %v197, 0
    %v221 = vsel %vm210, %v198, 0
    %v224 = vsel %vm210, %v199, 0
    %v227 = vsel %vm210, %v200, 0
    %v230 = vsel %vm210, %v201, 0
    %v233 = vsel %vm210, %v202, 0
    %235 = vmatpush.msra.mxu0 0.0
    %236 = vmatpush.msra.mxu0 0.0
    %237 = vmatpush.msra.mxu0 0.0
    %238 = vmatpush.msra.mxu0 0.0
    %239 = vmatpush.msra.mxu0 0.0
    %240 = vmatpush.msra.mxu0 0.0
    %241 = vmatpush.msra.mxu0 0.0
    %242 = vmatpush.msra.mxu0 0.0
    %243 = vmatpush.msra.mxu0 0.0
    %244 = vmatpush.msra.mxu0 0.0
    %245 = vmatpush.msra.mxu0 0.0
    %246 = vmatpush.msra.mxu0 0.0
    %247 = vmatpush.msra.mxu0 0.0
    %248 = vmatpush.msra.mxu0 %v205
    %249 = vmatpush.msra.mxu0 %v204
    %250 = vmatpush.msra.mxu0 %v203
    %251 = vmatmul.f32.gmra.mxu0 %v212
    %v252 = vpop.f32.mrf.mxu0
    %v253 = vadd.f32 %v208, %v252
    %254 = vmatmul.f32.gmra.mxu0 %v215
    %v255 = vpop.f32.mrf.mxu0
    %v256 = vadd.f32 %v208, %v255
    %257 = vmatmul.f32.gmra.mxu0 %v218
    %v258 = vpop.f32.mrf.mxu0
    %v259 = vadd.f32 %v208, %v258
    %260 = vmatmul.f32.gmra.mxu0 %v221
    %v261 = vpop.f32.mrf.mxu0
    %v262 = vadd.f32 %v208, %v261
    %263 = vmatmul.f32.gmra.mxu0 %v224
    %v264 = vpop.f32.mrf.mxu0
    %v265 = vadd.f32 %v208, %v264
    %266 = vmatmul.f32.gmra.mxu0 %v227
    %v267 = vpop.f32.mrf.mxu0
    %v268 = vadd.f32 %v208, %v267
    %269 = vmatmul.f32.gmra.mxu0 %v230
    %v270 = vpop.f32.mrf.mxu0
    %v271 = vadd.f32 %v208, %v270
    %272 = vmatmul.f32.gmra.mxu0 %v233
    %v273 = vpop.f32.mrf.mxu0
    %v274 = vadd.f32 %v208, %v273
    %275 = vdwg.mxu0
    %v276 = vld [vmem:[#allocation9] sm:$0x1]
    %v278 = vperm.slane %v276, 0
    %v280 = vmul.f32 %v253, %v278
    %v281 = vmul.f32 %v256, %v278
    %v282 = vmul.f32 %v259, %v278
    %v283 = vmul.f32 %v262, %v278
    %v284 = vmul.f32 %v265, %v278
    %v285 = vmul.f32 %v268, %v278
    %v286 = vmul.f32 %v271, %v278
    %v287 = vmul.f32 %v274, %v278
    %v288 = vld [vmem:[#allocation10] sm:$0x1]
    %v290 = vperm.slane %v288, 0
    %v292 = vadd.f32 %v280, %v290
    %v293 = vadd.f32 %v281, %v290
    %v294 = vadd.f32 %v282, %v290
    %v295 = vadd.f32 %v283, %v290
    %v296 = vadd.f32 %v284, %v290
    %v297 = vadd.f32 %v285, %v290
    %v298 = vadd.f32 %v286, %v290
    %v299 = vadd.f32 %v287, %v290
    %v300 = vmax.f32 %v292, 0.0
    %v301 = vmax.f32 %v293, 0.0
    %v302 = vmax.f32 %v294, 0.0
    %v303 = vmax.f32 %v295, 0.0
    %v304 = vmax.f32 %v296, 0.0
    %v305 = vmax.f32 %v297, 0.0
    %v306 = vmax.f32 %v298, 0.0
    %v307 = vmax.f32 %v299, 0.0
    %316 = vrot.lane.b32.xlu0 %v307, 32
    %v317 = vpop.permute.xlu0 %316
    %318 = vrot.lane.b32.xlu0 %v306, 32
    %v319 = vpop.permute.xlu0 %318
    %320 = vrot.lane.b32.xlu0 %v305, 32
    %v321 = vpop.permute.xlu0 %320
    %322 = vrot.lane.b32.xlu0 %v304, 32
    %v323 = vpop.permute.xlu0 %322
    %324 = vrot.lane.b32.xlu0 %v303, 32
    %v325 = vpop.permute.xlu0 %324
    %326 = vrot.lane.b32.xlu0 %v302, 32
    %v327 = vpop.permute.xlu0 %326
    %328 = vrot.lane.b32.xlu0 %v301, 32
    %v329 = vpop.permute.xlu0 %328
    %330 = vrot.lane.b32.xlu0 %v300, 32
    %v331 = vpop.permute.xlu0 %330
    %vm340 = vcmask 261120
    %v341 = vsel %vm340, %v300, %v317
    %v342 = vsel %vm340, %v301, %v319
    %v343 = vsel %vm340, %v302, %v321
    %v344 = vsel %vm340, %v303, %v323
    %v345 = vsel %vm340, %v304, %v325
    %v346 = vsel %vm340, %v305, %v327
    %v347 = vsel %vm340, %v306, %v329
    %v348 = vsel %vm340, %v307, %v331
    %v349 = vld [vmem:[%s5] sm:$0xff]
    %v350 = vld [vmem:[%s5 + $0x8] sm:$0xff]
    %v351 = vld [vmem:[%s5 + $0x10] sm:$0xff]
    %v352 = vld [vmem:[%s5 + $0x18] sm:$0xff]
    %v353 = vld [vmem:[%s5 + $0x20] sm:$0xff]
    %v354 = vld [vmem:[%s5 + $0x28] sm:$0xff]
    %v355 = vld [vmem:[%s5 + $0x30] sm:$0xff]
    %v356 = vld [vmem:[%s5 + $0x38] sm:$0xff]
    %v357 = vld [vmem:[%s5 + $0x40] sm:$0xff]
    %v358 = vld [vmem:[%s5 + $0x48] sm:$0xff]
    %v359 = vld [vmem:[%s5 + $0x50] sm:$0xff]
    %v360 = vld [vmem:[%s5 + $0x58] sm:$0xff]
    %v361 = vld [vmem:[%s5 + $0x60] sm:$0xff]
    %v362 = vld [vmem:[%s5 + $0x68] sm:$0xff]
    %v363 = vld [vmem:[%s5 + $0x70] sm:$0xff]
    %v364 = vld [vmem:[%s5 + $0x78] sm:$0xff]
    %v365 = vld [vmem:[#allocation13] sm:$0x3]
    %v367 = vperm.slane %v365, 0
    %v368 = vperm.slane %v365, 1
    %vm371 = vcmask 523264
    %v373 = vsel %vm371, %v341, 0
    %v376 = vsel %vm371, %v342, 0
    %v379 = vsel %vm371, %v343, 0
    %v382 = vsel %vm371, %v344, 0
    %v385 = vsel %vm371, %v345, 0
    %v388 = vsel %vm371, %v346, 0
    %v391 = vsel %vm371, %v347, 0
    %v394 = vsel %vm371, %v348, 0
    %396 = vmatpush.msra.mxu0 0.0
    %397 = vmatpush.msra.mxu0 0.0
    %398 = vmatpush.msra.mxu0 0.0
    %399 = vmatpush.msra.mxu0 0.0
    %400 = vmatpush.msra.mxu0 0.0
    %401 = vmatpush.msra.mxu0 0.0
    %402 = vmatpush.msra.mxu0 0.0
    %403 = vmatpush.msra.mxu0 0.0
    %404 = vmatpush.msra.mxu0 %v363
    %405 = vmatpush.msra.mxu0 %v361
    %406 = vmatpush.msra.mxu0 %v359
    %407 = vmatpush.msra.mxu0 %v357
    %408 = vmatpush.msra.mxu0 %v355
    %409 = vmatpush.msra.mxu0 %v353
    %410 = vmatpush.msra.mxu0 %v351
    %411 = vmatpush.msra.mxu0 %v349
    %412 = vmatmul.f32.gmra.mxu0 %v373
    %v413 = vpop.f32.mrf.mxu0
    %v414 = vadd.f32 %v367, %v413
    %415 = vmatmul.f32.gmra.mxu0 %v376
    %v416 = vpop.f32.mrf.mxu0
    %v417 = vadd.f32 %v367, %v416
    %418 = vmatmul.f32.gmra.mxu0 %v379
    %v419 = vpop.f32.mrf.mxu0
    %v420 = vadd.f32 %v367, %v419
    %421 = vmatmul.f32.gmra.mxu0 %v382
    %v422 = vpop.f32.mrf.mxu0
    %v423 = vadd.f32 %v367, %v422
    %424 = vmatmul.f32.gmra.mxu0 %v385
    %v425 = vpop.f32.mrf.mxu0
    %v426 = vadd.f32 %v367, %v425
    %427 = vmatmul.f32.gmra.mxu0 %v388
    %v428 = vpop.f32.mrf.mxu0
    %v429 = vadd.f32 %v367, %v428
    %430 = vmatmul.f32.gmra.mxu0 %v391
    %v431 = vpop.f32.mrf.mxu0
    %v432 = vadd.f32 %v367, %v431
    %433 = vmatmul.f32.gmra.mxu0 %v394
    %v434 = vpop.f32.mrf.mxu0
    %v435 = vadd.f32 %v367, %v434
    %436 = vdwg.mxu0
    %437 = vmatpush.msra.mxu0 0.0
    %438 = vmatpush.msra.mxu0 0.0
    %439 = vmatpush.msra.mxu0 0.0
    %440 = vmatpush.msra.mxu0 0.0
    %441 = vmatpush.msra.mxu0 0.0
    %442 = vmatpush.msra.mxu0 0.0
    %443 = vmatpush.msra.mxu0 0.0
    %444 = vmatpush.msra.mxu0 0.0
    %445 = vmatpush.msra.mxu0 %v364
    %446 = vmatpush.msra.mxu0 %v362
    %447 = vmatpush.msra.mxu0 %v360
    %448 = vmatpush.msra.mxu0 %v358
    %449 = vmatpush.msra.mxu0 %v356
    %450 = vmatpush.msra.mxu0 %v354
    %451 = vmatpush.msra.mxu0 %v352
    %452 = vmatpush.msra.mxu0 %v350
    %453 = vmatmul.f32.gmra.mxu0 %v373
    %v454 = vpop.f32.mrf.mxu0
    %v455 = vadd.f32 %v368, %v454
    %456 = vmatmul.f32.gmra.mxu0 %v376
    %v457 = vpop.f32.mrf.mxu0
    %v458 = vadd.f32 %v368, %v457
    %459 = vmatmul.f32.gmra.mxu0 %v379
    %v460 = vpop.f32.mrf.mxu0
    %v461 = vadd.f32 %v368, %v460
    %462 = vmatmul.f32.gmra.mxu0 %v382
    %v463 = vpop.f32.mrf.mxu0
    %v464 = vadd.f32 %v368, %v463
    %465 = vmatmul.f32.gmra.mxu0 %v385
    %v466 = vpop.f32.mrf.mxu0
    %v467 = vadd.f32 %v368, %v466
    %468 = vmatmul.f32.gmra.mxu0 %v388
    %v469 = vpop.f32.mrf.mxu0
    %v470 = vadd.f32 %v368, %v469
    %471 = vmatmul.f32.gmra.mxu0 %v391
    %v472 = vpop.f32.mrf.mxu0
    %v473 = vadd.f32 %v368, %v472
    %474 = vmatmul.f32.gmra.mxu0 %v394
    %v475 = vpop.f32.mrf.mxu0
    %v476 = vadd.f32 %v368, %v475
    %477 = vdwg.mxu0
    %478 = vst [vmem:[#allocation2] sm:$0xff] %v414
    %479 = vst [vmem:[#allocation2 + $0x8] sm:$0xff] %v455
    %480 = vst [vmem:[#allocation2 + $0x10] sm:$0xff] %v417
    %481 = vst [vmem:[#allocation2 + $0x18] sm:$0xff] %v458
    %482 = vst [vmem:[#allocation2 + $0x20] sm:$0xff] %v420
    %483 = vst [vmem:[#allocation2 + $0x28] sm:$0xff] %v461
    %484 = vst [vmem:[#allocation2 + $0x30] sm:$0xff] %v423
    %485 = vst [vmem:[#allocation2 + $0x38] sm:$0xff] %v464
    %486 = vst [vmem:[#allocation2 + $0x40] sm:$0xff] %v426
    %487 = vst [vmem:[#allocation2 + $0x48] sm:$0xff] %v467
    %488 = vst [vmem:[#allocation2 + $0x50] sm:$0xff] %v429
    %489 = vst [vmem:[#allocation2 + $0x58] sm:$0xff] %v470
    %490 = vst [vmem:[#allocation2 + $0x60] sm:$0xff] %v432
    %491 = vst [vmem:[#allocation2 + $0x68] sm:$0xff] %v473
    %492 = vst [vmem:[#allocation2 + $0x70] sm:$0xff] %v435
    %493 = vst [vmem:[#allocation2 + $0x78] sm:$0xff] %v476
    %v494 = vld [vmem:[#allocation12] sm:$0xff]
    %v495 = vld [vmem:[#allocation12 + $0x8] sm:$0xff]
    %v496 = vld [vmem:[#allocation12 + $0x10] sm:$0xff]
    %v497 = vld [vmem:[#allocation12 + $0x18] sm:$0xff]
    %v498 = vld [vmem:[#allocation12 + $0x20] sm:$0xff]
    %v499 = vld [vmem:[#allocation12 + $0x28] sm:$0xff]
    %v500 = vld [vmem:[#allocation12 + $0x30] sm:$0xff]
    %v501 = vld [vmem:[#allocation12 + $0x38] sm:$0xff]
    %v502 = vld [vmem:[#allocation12 + $0x40] sm:$0xff]
    %v503 = vld [vmem:[#allocation12 + $0x48] sm:$0xff]
    %v504 = vld [vmem:[#allocation12 + $0x50] sm:$0xff]
    %v505 = vld [vmem:[#allocation12 + $0x58] sm:$0xff]
    %v506 = vld [vmem:[#allocation12 + $0x60] sm:$0xff]
    %v507 = vld [vmem:[#allocation12 + $0x68] sm:$0xff]
    %v508 = vld [vmem:[#allocation12 + $0x70] sm:$0xff]
    %v509 = vld [vmem:[#allocation12 + $0x78] sm:$0xff]
    %v510 = vld [vmem:[#allocation2] sm:$0xff]
    %v511 = vld [vmem:[#allocation2 + $0x8] sm:$0xff]
    %v513 = vsel %vm371, 0.0, 0
    %515 = vmatpush.msra.mxu0 0.0
    %516 = vmatpush.msra.mxu0 0.0
    %517 = vmatpush.msra.mxu0 0.0
    %518 = vmatpush.msra.mxu0 0.0
    %519 = vmatpush.msra.mxu0 0.0
    %520 = vmatpush.msra.mxu0 0.0
    %521 = vmatpush.msra.mxu0 0.0
    %522 = vmatpush.msra.mxu0 0.0
    %523 = vmatpush.msra.mxu0 %v508
    %524 = vmatpush.msra.mxu0 %v506
    %525 = vmatpush.msra.mxu0 %v504
    %526 = vmatpush.msra.mxu0 %v502
    %527 = vmatpush.msra.mxu0 %v500
    %528 = vmatpush.msra.mxu0 %v498
    %529 = vmatpush.msra.mxu0 %v496
    %530 = vmatpush.msra.mxu0 %v494
    %531 = vmatmul.f32.gmra.mxu0 %v513
    %v532 = vpop.f32.mrf.mxu0
    %v533 = vadd.f32 0.0, %v532
    %534 = vdwg.mxu0
    %535 = vmatpush.msra.mxu0 0.0
    %536 = vmatpush.msra.mxu0 0.0
    %537 = vmatpush.msra.mxu0 0.0
    %538 = vmatpush.msra.mxu0 0.0
    %539 = vmatpush.msra.mxu0 0.0
    %540 = vmatpush.msra.mxu0 0.0
    %541 = vmatpush.msra.mxu0 0.0
    %542 = vmatpush.msra.mxu0 0.0
    %543 = vmatpush.msra.mxu0 %v509
    %544 = vmatpush.msra.mxu0 %v507
    %545 = vmatpush.msra.mxu0 %v505
    %546 = vmatpush.msra.mxu0 %v503
    %547 = vmatpush.msra.mxu0 %v501
    %548 = vmatpush.msra.mxu0 %v499
    %549 = vmatpush.msra.mxu0 %v497
    %550 = vmatpush.msra.mxu0 %v495
    %551 = vmatmul.f32.gmra.mxu0 %v513
    %v552 = vpop.f32.mrf.mxu0
    %v553 = vadd.f32 0.0, %v552
    %554 = vdwg.mxu0
    %v555 = vadd.f32 %v510, %v533
    %v556 = vadd.f32 %v511, %v553
    %v557 = vxor.u32 %v555, 2147483648
    %v558 = vxor.u32 %v556, 2147483648
    %v559 = vmul.f32 %v557, 1.442695
    %v560 = vpow.pop %v559
    %v561 = vmul.f32 %v558, 1.442695
    %v562 = vpow.pop %v561
    %v563 = vadd.f32 %v560, 1.0
    %v564 = vadd.f32 %v562, 1.0
    %v565 = vrcp.pop %v563
    %v566 = vmul.f32 %v563, %v565
    %v567 = vsub.f32 1.0, %v566
    %v568 = vmul.f32 %v565, %v567
    %v569 = vadd.f32 %v565, %v568
    %vm570 = vweird.f32 %v563
    %vm571 = vweird.f32 %v565
    %vm572 = vmor %vm570, %vm571
    %v573 = vsel %vm572, %v565, %v569
    %v574 = vand.u32 2147483647, %v563
    %vm575 = vcmp.eq.f32.partialorder %v574, 8.507059e+37
    %v576 = vand.u32 %v563, 2147483648
    %v577 = vor.u32 1.1754944e-38, %v576
    %v578 = vsel %vm575, %v577, %v573
    %v579 = vmul.f32 1.0, %v578
    %v580 = vrcp.pop %v564
    %v581 = vmul.f32 %v564, %v580
    %v582 = vsub.f32 1.0, %v581
    %v583 = vmul.f32 %v580, %v582
    %v584 = vadd.f32 %v580, %v583
    %vm585 = vweird.f32 %v564
    %vm586 = vweird.f32 %v580
    %vm587 = vmor %vm585, %vm586
    %v588 = vsel %vm587, %v580, %v584
    %v589 = vand.u32 2147483647, %v564
    %vm590 = vcmp.eq.f32.partialorder %v589, 8.507059e+37
    %v591 = vand.u32 %v564, 2147483648
    %v592 = vor.u32 1.1754944e-38, %v591
    %v593 = vsel %vm590, %v592, %v588
    %v594 = vmul.f32 1.0, %v593
    %v595 = vtanh.pop %v556
    %v596 = vmul.f32 %v579, 0.0
    %598 = vrot.lane.b32.xlu0 %v595, 64
    %v599 = vpop.permute.xlu0 %598
    %v601 = vmul.f32 %v579, %v599
    %603 = vrot.lane.b32.xlu0 %v601, 64
    %v604 = vpop.permute.xlu0 %603
    %v606 = vadd.f32 %v596, %v604
    %v607 = vtanh.pop %v606
    %609 = vrot.lane.b32.xlu0 %v607, 64
    %v610 = vpop.permute.xlu0 %609
    %v612 = vmul.f32 %v594, %v610
    %v613 = vld [vmem:[#allocation2 + $0x10] sm:$0xff]
    %v614 = vld [vmem:[#allocation2 + $0x18] sm:$0xff]
    %v616 = vsel %vm371, %v612, 0
    %618 = vmatpush.msra.mxu0 0.0
    %619 = vmatpush.msra.mxu0 0.0
    %620 = vmatpush.msra.mxu0 0.0
    %621 = vmatpush.msra.mxu0 0.0
    %622 = vmatpush.msra.mxu0 0.0
    %623 = vmatpush.msra.mxu0 0.0
    %624 = vmatpush.msra.mxu0 0.0
    %625 = vmatpush.msra.mxu0 0.0
    %626 = vmatpush.msra.mxu0 %v508
    %627 = vmatpush.msra.mxu0 %v506
    %628 = vmatpush.msra.mxu0 %v504
    %629 = vmatpush.msra.mxu0 %v502
    %630 = vmatpush.msra.mxu0 %v500
    %631 = vmatpush.msra.mxu0 %v498
    %632 = vmatpush.msra.mxu0 %v496
    %633 = vmatpush.msra.mxu0 %v494
    %634 = vmatmul.f32.gmra.mxu0 %v616
    %v635 = vpop.f32.mrf.mxu0
    %v636 = vadd.f32 0.0, %v635
    %637 = vdwg.mxu0
    %638 = vmatpush.msra.mxu0 0.0
    %639 = vmatpush.msra.mxu0 0.0
    %640 = vmatpush.msra.mxu0 0.0
    %641 = vmatpush.msra.mxu0 0.0
    %642 = vmatpush.msra.mxu0 0.0
    %643 = vmatpush.msra.mxu0 0.0
    %644 = vmatpush.msra.mxu0 0.0
    %645 = vmatpush.msra.mxu0 0.0
    %646 = vmatpush.msra.mxu0 %v509
    %647 = vmatpush.msra.mxu0 %v507
    %648 = vmatpush.msra.mxu0 %v505
    %649 = vmatpush.msra.mxu0 %v503
    %650 = vmatpush.msra.mxu0 %v501
    %651 = vmatpush.msra.mxu0 %v499
    %652 = vmatpush.msra.mxu0 %v497
    %653 = vmatpush.msra.mxu0 %v495
    %654 = vmatmul.f32.gmra.mxu0 %v616
    %v655 = vpop.f32.mrf.mxu0
    %v656 = vadd.f32 0.0, %v655
    %657 = vdwg.mxu0
    %v658 = vadd.f32 %v613, %v636
    %v659 = vadd.f32 %v614, %v656
    %v660 = vxor.u32 %v658, 2147483648
    %v661 = vxor.u32 %v659, 2147483648
    %v662 = vmul.f32 %v660, 1.442695
    %v663 = vpow.pop %v662
    %v664 = vmul.f32 %v661, 1.442695
    %v665 = vpow.pop %v664
    %v666 = vadd.f32 %v663, 1.0
    %v667 = vadd.f32 %v665, 1.0
    %v668 = vrcp.pop %v666
    %v669 = vmul.f32 %v666, %v668
    %v670 = vsub.f32 1.0, %v669
    %v671 = vmul.f32 %v668, %v670
    %v672 = vadd.f32 %v668, %v671
    %vm673 = vweird.f32 %v666
    %vm674 = vweird.f32 %v668
    %vm675 = vmor %vm673, %vm674
    %v676 = vsel %vm675, %v668, %v672
    %v677 = vand.u32 2147483647, %v666
    %vm678 = vcmp.eq.f32.partialorder %v677, 8.507059e+37
    %v679 = vand.u32 %v666, 2147483648
    %v680 = vor.u32 1.1754944e-38, %v679
    %v681 = vsel %vm678, %v680, %v676
    %v682 = vmul.f32 1.0, %v681
    %v683 = vrcp.pop %v667
    %v684 = vmul.f32 %v667, %v683
    %v685 = vsub.f32 1.0, %v684
    %v686 = vmul.f32 %v683, %v685
    %v687 = vadd.f32 %v683, %v686
    %vm688 = vweird.f32 %v667
    %vm689 = vweird.f32 %v683
    %vm690 = vmor %vm688, %vm689
    %v691 = vsel %vm690, %v683, %v687
    %v692 = vand.u32 2147483647, %v667
    %vm693 = vcmp.eq.f32.partialorder %v692, 8.507059e+37
    %v694 = vand.u32 %v667, 2147483648
    %v695 = vor.u32 1.1754944e-38, %v694
    %v696 = vsel %vm693, %v695, %v691
    %v697 = vmul.f32 1.0, %v696
    %v698 = vtanh.pop %v659
    %v699 = vmul.f32 %v682, %v606
    %701 = vrot.lane.b32.xlu0 %v698, 64
    %v702 = vpop.permute.xlu0 %701
    %v704 = vmul.f32 %v682, %v702
    %706 = vrot.lane.b32.xlu0 %v704, 64
    %v707 = vpop.permute.xlu0 %706
    %v709 = vadd.f32 %v699, %v707
    %v710 = vtanh.pop %v709
    %712 = vrot.lane.b32.xlu0 %v710, 64
    %v713 = vpop.permute.xlu0 %712
    %v715 = vmul.f32 %v697, %v713
    %v716 = vld [vmem:[#allocation2 + $0x20] sm:$0xff]
    %v717 = vld [vmem:[#allocation2 + $0x28] sm:$0xff]
    %v719 = vsel %vm371, %v715, 0
    %721 = vmatpush.msra.mxu0 0.0
    %722 = vmatpush.msra.mxu0 0.0
    %723 = vmatpush.msra.mxu0 0.0
    %724 = vmatpush.msra.mxu0 0.0
    %725 = vmatpush.msra.mxu0 0.0
    %726 = vmatpush.msra.mxu0 0.0
    %727 = vmatpush.msra.mxu0 0.0
    %728 = vmatpush.msra.mxu0 0.0
    %729 = vmatpush.msra.mxu0 %v508
    %730 = vmatpush.msra.mxu0 %v506
    %731 = vmatpush.msra.mxu0 %v504
    %732 = vmatpush.msra.mxu0 %v502
    %733 = vmatpush.msra.mxu0 %v500
    %734 = vmatpush.msra.mxu0 %v498
    %735 = vmatpush.msra.mxu0 %v496
    %736 = vmatpush.msra.mxu0 %v494
    %737 = vmatmul.f32.gmra.mxu0 %v719
    %v738 = vpop.f32.mrf.mxu0
    %v739 = vadd.f32 0.0, %v738
    %740 = vdwg.mxu0
    %741 = vmatpush.msra.mxu0 0.0
    %742 = vmatpush.msra.mxu0 0.0
    %743 = vmatpush.msra.mxu0 0.0
    %744 = vmatpush.msra.mxu0 0.0
    %745 = vmatpush.msra.mxu0 0.0
    %746 = vmatpush.msra.mxu0 0.0
    %747 = vmatpush.msra.mxu0 0.0
    %748 = vmatpush.msra.mxu0 0.0
    %749 = vmatpush.msra.mxu0 %v509
    %750 = vmatpush.msra.mxu0 %v507
    %751 = vmatpush.msra.mxu0 %v505
    %752 = vmatpush.msra.mxu0 %v503
    %753 = vmatpush.msra.mxu0 %v501
    %754 = vmatpush.msra.mxu0 %v499
    %755 = vmatpush.msra.mxu0 %v497
    %756 = vmatpush.msra.mxu0 %v495
    %757 = vmatmul.f32.gmra.mxu0 %v719
    %v758 = vpop.f32.mrf.mxu0
    %v759 = vadd.f32 0.0, %v758
    %760 = vdwg.mxu0
    %v761 = vadd.f32 %v716, %v739
    %v762 = vadd.f32 %v717, %v759
    %v763 = vxor.u32 %v761, 2147483648
    %v764 = vxor.u32 %v762, 2147483648
    %v765 = vmul.f32 %v763, 1.442695
    %v766 = vpow.pop %v765
    %v767 = vmul.f32 %v764, 1.442695
    %v768 = vpow.pop %v767
    %v769 = vadd.f32 %v766, 1.0
    %v770 = vadd.f32 %v768, 1.0
    %v771 = vrcp.pop %v769
    %v772 = vmul.f32 %v769, %v771
    %v773 = vsub.f32 1.0, %v772
    %v774 = vmul.f32 %v771, %v773
    %v775 = vadd.f32 %v771, %v774
    %vm776 = vweird.f32 %v769
    %vm777 = vweird.f32 %v771
    %vm778 = vmor %vm776, %vm777
    %v779 = vsel %vm778, %v771, %v775
    %v780 = vand.u32 2147483647, %v769
    %vm781 = vcmp.eq.f32.partialorder %v780, 8.507059e+37
    %v782 = vand.u32 %v769, 2147483648
    %v783 = vor.u32 1.1754944e-38, %v782
    %v784 = vsel %vm781, %v783, %v779
    %v785 = vmul.f32 1.0, %v784
    %v786 = vrcp.pop %v770
    %v787 = vmul.f32 %v770, %v786
    %v788 = vsub.f32 1.0, %v787
    %v789 = vmul.f32 %v786, %v788
    %v790 = vadd.f32 %v786, %v789
    %vm791 = vweird.f32 %v770
    %vm792 = vweird.f32 %v786
    %vm793 = vmor %vm791, %vm792
    %v794 = vsel %vm793, %v786, %v790
    %v795 = vand.u32 2147483647, %v770
    %vm796 = vcmp.eq.f32.partialorder %v795, 8.507059e+37
    %v797 = vand.u32 %v770, 2147483648
    %v798 = vor.u32 1.1754944e-38, %v797
    %v799 = vsel %vm796, %v798, %v794
    %v800 = vmul.f32 1.0, %v799
    %v801 = vtanh.pop %v762
    %v802 = vmul.f32 %v785, %v709
    %804 = vrot.lane.b32.xlu0 %v801, 64
    %v805 = vpop.permute.xlu0 %804
    %v807 = vmul.f32 %v785, %v805
    %809 = vrot.lane.b32.xlu0 %v807, 64
    %v810 = vpop.permute.xlu0 %809
    %v812 = vadd.f32 %v802, %v810
    %v813 = vtanh.pop %v812
    %815 = vrot.lane.b32.xlu0 %v813, 64
    %v816 = vpop.permute.xlu0 %815
    %v818 = vmul.f32 %v800, %v816
    %v819 = vld [vmem:[#allocation2 + $0x30] sm:$0xff]
    %v820 = vld [vmem:[#allocation2 + $0x38] sm:$0xff]
    %v822 = vsel %vm371, %v818, 0
    %824 = vmatpush.msra.mxu0 0.0
    %825 = vmatpush.msra.mxu0 0.0
    %826 = vmatpush.msra.mxu0 0.0
    %827 = vmatpush.msra.mxu0 0.0
    %828 = vmatpush.msra.mxu0 0.0
    %829 = vmatpush.msra.mxu0 0.0
    %830 = vmatpush.msra.mxu0 0.0
    %831 = vmatpush.msra.mxu0 0.0
    %832 = vmatpush.msra.mxu0 %v508
    %833 = vmatpush.msra.mxu0 %v506
    %834 = vmatpush.msra.mxu0 %v504
    %835 = vmatpush.msra.mxu0 %v502
    %836 = vmatpush.msra.mxu0 %v500
    %837 = vmatpush.msra.mxu0 %v498
    %838 = vmatpush.msra.mxu0 %v496
    %839 = vmatpush.msra.mxu0 %v494
    %840 = vmatmul.f32.gmra.mxu0 %v822
    %v841 = vpop.f32.mrf.mxu0
    %v842 = vadd.f32 0.0, %v841
    %843 = vdwg.mxu0
    %844 = vmatpush.msra.mxu0 0.0
    %845 = vmatpush.msra.mxu0 0.0
    %846 = vmatpush.msra.mxu0 0.0
    %847 = vmatpush.msra.mxu0 0.0
    %848 = vmatpush.msra.mxu0 0.0
    %849 = vmatpush.msra.mxu0 0.0
    %850 = vmatpush.msra.mxu0 0.0
    %851 = vmatpush.msra.mxu0 0.0
    %852 = vmatpush.msra.mxu0 %v509
    %853 = vmatpush.msra.mxu0 %v507
    %854 = vmatpush.msra.mxu0 %v505
    %855 = vmatpush.msra.mxu0 %v503
    %856 = vmatpush.msra.mxu0 %v501
    %857 = vmatpush.msra.mxu0 %v499
    %858 = vmatpush.msra.mxu0 %v497
    %859 = vmatpush.msra.mxu0 %v495
    %860 = vmatmul.f32.gmra.mxu0 %v822
    %v861 = vpop.f32.mrf.mxu0
    %v862 = vadd.f32 0.0, %v861
    %863 = vdwg.mxu0
    %v864 = vadd.f32 %v819, %v842
    %v865 = vadd.f32 %v820, %v862
    %v866 = vxor.u32 %v864, 2147483648
    %v867 = vxor.u32 %v865, 2147483648
    %v868 = vmul.f32 %v866, 1.442695
    %v869 = vpow.pop %v868
    %v870 = vmul.f32 %v867, 1.442695
    %v871 = vpow.pop %v870
    %v872 = vadd.f32 %v869, 1.0
    %v873 = vadd.f32 %v871, 1.0
    %v874 = vrcp.pop %v872
    %v875 = vmul.f32 %v872, %v874
    %v876 = vsub.f32 1.0, %v875
    %v877 = vmul.f32 %v874, %v876
    %v878 = vadd.f32 %v874, %v877
    %vm879 = vweird.f32 %v872
    %vm880 = vweird.f32 %v874
    %vm881 = vmor %vm879, %vm880
    %v882 = vsel %vm881, %v874, %v878
    %v883 = vand.u32 2147483647, %v872
    %vm884 = vcmp.eq.f32.partialorder %v883, 8.507059e+37
    %v885 = vand.u32 %v872, 2147483648
    %v886 = vor.u32 1.1754944e-38, %v885
    %v887 = vsel %vm884, %v886, %v882
    %v888 = vmul.f32 1.0, %v887
    %v889 = vrcp.pop %v873
    %v890 = vmul.f32 %v873, %v889
    %v891 = vsub.f32 1.0, %v890
    %v892 = vmul.f32 %v889, %v891
    %v893 = vadd.f32 %v889, %v892
    %vm894 = vweird.f32 %v873
    %vm895 = vweird.f32 %v889
    %vm896 = vmor %vm894, %vm895
    %v897 = vsel %vm896, %v889, %v893
    %v898 = vand.u32 2147483647, %v873
    %vm899 = vcmp.eq.f32.partialorder %v898, 8.507059e+37
    %v900 = vand.u32 %v873, 2147483648
    %v901 = vor.u32 1.1754944e-38, %v900
    %v902 = vsel %vm899, %v901, %v897
    %v903 = vmul.f32 1.0, %v902
    %v904 = vtanh.pop %v865
    %v905 = vmul.f32 %v888, %v812
    %907 = vrot.lane.b32.xlu0 %v904, 64
    %v908 = vpop.permute.xlu0 %907
    %v910 = vmul.f32 %v888, %v908
    %912 = vrot.lane.b32.xlu0 %v910, 64
    %v913 = vpop.permute.xlu0 %912
    %v915 = vadd.f32 %v905, %v913
    %v916 = vtanh.pop %v915
    %918 = vrot.lane.b32.xlu0 %v916, 64
    %v919 = vpop.permute.xlu0 %918
    %v921 = vmul.f32 %v903, %v919
    %v922 = vld [vmem:[#allocation2 + $0x40] sm:$0xff]
    %v923 = vld [vmem:[#allocation2 + $0x48] sm:$0xff]
    %v925 = vsel %vm371, %v921, 0
    %927 = vmatpush.msra.mxu0 0.0
    %928 = vmatpush.msra.mxu0 0.0
    %929 = vmatpush.msra.mxu0 0.0
    %930 = vmatpush.msra.mxu0 0.0
    %931 = vmatpush.msra.mxu0 0.0
    %932 = vmatpush.msra.mxu0 0.0
    %933 = vmatpush.msra.mxu0 0.0
    %934 = vmatpush.msra.mxu0 0.0
    %935 = vmatpush.msra.mxu0 %v508
    %936 = vmatpush.msra.mxu0 %v506
    %937 = vmatpush.msra.mxu0 %v504
    %938 = vmatpush.msra.mxu0 %v502
    %939 = vmatpush.msra.mxu0 %v500
    %940 = vmatpush.msra.mxu0 %v498
    %941 = vmatpush.msra.mxu0 %v496
    %942 = vmatpush.msra.mxu0 %v494
    %943 = vmatmul.f32.gmra.mxu0 %v925
    %v944 = vpop.f32.mrf.mxu0
    %v945 = vadd.f32 0.0, %v944
    %946 = vdwg.mxu0
    %947 = vmatpush.msra.mxu0 0.0
    %948 = vmatpush.msra.mxu0 0.0
    %949 = vmatpush.msra.mxu0 0.0
    %950 = vmatpush.msra.mxu0 0.0
    %951 = vmatpush.msra.mxu0 0.0
    %952 = vmatpush.msra.mxu0 0.0
    %953 = vmatpush.msra.mxu0 0.0
    %954 = vmatpush.msra.mxu0 0.0
    %955 = vmatpush.msra.mxu0 %v509
    %956 = vmatpush.msra.mxu0 %v507
    %957 = vmatpush.msra.mxu0 %v505
    %958 = vmatpush.msra.mxu0 %v503
    %959 = vmatpush.msra.mxu0 %v501
    %960 = vmatpush.msra.mxu0 %v499
    %961 = vmatpush.msra.mxu0 %v497
    %962 = vmatpush.msra.mxu0 %v495
    %963 = vmatmul.f32.gmra.mxu0 %v925
    %v964 = vpop.f32.mrf.mxu0
    %v965 = vadd.f32 0.0, %v964
    %966 = vdwg.mxu0
    %v967 = vadd.f32 %v922, %v945
    %v968 = vadd.f32 %v923, %v965
    %v969 = vxor.u32 %v967, 2147483648
    %v970 = vxor.u32 %v968, 2147483648
    %v971 = vmul.f32 %v969, 1.442695
    %v972 = vpow.pop %v971
    %v973 = vmul.f32 %v970, 1.442695
    %v974 = vpow.pop %v973
    %v975 = vadd.f32 %v972, 1.0
    %v976 = vadd.f32 %v974, 1.0
    %v977 = vrcp.pop %v975
    %v978 = vmul.f32 %v975, %v977
    %v979 = vsub.f32 1.0, %v978
    %v980 = vmul.f32 %v977, %v979
    %v981 = vadd.f32 %v977, %v980
    %vm982 = vweird.f32 %v975
    %vm983 = vweird.f32 %v977
    %vm984 = vmor %vm982, %vm983
    %v985 = vsel %vm984, %v977, %v981
    %v986 = vand.u32 2147483647, %v975
    %vm987 = vcmp.eq.f32.partialorder %v986, 8.507059e+37
    %v988 = vand.u32 %v975, 2147483648
    %v989 = vor.u32 1.1754944e-38, %v988
    %v990 = vsel %vm987, %v989, %v985
    %v991 = vmul.f32 1.0, %v990
    %v992 = vrcp.pop %v976
    %v993 = vmul.f32 %v976, %v992
    %v994 = vsub.f32 1.0, %v993
    %v995 = vmul.f32 %v992, %v994
    %v996 = vadd.f32 %v992, %v995
    %vm997 = vweird.f32 %v976
    %vm998 = vweird.f32 %v992
    %vm999 = vmor %vm997, %vm998
    %v1000 = vsel %vm999, %v992, %v996
    %v1001 = vand.u32 2147483647, %v976
    %vm1002 = vcmp.eq.f32.partialorder %v1001, 8.507059e+37
    %v1003 = vand.u32 %v976, 2147483648
    %v1004 = vor.u32 1.1754944e-38, %v1003
    %v1005 = vsel %vm1002, %v1004, %v1000
    %v1006 = vmul.f32 1.0, %v1005
    %v1007 = vtanh.pop %v968
    %v1008 = vmul.f32 %v991, %v915
    %1010 = vrot.lane.b32.xlu0 %v1007, 64
    %v1011 = vpop.permute.xlu0 %1010
    %v1013 = vmul.f32 %v991, %v1011
    %1015 = vrot.lane.b32.xlu0 %v1013, 64
    %v1016 = vpop.permute.xlu0 %1015
    %v1018 = vadd.f32 %v1008, %v1016
    %v1019 = vtanh.pop %v1018
    %1021 = vrot.lane.b32.xlu0 %v1019, 64
    %v1022 = vpop.permute.xlu0 %1021
    %v1024 = vmul.f32 %v1006, %v1022
    %v1025 = vld [vmem:[#allocation2 + $0x50] sm:$0xff]
    %v1026 = vld [vmem:[#allocation2 + $0x58] sm:$0xff]
    %v1028 = vsel %vm371, %v1024, 0
    %1030 = vmatpush.msra.mxu0 0.0
    %1031 = vmatpush.msra.mxu0 0.0
    %1032 = vmatpush.msra.mxu0 0.0
    %1033 = vmatpush.msra.mxu0 0.0
    %1034 = vmatpush.msra.mxu0 0.0
    %1035 = vmatpush.msra.mxu0 0.0
    %1036 = vmatpush.msra.mxu0 0.0
    %1037 = vmatpush.msra.mxu0 0.0
    %1038 = vmatpush.msra.mxu0 %v508
    %1039 = vmatpush.msra.mxu0 %v506
    %1040 = vmatpush.msra.mxu0 %v504
    %1041 = vmatpush.msra.mxu0 %v502
    %1042 = vmatpush.msra.mxu0 %v500
    %1043 = vmatpush.msra.mxu0 %v498
    %1044 = vmatpush.msra.mxu0 %v496
    %1045 = vmatpush.msra.mxu0 %v494
    %1046 = vmatmul.f32.gmra.mxu0 %v1028
    %v1047 = vpop.f32.mrf.mxu0
    %v1048 = vadd.f32 0.0, %v1047
    %1049 = vdwg.mxu0
    %1050 = vmatpush.msra.mxu0 0.0
    %1051 = vmatpush.msra.mxu0 0.0
    %1052 = vmatpush.msra.mxu0 0.0
    %1053 = vmatpush.msra.mxu0 0.0
    %1054 = vmatpush.msra.mxu0 0.0
    %1055 = vmatpush.msra.mxu0 0.0
    %1056 = vmatpush.msra.mxu0 0.0
    %1057 = vmatpush.msra.mxu0 0.0
    %1058 = vmatpush.msra.mxu0 %v509
    %1059 = vmatpush.msra.mxu0 %v507
    %1060 = vmatpush.msra.mxu0 %v505
    %1061 = vmatpush.msra.mxu0 %v503
    %1062 = vmatpush.msra.mxu0 %v501
    %1063 = vmatpush.msra.mxu0 %v499
    %1064 = vmatpush.msra.mxu0 %v497
    %1065 = vmatpush.msra.mxu0 %v495
    %1066 = vmatmul.f32.gmra.mxu0 %v1028
    %v1067 = vpop.f32.mrf.mxu0
    %v1068 = vadd.f32 0.0, %v1067
    %1069 = vdwg.mxu0
    %v1070 = vadd.f32 %v1025, %v1048
    %v1071 = vadd.f32 %v1026, %v1068
    %v1072 = vxor.u32 %v1070, 2147483648
    %v1073 = vxor.u32 %v1071, 2147483648
    %v1074 = vmul.f32 %v1072, 1.442695
    %v1075 = vpow.pop %v1074
    %v1076 = vmul.f32 %v1073, 1.442695
    %v1077 = vpow.pop %v1076
    %v1078 = vadd.f32 %v1075, 1.0
    %v1079 = vadd.f32 %v1077, 1.0
    %v1080 = vrcp.pop %v1078
    %v1081 = vmul.f32 %v1078, %v1080
    %v1082 = vsub.f32 1.0, %v1081
    %v1083 = vmul.f32 %v1080, %v1082
    %v1084 = vadd.f32 %v1080, %v1083
    %vm1085 = vweird.f32 %v1078
    %vm1086 = vweird.f32 %v1080
    %vm1087 = vmor %vm1085, %vm1086
    %v1088 = vsel %vm1087, %v1080, %v1084
    %v1089 = vand.u32 2147483647, %v1078
    %vm1090 = vcmp.eq.f32.partialorder %v1089, 8.507059e+37
    %v1091 = vand.u32 %v1078, 2147483648
    %v1092 = vor.u32 1.1754944e-38, %v1091
    %v1093 = vsel %vm1090, %v1092, %v1088
    %v1094 = vmul.f32 1.0, %v1093
    %v1095 = vrcp.pop %v1079
    %v1096 = vmul.f32 %v1079, %v1095
    %v1097 = vsub.f32 1.0, %v1096
    %v1098 = vmul.f32 %v1095, %v1097
    %v1099 = vadd.f32 %v1095, %v1098
    %vm1100 = vweird.f32 %v1079
    %vm1101 = vweird.f32 %v1095
    %vm1102 = vmor %vm1100, %vm1101
    %v1103 = vsel %vm1102, %v1095, %v1099
    %v1104 = vand.u32 2147483647, %v1079
    %vm1105 = vcmp.eq.f32.partialorder %v1104, 8.507059e+37
    %v1106 = vand.u32 %v1079, 2147483648
    %v1107 = vor.u32 1.1754944e-38, %v1106
    %v1108 = vsel %vm1105, %v1107, %v1103
    %v1109 = vmul.f32 1.0, %v1108
    %v1110 = vtanh.pop %v1071
    %v1111 = vmul.f32 %v1094, %v1018
    %1113 = vrot.lane.b32.xlu0 %v1110, 64
    %v1114 = vpop.permute.xlu0 %1113
    %v1116 = vmul.f32 %v1094, %v1114
    %1118 = vrot.lane.b32.xlu0 %v1116, 64
    %v1119 = vpop.permute.xlu0 %1118
    %v1121 = vadd.f32 %v1111, %v1119
    %v1122 = vtanh.pop %v1121
    %1124 = vrot.lane.b32.xlu0 %v1122, 64
    %v1125 = vpop.permute.xlu0 %1124
    %v1127 = vmul.f32 %v1109, %v1125
    %v1128 = vld [vmem:[#allocation2 + $0x60] sm:$0xff]
    %v1129 = vld [vmem:[#allocation2 + $0x68] sm:$0xff]
    %v1131 = vsel %vm371, %v1127, 0
    %1133 = vmatpush.msra.mxu0 0.0
    %1134 = vmatpush.msra.mxu0 0.0
    %1135 = vmatpush.msra.mxu0 0.0
    %1136 = vmatpush.msra.mxu0 0.0
    %1137 = vmatpush.msra.mxu0 0.0
    %1138 = vmatpush.msra.mxu0 0.0
    %1139 = vmatpush.msra.mxu0 0.0
    %1140 = vmatpush.msra.mxu0 0.0
    %1141 = vmatpush.msra.mxu0 %v508
    %1142 = vmatpush.msra.mxu0 %v506
    %1143 = vmatpush.msra.mxu0 %v504
    %1144 = vmatpush.msra.mxu0 %v502
    %1145 = vmatpush.msra.mxu0 %v500
    %1146 = vmatpush.msra.mxu0 %v498
    %1147 = vmatpush.msra.mxu0 %v496
    %1148 = vmatpush.msra.mxu0 %v494
    %1149 = vmatmul.f32.gmra.mxu0 %v1131
    %v1150 = vpop.f32.mrf.mxu0
    %v1151 = vadd.f32 0.0, %v1150
    %1152 = vdwg.mxu0
    %1153 = vmatpush.msra.mxu0 0.0
    %1154 = vmatpush.msra.mxu0 0.0
    %1155 = vmatpush.msra.mxu0 0.0
    %1156 = vmatpush.msra.mxu0 0.0
    %1157 = vmatpush.msra.mxu0 0.0
    %1158 = vmatpush.msra.mxu0 0.0
    %1159 = vmatpush.msra.mxu0 0.0
    %1160 = vmatpush.msra.mxu0 0.0
    %1161 = vmatpush.msra.mxu0 %v509
    %1162 = vmatpush.msra.mxu0 %v507
    %1163 = vmatpush.msra.mxu0 %v505
    %1164 = vmatpush.msra.mxu0 %v503
    %1165 = vmatpush.msra.mxu0 %v501
    %1166 = vmatpush.msra.mxu0 %v499
    %1167 = vmatpush.msra.mxu0 %v497
    %1168 = vmatpush.msra.mxu0 %v495
    %1169 = vmatmul.f32.gmra.mxu0 %v1131
    %v1170 = vpop.f32.mrf.mxu0
    %v1171 = vadd.f32 0.0, %v1170
    %1172 = vdwg.mxu0
    %v1173 = vadd.f32 %v1128, %v1151
    %v1174 = vadd.f32 %v1129, %v1171
    %v1175 = vxor.u32 %v1173, 2147483648
    %v1176 = vxor.u32 %v1174, 2147483648
    %v1177 = vmul.f32 %v1175, 1.442695
    %v1178 = vpow.pop %v1177
    %v1179 = vmul.f32 %v1176, 1.442695
    %v1180 = vpow.pop %v1179
    %v1181 = vadd.f32 %v1178, 1.0
    %v1182 = vadd.f32 %v1180, 1.0
    %v1183 = vrcp.pop %v1181
    %v1184 = vmul.f32 %v1181, %v1183
    %v1185 = vsub.f32 1.0, %v1184
    %v1186 = vmul.f32 %v1183, %v1185
    %v1187 = vadd.f32 %v1183, %v1186
    %vm1188 = vweird.f32 %v1181
    %vm1189 = vweird.f32 %v1183
    %vm1190 = vmor %vm1188, %vm1189
    %v1191 = vsel %vm1190, %v1183, %v1187
    %v1192 = vand.u32 2147483647, %v1181
    %vm1193 = vcmp.eq.f32.partialorder %v1192, 8.507059e+37
    %v1194 = vand.u32 %v1181, 2147483648
    %v1195 = vor.u32 1.1754944e-38, %v1194
    %v1196 = vsel %vm1193, %v1195, %v1191
    %v1197 = vmul.f32 1.0, %v1196
    %v1198 = vrcp.pop %v1182
    %v1199 = vmul.f32 %v1182, %v1198
    %v1200 = vsub.f32 1.0, %v1199
    %v1201 = vmul.f32 %v1198, %v1200
    %v1202 = vadd.f32 %v1198, %v1201
    %vm1203 = vweird.f32 %v1182
    %vm1204 = vweird.f32 %v1198
    %vm1205 = vmor %vm1203, %vm1204
    %v1206 = vsel %vm1205, %v1198, %v1202
    %v1207 = vand.u32 2147483647, %v1182
    %vm1208 = vcmp.eq.f32.partialorder %v1207, 8.507059e+37
    %v1209 = vand.u32 %v1182, 2147483648
    %v1210 = vor.u32 1.1754944e-38, %v1209
    %v1211 = vsel %vm1208, %v1210, %v1206
    %v1212 = vmul.f32 1.0, %v1211
    %v1213 = vtanh.pop %v1174
    %v1214 = vmul.f32 %v1197, %v1121
    %1216 = vrot.lane.b32.xlu0 %v1213, 64
    %v1217 = vpop.permute.xlu0 %1216
    %v1219 = vmul.f32 %v1197, %v1217
    %1221 = vrot.lane.b32.xlu0 %v1219, 64
    %v1222 = vpop.permute.xlu0 %1221
    %v1224 = vadd.f32 %v1214, %v1222
    %v1225 = vtanh.pop %v1224
    %1227 = vrot.lane.b32.xlu0 %v1225, 64
    %v1228 = vpop.permute.xlu0 %1227
    %v1230 = vmul.f32 %v1212, %v1228
    %v1231 = vld [vmem:[#allocation2 + $0x70] sm:$0xff]
    %v1232 = vld [vmem:[#allocation2 + $0x78] sm:$0xff]
    %v1234 = vsel %vm371, %v1230, 0
    %1236 = vmatpush.msra.mxu0 0.0
    %1237 = vmatpush.msra.mxu0 0.0
    %1238 = vmatpush.msra.mxu0 0.0
    %1239 = vmatpush.msra.mxu0 0.0
    %1240 = vmatpush.msra.mxu0 0.0
    %1241 = vmatpush.msra.mxu0 0.0
    %1242 = vmatpush.msra.mxu0 0.0
    %1243 = vmatpush.msra.mxu0 0.0
    %1244 = vmatpush.msra.mxu0 %v508
    %1245 = vmatpush.msra.mxu0 %v506
    %1246 = vmatpush.msra.mxu0 %v504
    %1247 = vmatpush.msra.mxu0 %v502
    %1248 = vmatpush.msra.mxu0 %v500
    %1249 = vmatpush.msra.mxu0 %v498
    %1250 = vmatpush.msra.mxu0 %v496
    %1251 = vmatpush.msra.mxu0 %v494
    %1252 = vmatmul.f32.gmra.mxu0 %v1234
    %v1253 = vpop.f32.mrf.mxu0
    %v1254 = vadd.f32 0.0, %v1253
    %1255 = vdwg.mxu0
    %1256 = vmatpush.msra.mxu0 0.0
    %1257 = vmatpush.msra.mxu0 0.0
    %1258 = vmatpush.msra.mxu0 0.0
    %1259 = vmatpush.msra.mxu0 0.0
    %1260 = vmatpush.msra.mxu0 0.0
    %1261 = vmatpush.msra.mxu0 0.0
    %1262 = vmatpush.msra.mxu0 0.0
    %1263 = vmatpush.msra.mxu0 0.0
    %1264 = vmatpush.msra.mxu0 %v509
    %1265 = vmatpush.msra.mxu0 %v507
    %1266 = vmatpush.msra.mxu0 %v505
    %1267 = vmatpush.msra.mxu0 %v503
    %1268 = vmatpush.msra.mxu0 %v501
    %1269 = vmatpush.msra.mxu0 %v499
    %1270 = vmatpush.msra.mxu0 %v497
    %1271 = vmatpush.msra.mxu0 %v495
    %1272 = vmatmul.f32.gmra.mxu0 %v1234
    %v1273 = vpop.f32.mrf.mxu0
    %v1274 = vadd.f32 0.0, %v1273
    %1275 = vdwg.mxu0
    %v1276 = vadd.f32 %v1231, %v1254
    %v1277 = vadd.f32 %v1232, %v1274
    %v1278 = vxor.u32 %v1276, 2147483648
    %v1279 = vxor.u32 %v1277, 2147483648
    %v1280 = vmul.f32 %v1278, 1.442695
    %v1281 = vpow.pop %v1280
    %v1282 = vmul.f32 %v1279, 1.442695
    %v1283 = vpow.pop %v1282
    %v1284 = vadd.f32 %v1281, 1.0
    %v1285 = vadd.f32 %v1283, 1.0
    %v1286 = vrcp.pop %v1284
    %v1287 = vmul.f32 %v1284, %v1286
    %v1288 = vsub.f32 1.0, %v1287
    %v1289 = vmul.f32 %v1286, %v1288
    %v1290 = vadd.f32 %v1286, %v1289
    %vm1291 = vweird.f32 %v1284
    %vm1292 = vweird.f32 %v1286
    %vm1293 = vmor %vm1291, %vm1292
    %v1294 = vsel %vm1293, %v1286, %v1290
    %v1295 = vand.u32 2147483647, %v1284
    %vm1296 = vcmp.eq.f32.partialorder %v1295, 8.507059e+37
    %v1297 = vand.u32 %v1284, 2147483648
    %v1298 = vor.u32 1.1754944e-38, %v1297
    %v1299 = vsel %vm1296, %v1298, %v1294
    %v1300 = vmul.f32 1.0, %v1299
    %v1301 = vrcp.pop %v1285
    %v1302 = vmul.f32 %v1285, %v1301
    %v1303 = vsub.f32 1.0, %v1302
    %v1304 = vmul.f32 %v1301, %v1303
    %v1305 = vadd.f32 %v1301, %v1304
    %vm1306 = vweird.f32 %v1285
    %vm1307 = vweird.f32 %v1301
    %vm1308 = vmor %vm1306, %vm1307
    %v1309 = vsel %vm1308, %v1301, %v1305
    %v1310 = vand.u32 2147483647, %v1285
    %vm1311 = vcmp.eq.f32.partialorder %v1310, 8.507059e+37
    %v1312 = vand.u32 %v1285, 2147483648
    %v1313 = vor.u32 1.1754944e-38, %v1312
    %v1314 = vsel %vm1311, %v1313, %v1309
    %v1315 = vmul.f32 1.0, %v1314
    %v1316 = vtanh.pop %v1277
    %v1317 = vmul.f32 %v1300, %v1224
    %1319 = vrot.lane.b32.xlu0 %v1316, 64
    %v1320 = vpop.permute.xlu0 %1319
    %v1322 = vmul.f32 %v1300, %v1320
    %1324 = vrot.lane.b32.xlu0 %v1322, 64
    %v1325 = vpop.permute.xlu0 %1324
    %v1327 = vadd.f32 %v1317, %v1325
    %v1328 = vtanh.pop %v1327
    %1330 = vrot.lane.b32.xlu0 %v1328, 64
    %v1331 = vpop.permute.xlu0 %1330
    %v1333 = vmul.f32 %v1315, %v1331
    %v1334 = vsel %vm340, %v612, %v1333
    %v1335 = vsel %vm340, %v715, %v1230
    %v1336 = vsel %vm340, %v818, %v1127
    %v1337 = vsel %vm340, %v921, %v1024
    %v1338 = vsel %vm340, %v1024, %v921
    %v1339 = vsel %vm340, %v1127, %v818
    %v1340 = vsel %vm340, %v1230, %v715
    %v1341 = vsel %vm340, %v1333, %v612
    %1350 = vrot.lane.b32.xlu0 %v1341, 64
    %v1351 = vpop.permute.xlu0 %1350
    %1352 = vrot.lane.b32.xlu0 %v1340, 64
    %v1353 = vpop.permute.xlu0 %1352
    %1354 = vrot.lane.b32.xlu0 %v1339, 64
    %v1355 = vpop.permute.xlu0 %1354
    %1356 = vrot.lane.b32.xlu0 %v1338, 64
    %v1357 = vpop.permute.xlu0 %1356
    %1358 = vrot.lane.b32.xlu0 %v1337, 64
    %v1359 = vpop.permute.xlu0 %1358
    %1360 = vrot.lane.b32.xlu0 %v1336, 64
    %v1361 = vpop.permute.xlu0 %1360
    %1362 = vrot.lane.b32.xlu0 %v1335, 64
    %v1363 = vpop.permute.xlu0 %1362
    %1364 = vrot.lane.b32.xlu0 %v1334, 64
    %v1365 = vpop.permute.xlu0 %1364
    %v1374 = vsel %vm371, %v1334, %v1351
    %v1375 = vsel %vm371, %v1335, %v1353
    %v1376 = vsel %vm371, %v1336, %v1355
    %v1377 = vsel %vm371, %v1337, %v1357
    %v1378 = vsel %vm371, %v1338, %v1359
    %v1379 = vsel %vm371, %v1339, %v1361
    %v1380 = vsel %vm371, %v1340, %v1363
    %v1381 = vsel %vm371, %v1341, %v1365
    %v1382 = vld [vmem:[#allocation15] sm:$0xff]
    %v1383 = vld [vmem:[#allocation15 + $0x8] sm:$0xff]
    %v1384 = vld [vmem:[#allocation15 + $0x10] sm:$0xff]
    %v1385 = vld [vmem:[#allocation15 + $0x18] sm:$0xff]
    %v1386 = vld [vmem:[#allocation15 + $0x20] sm:$0xff]
    %v1387 = vld [vmem:[#allocation15 + $0x28] sm:$0xff]
    %v1388 = vld [vmem:[#allocation15 + $0x30] sm:$0xff]
    %v1389 = vld [vmem:[#allocation15 + $0x38] sm:$0xff]
    %v1390 = vld [vmem:[#allocation15 + $0x40] sm:$0xff]
    %v1391 = vld [vmem:[#allocation15 + $0x48] sm:$0xff]
    %v1392 = vld [vmem:[#allocation15 + $0x50] sm:$0xff]
    %v1393 = vld [vmem:[#allocation15 + $0x58] sm:$0xff]
    %v1394 = vld [vmem:[#allocation15 + $0x60] sm:$0xff]
    %v1395 = vld [vmem:[#allocation15 + $0x68] sm:$0xff]
    %v1396 = vld [vmem:[#allocation15 + $0x70] sm:$0xff]
    %v1397 = vld [vmem:[#allocation15 + $0x78] sm:$0xff]
    %v1398 = vld [vmem:[#allocation15 + $0x80] sm:$0xff]
    %v1399 = vld [vmem:[#allocation15 + $0x88] sm:$0xff]
    %v1400 = vld [vmem:[#allocation15 + $0x90] sm:$0xff]
    %v1401 = vld [vmem:[#allocation15 + $0x98] sm:$0xff]
    %v1402 = vld [vmem:[#allocation15 + $0xa0] sm:$0xff]
    %v1403 = vld [vmem:[#allocation15 + $0xa8] sm:$0xff]
    %v1404 = vld [vmem:[#allocation15 + $0xb0] sm:$0xff]
    %v1405 = vld [vmem:[#allocation15 + $0xb8] sm:$0xff]
    %v1406 = vld [vmem:[#allocation15 + $0xc0] sm:$0xff]
    %v1407 = vld [vmem:[#allocation15 + $0xc8] sm:$0xff]
    %v1408 = vld [vmem:[#allocation15 + $0xd0] sm:$0xff]
    %v1409 = vld [vmem:[#allocation15 + $0xd8] sm:$0xff]
    %v1410 = vld [vmem:[#allocation15 + $0xe0] sm:$0xff]
    %v1411 = vld [vmem:[#allocation15 + $0xe8] sm:$0xff]
    %v1412 = vld [vmem:[#allocation15 + $0xf0] sm:$0xff]
    %v1413 = vld [vmem:[#allocation15 + $0xf8] sm:$0xff]
    %v1414 = vld [vmem:[%s10] sm:$0x3]
    %v1416 = vperm.slane %v1414, 0
    %v1417 = vperm.slane %v1414, 1
    %1420 = vmatpush.msra.mxu0 %v1412
    %1421 = vmatpush.msra.mxu0 %v1410
    %1422 = vmatpush.msra.mxu0 %v1408
    %1423 = vmatpush.msra.mxu0 %v1406
    %1424 = vmatpush.msra.mxu0 %v1404
    %1425 = vmatpush.msra.mxu0 %v1402
    %1426 = vmatpush.msra.mxu0 %v1400
    %1427 = vmatpush.msra.mxu0 %v1398
    %1428 = vmatpush.msra.mxu0 %v1396
    %1429 = vmatpush.msra.mxu0 %v1394
    %1430 = vmatpush.msra.mxu0 %v1392
    %1431 = vmatpush.msra.mxu0 %v1390
    %1432 = vmatpush.msra.mxu0 %v1388
    %1433 = vmatpush.msra.mxu0 %v1386
    %1434 = vmatpush.msra.mxu0 %v1384
    %1435 = vmatpush.msra.mxu0 %v1382
    %1436 = vmatmul.f32.gmra.mxu0 %v1374
    %v1437 = vpop.f32.mrf.mxu0
    %v1438 = vadd.f32 %v1416, %v1437
    %1439 = vmatmul.f32.gmra.mxu0 %v1375
    %v1440 = vpop.f32.mrf.mxu0
    %v1441 = vadd.f32 %v1416, %v1440
    %1442 = vmatmul.f32.gmra.mxu0 %v1376
    %v1443 = vpop.f32.mrf.mxu0
    %v1444 = vadd.f32 %v1416, %v1443
    %1445 = vmatmul.f32.gmra.mxu0 %v1377
    %v1446 = vpop.f32.mrf.mxu0
    %v1447 = vadd.f32 %v1416, %v1446
    %1448 = vmatmul.f32.gmra.mxu0 %v1378
    %v1449 = vpop.f32.mrf.mxu0
    %v1450 = vadd.f32 %v1416, %v1449
    %1451 = vmatmul.f32.gmra.mxu0 %v1379
    %v1452 = vpop.f32.mrf.mxu0
    %v1453 = vadd.f32 %v1416, %v1452
    %1454 = vmatmul.f32.gmra.mxu0 %v1380
    %v1455 = vpop.f32.mrf.mxu0
    %v1456 = vadd.f32 %v1416, %v1455
    %1457 = vmatmul.f32.gmra.mxu0 %v1381
    %v1458 = vpop.f32.mrf.mxu0
    %v1459 = vadd.f32 %v1416, %v1458
    %1460 = vdwg.mxu0
    %1461 = vmatpush.msra.mxu0 %v1413
    %1462 = vmatpush.msra.mxu0 %v1411
    %1463 = vmatpush.msra.mxu0 %v1409
    %1464 = vmatpush.msra.mxu0 %v1407
    %1465 = vmatpush.msra.mxu0 %v1405
    %1466 = vmatpush.msra.mxu0 %v1403
    %1467 = vmatpush.msra.mxu0 %v1401
    %1468 = vmatpush.msra.mxu0 %v1399
    %1469 = vmatpush.msra.mxu0 %v1397
    %1470 = vmatpush.msra.mxu0 %v1395
    %1471 = vmatpush.msra.mxu0 %v1393
    %1472 = vmatpush.msra.mxu0 %v1391
    %1473 = vmatpush.msra.mxu0 %v1389
    %1474 = vmatpush.msra.mxu0 %v1387
    %1475 = vmatpush.msra.mxu0 %v1385
    %1476 = vmatpush.msra.mxu0 %v1383
    %1477 = vmatmul.f32.gmra.mxu0 %v1374
    %v1478 = vpop.f32.mrf.mxu0
    %v1479 = vadd.f32 %v1417, %v1478
    %1480 = vmatmul.f32.gmra.mxu0 %v1375
    %v1481 = vpop.f32.mrf.mxu0
    %v1482 = vadd.f32 %v1417, %v1481
    %1483 = vmatmul.f32.gmra.mxu0 %v1376
    %v1484 = vpop.f32.mrf.mxu0
    %v1485 = vadd.f32 %v1417, %v1484
    %1486 = vmatmul.f32.gmra.mxu0 %v1377
    %v1487 = vpop.f32.mrf.mxu0
    %v1488 = vadd.f32 %v1417, %v1487
    %1489 = vmatmul.f32.gmra.mxu0 %v1378
    %v1490 = vpop.f32.mrf.mxu0
    %v1491 = vadd.f32 %v1417, %v1490
    %1492 = vmatmul.f32.gmra.mxu0 %v1379
    %v1493 = vpop.f32.mrf.mxu0
    %v1494 = vadd.f32 %v1417, %v1493
    %1495 = vmatmul.f32.gmra.mxu0 %v1380
    %v1496 = vpop.f32.mrf.mxu0
    %v1497 = vadd.f32 %v1417, %v1496
    %1498 = vmatmul.f32.gmra.mxu0 %v1381
    %v1499 = vpop.f32.mrf.mxu0
    %v1500 = vadd.f32 %v1417, %v1499
    %1501 = vdwg.mxu0
    %1502 = vst [vmem:[#allocation2] sm:$0xff] %v1438
    %1503 = vst [vmem:[#allocation2 + $0x8] sm:$0xff] %v1479
    %1504 = vst [vmem:[#allocation2 + $0x10] sm:$0xff] %v1441
    %1505 = vst [vmem:[#allocation2 + $0x18] sm:$0xff] %v1482
    %1506 = vst [vmem:[#allocation2 + $0x20] sm:$0xff] %v1444
    %1507 = vst [vmem:[#allocation2 + $0x28] sm:$0xff] %v1485
    %1508 = vst [vmem:[#allocation2 + $0x30] sm:$0xff] %v1447
    %1509 = vst [vmem:[#allocation2 + $0x38] sm:$0xff] %v1488
    %1510 = vst [vmem:[#allocation2 + $0x40] sm:$0xff] %v1450
    %1511 = vst [vmem:[#allocation2 + $0x48] sm:$0xff] %v1491
    %1512 = vst [vmem:[#allocation2 + $0x50] sm:$0xff] %v1453
    %1513 = vst [vmem:[#allocation2 + $0x58] sm:$0xff] %v1494
    %1514 = vst [vmem:[#allocation2 + $0x60] sm:$0xff] %v1456
    %1515 = vst [vmem:[#allocation2 + $0x68] sm:$0xff] %v1497
    %1516 = vst [vmem:[#allocation2 + $0x70] sm:$0xff] %v1459
    %1517 = vst [vmem:[#allocation2 + $0x78] sm:$0xff] %v1500
    %v1518 = vld [vmem:[#allocation16] sm:$0xff]
    %v1519 = vld [vmem:[#allocation16 + $0x8] sm:$0xff]
    %v1520 = vld [vmem:[#allocation16 + $0x10] sm:$0xff]
    %v1521 = vld [vmem:[#allocation16 + $0x18] sm:$0xff]
    %v1522 = vld [vmem:[#allocation16 + $0x20] sm:$0xff]
    %v1523 = vld [vmem:[#allocation16 + $0x28] sm:$0xff]
    %v1524 = vld [vmem:[#allocation16 + $0x30] sm:$0xff]
    %v1525 = vld [vmem:[#allocation16 + $0x38] sm:$0xff]
    %v1526 = vld [vmem:[#allocation16 + $0x40] sm:$0xff]
    %v1527 = vld [vmem:[#allocation16 + $0x48] sm:$0xff]
    %v1528 = vld [vmem:[#allocation16 + $0x50] sm:$0xff]
    %v1529 = vld [vmem:[#allocation16 + $0x58] sm:$0xff]
    %v1530 = vld [vmem:[#allocation16 + $0x60] sm:$0xff]
    %v1531 = vld [vmem:[#allocation16 + $0x68] sm:$0xff]
    %v1532 = vld [vmem:[#allocation16 + $0x70] sm:$0xff]
    %v1533 = vld [vmem:[#allocation16 + $0x78] sm:$0xff]
    %v1534 = vld [vmem:[#allocation2] sm:$0xff]
    %v1535 = vld [vmem:[#allocation2 + $0x8] sm:$0xff]
    %1536 = vmatpush.msra.mxu0 0.0
    %1537 = vmatpush.msra.mxu0 0.0
    %1538 = vmatpush.msra.mxu0 0.0
    %1539 = vmatpush.msra.mxu0 0.0
    %1540 = vmatpush.msra.mxu0 0.0
    %1541 = vmatpush.msra.mxu0 0.0
    %1542 = vmatpush.msra.mxu0 0.0
    %1543 = vmatpush.msra.mxu0 0.0
    %1544 = vmatpush.msra.mxu0 %v1532
    %1545 = vmatpush.msra.mxu0 %v1530
    %1546 = vmatpush.msra.mxu0 %v1528
    %1547 = vmatpush.msra.mxu0 %v1526
    %1548 = vmatpush.msra.mxu0 %v1524
    %1549 = vmatpush.msra.mxu0 %v1522
    %1550 = vmatpush.msra.mxu0 %v1520
    %1551 = vmatpush.msra.mxu0 %v1518
    %1552 = vmatmul.f32.gmra.mxu0 %v513
    %v1553 = vpop.f32.mrf.mxu0
    %v1554 = vadd.f32 0.0, %v1553
    %1555 = vdwg.mxu0
    %1556 = vmatpush.msra.mxu0 0.0
    %1557 = vmatpush.msra.mxu0 0.0
    %1558 = vmatpush.msra.mxu0 0.0
    %1559 = vmatpush.msra.mxu0 0.0
    %1560 = vmatpush.msra.mxu0 0.0
    %1561 = vmatpush.msra.mxu0 0.0
    %1562 = vmatpush.msra.mxu0 0.0
    %1563 = vmatpush.msra.mxu0 0.0
    %1564 = vmatpush.msra.mxu0 %v1533
    %1565 = vmatpush.msra.mxu0 %v1531
    %1566 = vmatpush.msra.mxu0 %v1529
    %1567 = vmatpush.msra.mxu0 %v1527
    %1568 = vmatpush.msra.mxu0 %v1525
    %1569 = vmatpush.msra.mxu0 %v1523
    %1570 = vmatpush.msra.mxu0 %v1521
    %1571 = vmatpush.msra.mxu0 %v1519
    %1572 = vmatmul.f32.gmra.mxu0 %v513
    %v1573 = vpop.f32.mrf.mxu0
    %v1574 = vadd.f32 0.0, %v1573
    %1575 = vdwg.mxu0
    %v1576 = vadd.f32 %v1534, %v1554
    %v1577 = vadd.f32 %v1535, %v1574
    %v1578 = vxor.u32 %v1576, 2147483648
    %v1579 = vxor.u32 %v1577, 2147483648
    %v1580 = vmul.f32 %v1578, 1.442695
    %v1581 = vpow.pop %v1580
    %v1582 = vmul.f32 %v1579, 1.442695
    %v1583 = vpow.pop %v1582
    %v1584 = vadd.f32 %v1581, 1.0
    %v1585 = vadd.f32 %v1583, 1.0
    %v1586 = vrcp.pop %v1584
    %v1587 = vmul.f32 %v1584, %v1586
    %v1588 = vsub.f32 1.0, %v1587
    %v1589 = vmul.f32 %v1586, %v1588
    %v1590 = vadd.f32 %v1586, %v1589
    %vm1591 = vweird.f32 %v1584
    %vm1592 = vweird.f32 %v1586
    %vm1593 = vmor %vm1591, %vm1592
    %v1594 = vsel %vm1593, %v1586, %v1590
    %v1595 = vand.u32 2147483647, %v1584
    %vm1596 = vcmp.eq.f32.partialorder %v1595, 8.507059e+37
    %v1597 = vand.u32 %v1584, 2147483648
    %v1598 = vor.u32 1.1754944e-38, %v1597
    %v1599 = vsel %vm1596, %v1598, %v1594
    %v1600 = vmul.f32 1.0, %v1599
    %v1601 = vrcp.pop %v1585
    %v1602 = vmul.f32 %v1585, %v1601
    %v1603 = vsub.f32 1.0, %v1602
    %v1604 = vmul.f32 %v1601, %v1603
    %v1605 = vadd.f32 %v1601, %v1604
    %vm1606 = vweird.f32 %v1585
    %vm1607 = vweird.f32 %v1601
    %vm1608 = vmor %vm1606, %vm1607
    %v1609 = vsel %vm1608, %v1601, %v1605
    %v1610 = vand.u32 2147483647, %v1585
    %vm1611 = vcmp.eq.f32.partialorder %v1610, 8.507059e+37
    %v1612 = vand.u32 %v1585, 2147483648
    %v1613 = vor.u32 1.1754944e-38, %v1612
    %v1614 = vsel %vm1611, %v1613, %v1609
    %v1615 = vmul.f32 1.0, %v1614
    %v1616 = vtanh.pop %v1577
    %v1617 = vmul.f32 %v1600, 0.0
    %1619 = vrot.lane.b32.xlu0 %v1616, 64
    %v1620 = vpop.permute.xlu0 %1619
    %v1622 = vmul.f32 %v1600, %v1620
    %1624 = vrot.lane.b32.xlu0 %v1622, 64
    %v1625 = vpop.permute.xlu0 %1624
    %v1627 = vadd.f32 %v1617, %v1625
    %v1628 = vtanh.pop %v1627
    %1630 = vrot.lane.b32.xlu0 %v1628, 64
    %v1631 = vpop.permute.xlu0 %1630
    %v1633 = vmul.f32 %v1615, %v1631
    %v1634 = vld [vmem:[#allocation2 + $0x10] sm:$0xff]
    %v1635 = vld [vmem:[#allocation2 + $0x18] sm:$0xff]
    %v1637 = vsel %vm371, %v1633, 0
    %1639 = vmatpush.msra.mxu0 0.0
    %1640 = vmatpush.msra.mxu0 0.0
    %1641 = vmatpush.msra.mxu0 0.0
    %1642 = vmatpush.msra.mxu0 0.0
    %1643 = vmatpush.msra.mxu0 0.0
    %1644 = vmatpush.msra.mxu0 0.0
    %1645 = vmatpush.msra.mxu0 0.0
    %1646 = vmatpush.msra.mxu0 0.0
    %1647 = vmatpush.msra.mxu0 %v1532
    %1648 = vmatpush.msra.mxu0 %v1530
    %1649 = vmatpush.msra.mxu0 %v1528
    %1650 = vmatpush.msra.mxu0 %v1526
    %1651 = vmatpush.msra.mxu0 %v1524
    %1652 = vmatpush.msra.mxu0 %v1522
    %1653 = vmatpush.msra.mxu0 %v1520
    %1654 = vmatpush.msra.mxu0 %v1518
    %1655 = vmatmul.f32.gmra.mxu0 %v1637
    %v1656 = vpop.f32.mrf.mxu0
    %v1657 = vadd.f32 0.0, %v1656
    %1658 = vdwg.mxu0
    %1659 = vmatpush.msra.mxu0 0.0
    %1660 = vmatpush.msra.mxu0 0.0
    %1661 = vmatpush.msra.mxu0 0.0
    %1662 = vmatpush.msra.mxu0 0.0
    %1663 = vmatpush.msra.mxu0 0.0
    %1664 = vmatpush.msra.mxu0 0.0
    %1665 = vmatpush.msra.mxu0 0.0
    %1666 = vmatpush.msra.mxu0 0.0
    %1667 = vmatpush.msra.mxu0 %v1533
    %1668 = vmatpush.msra.mxu0 %v1531
    %1669 = vmatpush.msra.mxu0 %v1529
    %1670 = vmatpush.msra.mxu0 %v1527
    %1671 = vmatpush.msra.mxu0 %v1525
    %1672 = vmatpush.msra.mxu0 %v1523
    %1673 = vmatpush.msra.mxu0 %v1521
    %1674 = vmatpush.msra.mxu0 %v1519
    %1675 = vmatmul.f32.gmra.mxu0 %v1637
    %v1676 = vpop.f32.mrf.mxu0
    %v1677 = vadd.f32 0.0, %v1676
    %1678 = vdwg.mxu0
    %v1679 = vadd.f32 %v1634, %v1657
    %v1680 = vadd.f32 %v1635, %v1677
    %v1681 = vxor.u32 %v1679, 2147483648
    %v1682 = vxor.u32 %v1680, 2147483648
    %v1683 = vmul.f32 %v1681, 1.442695
    %v1684 = vpow.pop %v1683
    %v1685 = vmul.f32 %v1682, 1.442695
    %v1686 = vpow.pop %v1685
    %v1687 = vadd.f32 %v1684, 1.0
    %v1688 = vadd.f32 %v1686, 1.0
    %v1689 = vrcp.pop %v1687
    %v1690 = vmul.f32 %v1687, %v1689
    %v1691 = vsub.f32 1.0, %v1690
    %v1692 = vmul.f32 %v1689, %v1691
    %v1693 = vadd.f32 %v1689, %v1692
    %vm1694 = vweird.f32 %v1687
    %vm1695 = vweird.f32 %v1689
    %vm1696 = vmor %vm1694, %vm1695
    %v1697 = vsel %vm1696, %v1689, %v1693
    %v1698 = vand.u32 2147483647, %v1687
    %vm1699 = vcmp.eq.f32.partialorder %v1698, 8.507059e+37
    %v1700 = vand.u32 %v1687, 2147483648
    %v1701 = vor.u32 1.1754944e-38, %v1700
    %v1702 = vsel %vm1699, %v1701, %v1697
    %v1703 = vmul.f32 1.0, %v1702
    %v1704 = vrcp.pop %v1688
    %v1705 = vmul.f32 %v1688, %v1704
    %v1706 = vsub.f32 1.0, %v1705
    %v1707 = vmul.f32 %v1704, %v1706
    %v1708 = vadd.f32 %v1704, %v1707
    %vm1709 = vweird.f32 %v1688
    %vm1710 = vweird.f32 %v1704
    %vm1711 = vmor %vm1709, %vm1710
    %v1712 = vsel %vm1711, %v1704, %v1708
    %v1713 = vand.u32 2147483647, %v1688
    %vm1714 = vcmp.eq.f32.partialorder %v1713, 8.507059e+37
    %v1715 = vand.u32 %v1688, 2147483648
    %v1716 = vor.u32 1.1754944e-38, %v1715
    %v1717 = vsel %vm1714, %v1716, %v1712
    %v1718 = vmul.f32 1.0, %v1717
    %v1719 = vtanh.pop %v1680
    %v1720 = vmul.f32 %v1703, %v1627
    %1722 = vrot.lane.b32.xlu0 %v1719, 64
    %v1723 = vpop.permute.xlu0 %1722
    %v1725 = vmul.f32 %v1703, %v1723
    %1727 = vrot.lane.b32.xlu0 %v1725, 64
    %v1728 = vpop.permute.xlu0 %1727
    %v1730 = vadd.f32 %v1720, %v1728
    %v1731 = vtanh.pop %v1730
    %1733 = vrot.lane.b32.xlu0 %v1731, 64
    %v1734 = vpop.permute.xlu0 %1733
    %v1736 = vmul.f32 %v1718, %v1734
    %v1737 = vld [vmem:[#allocation2 + $0x20] sm:$0xff]
    %v1738 = vld [vmem:[#allocation2 + $0x28] sm:$0xff]
    %v1740 = vsel %vm371, %v1736, 0
    %1742 = vmatpush.msra.mxu0 0.0
    %1743 = vmatpush.msra.mxu0 0.0
    %1744 = vmatpush.msra.mxu0 0.0
    %1745 = vmatpush.msra.mxu0 0.0
    %1746 = vmatpush.msra.mxu0 0.0
    %1747 = vmatpush.msra.mxu0 0.0
    %1748 = vmatpush.msra.mxu0 0.0
    %1749 = vmatpush.msra.mxu0 0.0
    %1750 = vmatpush.msra.mxu0 %v1532
    %1751 = vmatpush.msra.mxu0 %v1530
    %1752 = vmatpush.msra.mxu0 %v1528
    %1753 = vmatpush.msra.mxu0 %v1526
    %1754 = vmatpush.msra.mxu0 %v1524
    %1755 = vmatpush.msra.mxu0 %v1522
    %1756 = vmatpush.msra.mxu0 %v1520
    %1757 = vmatpush.msra.mxu0 %v1518
    %1758 = vmatmul.f32.gmra.mxu0 %v1740
    %v1759 = vpop.f32.mrf.mxu0
    %v1760 = vadd.f32 0.0, %v1759
    %1761 = vdwg.mxu0
    %1762 = vmatpush.msra.mxu0 0.0
    %1763 = vmatpush.msra.mxu0 0.0
    %1764 = vmatpush.msra.mxu0 0.0
    %1765 = vmatpush.msra.mxu0 0.0
    %1766 = vmatpush.msra.mxu0 0.0
    %1767 = vmatpush.msra.mxu0 0.0
    %1768 = vmatpush.msra.mxu0 0.0
    %1769 = vmatpush.msra.mxu0 0.0
    %1770 = vmatpush.msra.mxu0 %v1533
    %1771 = vmatpush.msra.mxu0 %v1531
    %1772 = vmatpush.msra.mxu0 %v1529
    %1773 = vmatpush.msra.mxu0 %v1527
    %1774 = vmatpush.msra.mxu0 %v1525
    %1775 = vmatpush.msra.mxu0 %v1523
    %1776 = vmatpush.msra.mxu0 %v1521
    %1777 = vmatpush.msra.mxu0 %v1519
    %1778 = vmatmul.f32.gmra.mxu0 %v1740
    %v1779 = vpop.f32.mrf.mxu0
    %v1780 = vadd.f32 0.0, %v1779
    %1781 = vdwg.mxu0
    %v1782 = vadd.f32 %v1737, %v1760
    %v1783 = vadd.f32 %v1738, %v1780
    %v1784 = vxor.u32 %v1782, 2147483648
    %v1785 = vxor.u32 %v1783, 2147483648
    %v1786 = vmul.f32 %v1784, 1.442695
    %v1787 = vpow.pop %v1786
    %v1788 = vmul.f32 %v1785, 1.442695
    %v1789 = vpow.pop %v1788
    %v1790 = vadd.f32 %v1787, 1.0
    %v1791 = vadd.f32 %v1789, 1.0
    %v1792 = vrcp.pop %v1790
    %v1793 = vmul.f32 %v1790, %v1792
    %v1794 = vsub.f32 1.0, %v1793
    %v1795 = vmul.f32 %v1792, %v1794
    %v1796 = vadd.f32 %v1792, %v1795
    %vm1797 = vweird.f32 %v1790
    %vm1798 = vweird.f32 %v1792
    %vm1799 = vmor %vm1797, %vm1798
    %v1800 = vsel %vm1799, %v1792, %v1796
    %v1801 = vand.u32 2147483647, %v1790
    %vm1802 = vcmp.eq.f32.partialorder %v1801, 8.507059e+37
    %v1803 = vand.u32 %v1790, 2147483648
    %v1804 = vor.u32 1.1754944e-38, %v1803
    %v1805 = vsel %vm1802, %v1804, %v1800
    %v1806 = vmul.f32 1.0, %v1805
    %v1807 = vrcp.pop %v1791
    %v1808 = vmul.f32 %v1791, %v1807
    %v1809 = vsub.f32 1.0, %v1808
    %v1810 = vmul.f32 %v1807, %v1809
    %v1811 = vadd.f32 %v1807, %v1810
    %vm1812 = vweird.f32 %v1791
    %vm1813 = vweird.f32 %v1807
    %vm1814 = vmor %vm1812, %vm1813
    %v1815 = vsel %vm1814, %v1807, %v1811
    %v1816 = vand.u32 2147483647, %v1791
    %vm1817 = vcmp.eq.f32.partialorder %v1816, 8.507059e+37
    %v1818 = vand.u32 %v1791, 2147483648
    %v1819 = vor.u32 1.1754944e-38, %v1818
    %v1820 = vsel %vm1817, %v1819, %v1815
    %v1821 = vmul.f32 1.0, %v1820
    %v1822 = vtanh.pop %v1783
    %v1823 = vmul.f32 %v1806, %v1730
    %1825 = vrot.lane.b32.xlu0 %v1822, 64
    %v1826 = vpop.permute.xlu0 %1825
    %v1828 = vmul.f32 %v1806, %v1826
    %1830 = vrot.lane.b32.xlu0 %v1828, 64
    %v1831 = vpop.permute.xlu0 %1830
    %v1833 = vadd.f32 %v1823, %v1831
    %v1834 = vtanh.pop %v1833
    %1836 = vrot.lane.b32.xlu0 %v1834, 64
    %v1837 = vpop.permute.xlu0 %1836
    %v1839 = vmul.f32 %v1821, %v1837
    %v1840 = vld [vmem:[#allocation2 + $0x30] sm:$0xff]
    %v1841 = vld [vmem:[#allocation2 + $0x38] sm:$0xff]
    %v1843 = vsel %vm371, %v1839, 0
    %1845 = vmatpush.msra.mxu0 0.0
    %1846 = vmatpush.msra.mxu0 0.0
    %1847 = vmatpush.msra.mxu0 0.0
    %1848 = vmatpush.msra.mxu0 0.0
    %1849 = vmatpush.msra.mxu0 0.0
    %1850 = vmatpush.msra.mxu0 0.0
    %1851 = vmatpush.msra.mxu0 0.0
    %1852 = vmatpush.msra.mxu0 0.0
    %1853 = vmatpush.msra.mxu0 %v1532
    %1854 = vmatpush.msra.mxu0 %v1530
    %1855 = vmatpush.msra.mxu0 %v1528
    %1856 = vmatpush.msra.mxu0 %v1526
    %1857 = vmatpush.msra.mxu0 %v1524
    %1858 = vmatpush.msra.mxu0 %v1522
    %1859 = vmatpush.msra.mxu0 %v1520
    %1860 = vmatpush.msra.mxu0 %v1518
    %1861 = vmatmul.f32.gmra.mxu0 %v1843
    %v1862 = vpop.f32.mrf.mxu0
    %v1863 = vadd.f32 0.0, %v1862
    %1864 = vdwg.mxu0
    %1865 = vmatpush.msra.mxu0 0.0
    %1866 = vmatpush.msra.mxu0 0.0
    %1867 = vmatpush.msra.mxu0 0.0
    %1868 = vmatpush.msra.mxu0 0.0
    %1869 = vmatpush.msra.mxu0 0.0
    %1870 = vmatpush.msra.mxu0 0.0
    %1871 = vmatpush.msra.mxu0 0.0
    %1872 = vmatpush.msra.mxu0 0.0
    %1873 = vmatpush.msra.mxu0 %v1533
    %1874 = vmatpush.msra.mxu0 %v1531
    %1875 = vmatpush.msra.mxu0 %v1529
    %1876 = vmatpush.msra.mxu0 %v1527
    %1877 = vmatpush.msra.mxu0 %v1525
    %1878 = vmatpush.msra.mxu0 %v1523
    %1879 = vmatpush.msra.mxu0 %v1521
    %1880 = vmatpush.msra.mxu0 %v1519
    %1881 = vmatmul.f32.gmra.mxu0 %v1843
    %v1882 = vpop.f32.mrf.mxu0
    %v1883 = vadd.f32 0.0, %v1882
    %1884 = vdwg.mxu0
    %v1885 = vadd.f32 %v1840, %v1863
    %v1886 = vadd.f32 %v1841, %v1883
    %v1887 = vxor.u32 %v1885, 2147483648
    %v1888 = vxor.u32 %v1886, 2147483648
    %v1889 = vmul.f32 %v1887, 1.442695
    %v1890 = vpow.pop %v1889
    %v1891 = vmul.f32 %v1888, 1.442695
    %v1892 = vpow.pop %v1891
    %v1893 = vadd.f32 %v1890, 1.0
    %v1894 = vadd.f32 %v1892, 1.0
    %v1895 = vrcp.pop %v1893
    %v1896 = vmul.f32 %v1893, %v1895
    %v1897 = vsub.f32 1.0, %v1896
    %v1898 = vmul.f32 %v1895, %v1897
    %v1899 = vadd.f32 %v1895, %v1898
    %vm1900 = vweird.f32 %v1893
    %vm1901 = vweird.f32 %v1895
    %vm1902 = vmor %vm1900, %vm1901
    %v1903 = vsel %vm1902, %v1895, %v1899
    %v1904 = vand.u32 2147483647, %v1893
    %vm1905 = vcmp.eq.f32.partialorder %v1904, 8.507059e+37
    %v1906 = vand.u32 %v1893, 2147483648
    %v1907 = vor.u32 1.1754944e-38, %v1906
    %v1908 = vsel %vm1905, %v1907, %v1903
    %v1909 = vmul.f32 1.0, %v1908
    %v1910 = vrcp.pop %v1894
    %v1911 = vmul.f32 %v1894, %v1910
    %v1912 = vsub.f32 1.0, %v1911
    %v1913 = vmul.f32 %v1910, %v1912
    %v1914 = vadd.f32 %v1910, %v1913
    %vm1915 = vweird.f32 %v1894
    %vm1916 = vweird.f32 %v1910
    %vm1917 = vmor %vm1915, %vm1916
    %v1918 = vsel %vm1917, %v1910, %v1914
    %v1919 = vand.u32 2147483647, %v1894
    %vm1920 = vcmp.eq.f32.partialorder %v1919, 8.507059e+37
    %v1921 = vand.u32 %v1894, 2147483648
    %v1922 = vor.u32 1.1754944e-38, %v1921
    %v1923 = vsel %vm1920, %v1922, %v1918
    %v1924 = vmul.f32 1.0, %v1923
    %v1925 = vtanh.pop %v1886
    %v1926 = vmul.f32 %v1909, %v1833
    %1928 = vrot.lane.b32.xlu0 %v1925, 64
    %v1929 = vpop.permute.xlu0 %1928
    %v1931 = vmul.f32 %v1909, %v1929
    %1933 = vrot.lane.b32.xlu0 %v1931, 64
    %v1934 = vpop.permute.xlu0 %1933
    %v1936 = vadd.f32 %v1926, %v1934
    %v1937 = vtanh.pop %v1936
    %1939 = vrot.lane.b32.xlu0 %v1937, 64
    %v1940 = vpop.permute.xlu0 %1939
    %v1942 = vmul.f32 %v1924, %v1940
    %v1943 = vld [vmem:[#allocation2 + $0x40] sm:$0xff]
    %v1944 = vld [vmem:[#allocation2 + $0x48] sm:$0xff]
    %v1946 = vsel %vm371, %v1942, 0
    %1948 = vmatpush.msra.mxu0 0.0
    %1949 = vmatpush.msra.mxu0 0.0
    %1950 = vmatpush.msra.mxu0 0.0
    %1951 = vmatpush.msra.mxu0 0.0
    %1952 = vmatpush.msra.mxu0 0.0
    %1953 = vmatpush.msra.mxu0 0.0
    %1954 = vmatpush.msra.mxu0 0.0
    %1955 = vmatpush.msra.mxu0 0.0
    %1956 = vmatpush.msra.mxu0 %v1532
    %1957 = vmatpush.msra.mxu0 %v1530
    %1958 = vmatpush.msra.mxu0 %v1528
    %1959 = vmatpush.msra.mxu0 %v1526
    %1960 = vmatpush.msra.mxu0 %v1524
    %1961 = vmatpush.msra.mxu0 %v1522
    %1962 = vmatpush.msra.mxu0 %v1520
    %1963 = vmatpush.msra.mxu0 %v1518
    %1964 = vmatmul.f32.gmra.mxu0 %v1946
    %v1965 = vpop.f32.mrf.mxu0
    %v1966 = vadd.f32 0.0, %v1965
    %1967 = vdwg.mxu0
    %1968 = vmatpush.msra.mxu0 0.0
    %1969 = vmatpush.msra.mxu0 0.0
    %1970 = vmatpush.msra.mxu0 0.0
    %1971 = vmatpush.msra.mxu0 0.0
    %1972 = vmatpush.msra.mxu0 0.0
    %1973 = vmatpush.msra.mxu0 0.0
    %1974 = vmatpush.msra.mxu0 0.0
    %1975 = vmatpush.msra.mxu0 0.0
    %1976 = vmatpush.msra.mxu0 %v1533
    %1977 = vmatpush.msra.mxu0 %v1531
    %1978 = vmatpush.msra.mxu0 %v1529
    %1979 = vmatpush.msra.mxu0 %v1527
    %1980 = vmatpush.msra.mxu0 %v1525
    %1981 = vmatpush.msra.mxu0 %v1523
    %1982 = vmatpush.msra.mxu0 %v1521
    %1983 = vmatpush.msra.mxu0 %v1519
    %1984 = vmatmul.f32.gmra.mxu0 %v1946
    %v1985 = vpop.f32.mrf.mxu0
    %v1986 = vadd.f32 0.0, %v1985
    %1987 = vdwg.mxu0
    %v1988 = vadd.f32 %v1943, %v1966
    %v1989 = vadd.f32 %v1944, %v1986
    %v1990 = vxor.u32 %v1988, 2147483648
    %v1991 = vxor.u32 %v1989, 2147483648
    %v1992 = vmul.f32 %v1990, 1.442695
    %v1993 = vpow.pop %v1992
    %v1994 = vmul.f32 %v1991, 1.442695
    %v1995 = vpow.pop %v1994
    %v1996 = vadd.f32 %v1993, 1.0
    %v1997 = vadd.f32 %v1995, 1.0
    %v1998 = vrcp.pop %v1996
    %v1999 = vmul.f32 %v1996, %v1998
    %v2000 = vsub.f32 1.0, %v1999
    %v2001 = vmul.f32 %v1998, %v2000
    %v2002 = vadd.f32 %v1998, %v2001
    %vm2003 = vweird.f32 %v1996
    %vm2004 = vweird.f32 %v1998
    %vm2005 = vmor %vm2003, %vm2004
    %v2006 = vsel %vm2005, %v1998, %v2002
    %v2007 = vand.u32 2147483647, %v1996
    %vm2008 = vcmp.eq.f32.partialorder %v2007, 8.507059e+37
    %v2009 = vand.u32 %v1996, 2147483648
    %v2010 = vor.u32 1.1754944e-38, %v2009
    %v2011 = vsel %vm2008, %v2010, %v2006
    %v2012 = vmul.f32 1.0, %v2011
    %v2013 = vrcp.pop %v1997
    %v2014 = vmul.f32 %v1997, %v2013
    %v2015 = vsub.f32 1.0, %v2014
    %v2016 = vmul.f32 %v2013, %v2015
    %v2017 = vadd.f32 %v2013, %v2016
    %vm2018 = vweird.f32 %v1997
    %vm2019 = vweird.f32 %v2013
    %vm2020 = vmor %vm2018, %vm2019
    %v2021 = vsel %vm2020, %v2013, %v2017
    %v2022 = vand.u32 2147483647, %v1997
    %vm2023 = vcmp.eq.f32.partialorder %v2022, 8.507059e+37
    %v2024 = vand.u32 %v1997, 2147483648
    %v2025 = vor.u32 1.1754944e-38, %v2024
    %v2026 = vsel %vm2023, %v2025, %v2021
    %v2027 = vmul.f32 1.0, %v2026
    %v2028 = vtanh.pop %v1989
    %v2029 = vmul.f32 %v2012, %v1936
    %2031 = vrot.lane.b32.xlu0 %v2028, 64
    %v2032 = vpop.permute.xlu0 %2031
    %v2034 = vmul.f32 %v2012, %v2032
    %2036 = vrot.lane.b32.xlu0 %v2034, 64
    %v2037 = vpop.permute.xlu0 %2036
    %v2039 = vadd.f32 %v2029, %v2037
    %v2040 = vtanh.pop %v2039
    %2042 = vrot.lane.b32.xlu0 %v2040, 64
    %v2043 = vpop.permute.xlu0 %2042
    %v2045 = vmul.f32 %v2027, %v2043
    %v2046 = vld [vmem:[#allocation2 + $0x50] sm:$0xff]
    %v2047 = vld [vmem:[#allocation2 + $0x58] sm:$0xff]
    %v2049 = vsel %vm371, %v2045, 0
    %2051 = vmatpush.msra.mxu0 0.0
    %2052 = vmatpush.msra.mxu0 0.0
    %2053 = vmatpush.msra.mxu0 0.0
    %2054 = vmatpush.msra.mxu0 0.0
    %2055 = vmatpush.msra.mxu0 0.0
    %2056 = vmatpush.msra.mxu0 0.0
    %2057 = vmatpush.msra.mxu0 0.0
    %2058 = vmatpush.msra.mxu0 0.0
    %2059 = vmatpush.msra.mxu0 %v1532
    %2060 = vmatpush.msra.mxu0 %v1530
    %2061 = vmatpush.msra.mxu0 %v1528
    %2062 = vmatpush.msra.mxu0 %v1526
    %2063 = vmatpush.msra.mxu0 %v1524
    %2064 = vmatpush.msra.mxu0 %v1522
    %2065 = vmatpush.msra.mxu0 %v1520
    %2066 = vmatpush.msra.mxu0 %v1518
    %2067 = vmatmul.f32.gmra.mxu0 %v2049
    %v2068 = vpop.f32.mrf.mxu0
    %v2069 = vadd.f32 0.0, %v2068
    %2070 = vdwg.mxu0
    %2071 = vmatpush.msra.mxu0 0.0
    %2072 = vmatpush.msra.mxu0 0.0
    %2073 = vmatpush.msra.mxu0 0.0
    %2074 = vmatpush.msra.mxu0 0.0
    %2075 = vmatpush.msra.mxu0 0.0
    %2076 = vmatpush.msra.mxu0 0.0
    %2077 = vmatpush.msra.mxu0 0.0
    %2078 = vmatpush.msra.mxu0 0.0
    %2079 = vmatpush.msra.mxu0 %v1533
    %2080 = vmatpush.msra.mxu0 %v1531
    %2081 = vmatpush.msra.mxu0 %v1529
    %2082 = vmatpush.msra.mxu0 %v1527
    %2083 = vmatpush.msra.mxu0 %v1525
    %2084 = vmatpush.msra.mxu0 %v1523
    %2085 = vmatpush.msra.mxu0 %v1521
    %2086 = vmatpush.msra.mxu0 %v1519
    %2087 = vmatmul.f32.gmra.mxu0 %v2049
    %v2088 = vpop.f32.mrf.mxu0
    %v2089 = vadd.f32 0.0, %v2088
    %2090 = vdwg.mxu0
    %v2091 = vadd.f32 %v2046, %v2069
    %v2092 = vadd.f32 %v2047, %v2089
    %v2093 = vxor.u32 %v2091, 2147483648
    %v2094 = vxor.u32 %v2092, 2147483648
    %v2095 = vmul.f32 %v2093, 1.442695
    %v2096 = vpow.pop %v2095
    %v2097 = vmul.f32 %v2094, 1.442695
    %v2098 = vpow.pop %v2097
    %v2099 = vadd.f32 %v2096, 1.0
    %v2100 = vadd.f32 %v2098, 1.0
    %v2101 = vrcp.pop %v2099
    %v2102 = vmul.f32 %v2099, %v2101
    %v2103 = vsub.f32 1.0, %v2102
    %v2104 = vmul.f32 %v2101, %v2103
    %v2105 = vadd.f32 %v2101, %v2104
    %vm2106 = vweird.f32 %v2099
    %vm2107 = vweird.f32 %v2101
    %vm2108 = vmor %vm2106, %vm2107
    %v2109 = vsel %vm2108, %v2101, %v2105
    %v2110 = vand.u32 2147483647, %v2099
    %vm2111 = vcmp.eq.f32.partialorder %v2110, 8.507059e+37
    %v2112 = vand.u32 %v2099, 2147483648
    %v2113 = vor.u32 1.1754944e-38, %v2112
    %v2114 = vsel %vm2111, %v2113, %v2109
    %v2115 = vmul.f32 1.0, %v2114
    %v2116 = vrcp.pop %v2100
    %v2117 = vmul.f32 %v2100, %v2116
    %v2118 = vsub.f32 1.0, %v2117
    %v2119 = vmul.f32 %v2116, %v2118
    %v2120 = vadd.f32 %v2116, %v2119
    %vm2121 = vweird.f32 %v2100
    %vm2122 = vweird.f32 %v2116
    %vm2123 = vmor %vm2121, %vm2122
    %v2124 = vsel %vm2123, %v2116, %v2120
    %v2125 = vand.u32 2147483647, %v2100
    %vm2126 = vcmp.eq.f32.partialorder %v2125, 8.507059e+37
    %v2127 = vand.u32 %v2100, 2147483648
    %v2128 = vor.u32 1.1754944e-38, %v2127
    %v2129 = vsel %vm2126, %v2128, %v2124
    %v2130 = vmul.f32 1.0, %v2129
    %v2131 = vtanh.pop %v2092
    %v2132 = vmul.f32 %v2115, %v2039
    %2134 = vrot.lane.b32.xlu0 %v2131, 64
    %v2135 = vpop.permute.xlu0 %2134
    %v2137 = vmul.f32 %v2115, %v2135
    %2139 = vrot.lane.b32.xlu0 %v2137, 64
    %v2140 = vpop.permute.xlu0 %2139
    %v2142 = vadd.f32 %v2132, %v2140
    %v2143 = vtanh.pop %v2142
    %2145 = vrot.lane.b32.xlu0 %v2143, 64
    %v2146 = vpop.permute.xlu0 %2145
    %v2148 = vmul.f32 %v2130, %v2146
    %v2149 = vld [vmem:[#allocation2 + $0x60] sm:$0xff]
    %v2150 = vld [vmem:[#allocation2 + $0x68] sm:$0xff]
    %v2152 = vsel %vm371, %v2148, 0
    %2154 = vmatpush.msra.mxu0 0.0
    %2155 = vmatpush.msra.mxu0 0.0
    %2156 = vmatpush.msra.mxu0 0.0
    %2157 = vmatpush.msra.mxu0 0.0
    %2158 = vmatpush.msra.mxu0 0.0
    %2159 = vmatpush.msra.mxu0 0.0
    %2160 = vmatpush.msra.mxu0 0.0
    %2161 = vmatpush.msra.mxu0 0.0
    %2162 = vmatpush.msra.mxu0 %v1532
    %2163 = vmatpush.msra.mxu0 %v1530
    %2164 = vmatpush.msra.mxu0 %v1528
    %2165 = vmatpush.msra.mxu0 %v1526
    %2166 = vmatpush.msra.mxu0 %v1524
    %2167 = vmatpush.msra.mxu0 %v1522
    %2168 = vmatpush.msra.mxu0 %v1520
    %2169 = vmatpush.msra.mxu0 %v1518
    %2170 = vmatmul.f32.gmra.mxu0 %v2152
    %v2171 = vpop.f32.mrf.mxu0
    %v2172 = vadd.f32 0.0, %v2171
    %2173 = vdwg.mxu0
    %2174 = vmatpush.msra.mxu0 0.0
    %2175 = vmatpush.msra.mxu0 0.0
    %2176 = vmatpush.msra.mxu0 0.0
    %2177 = vmatpush.msra.mxu0 0.0
    %2178 = vmatpush.msra.mxu0 0.0
    %2179 = vmatpush.msra.mxu0 0.0
    %2180 = vmatpush.msra.mxu0 0.0
    %2181 = vmatpush.msra.mxu0 0.0
    %2182 = vmatpush.msra.mxu0 %v1533
    %2183 = vmatpush.msra.mxu0 %v1531
    %2184 = vmatpush.msra.mxu0 %v1529
    %2185 = vmatpush.msra.mxu0 %v1527
    %2186 = vmatpush.msra.mxu0 %v1525
    %2187 = vmatpush.msra.mxu0 %v1523
    %2188 = vmatpush.msra.mxu0 %v1521
    %2189 = vmatpush.msra.mxu0 %v1519
    %2190 = vmatmul.f32.gmra.mxu0 %v2152
    %v2191 = vpop.f32.mrf.mxu0
    %v2192 = vadd.f32 0.0, %v2191
    %2193 = vdwg.mxu0
    %v2194 = vadd.f32 %v2149, %v2172
    %v2195 = vadd.f32 %v2150, %v2192
    %v2196 = vxor.u32 %v2194, 2147483648
    %v2197 = vxor.u32 %v2195, 2147483648
    %v2198 = vmul.f32 %v2196, 1.442695
    %v2199 = vpow.pop %v2198
    %v2200 = vmul.f32 %v2197, 1.442695
    %v2201 = vpow.pop %v2200
    %v2202 = vadd.f32 %v2199, 1.0
    %v2203 = vadd.f32 %v2201, 1.0
    %v2204 = vrcp.pop %v2202
    %v2205 = vmul.f32 %v2202, %v2204
    %v2206 = vsub.f32 1.0, %v2205
    %v2207 = vmul.f32 %v2204, %v2206
    %v2208 = vadd.f32 %v2204, %v2207
    %vm2209 = vweird.f32 %v2202
    %vm2210 = vweird.f32 %v2204
    %vm2211 = vmor %vm2209, %vm2210
    %v2212 = vsel %vm2211, %v2204, %v2208
    %v2213 = vand.u32 2147483647, %v2202
    %vm2214 = vcmp.eq.f32.partialorder %v2213, 8.507059e+37
    %v2215 = vand.u32 %v2202, 2147483648
    %v2216 = vor.u32 1.1754944e-38, %v2215
    %v2217 = vsel %vm2214, %v2216, %v2212
    %v2218 = vmul.f32 1.0, %v2217
    %v2219 = vrcp.pop %v2203
    %v2220 = vmul.f32 %v2203, %v2219
    %v2221 = vsub.f32 1.0, %v2220
    %v2222 = vmul.f32 %v2219, %v2221
    %v2223 = vadd.f32 %v2219, %v2222
    %vm2224 = vweird.f32 %v2203
    %vm2225 = vweird.f32 %v2219
    %vm2226 = vmor %vm2224, %vm2225
    %v2227 = vsel %vm2226, %v2219, %v2223
    %v2228 = vand.u32 2147483647, %v2203
    %vm2229 = vcmp.eq.f32.partialorder %v2228, 8.507059e+37
    %v2230 = vand.u32 %v2203, 2147483648
    %v2231 = vor.u32 1.1754944e-38, %v2230
    %v2232 = vsel %vm2229, %v2231, %v2227
    %v2233 = vmul.f32 1.0, %v2232
    %v2234 = vtanh.pop %v2195
    %v2235 = vmul.f32 %v2218, %v2142
    %2237 = vrot.lane.b32.xlu0 %v2234, 64
    %v2238 = vpop.permute.xlu0 %2237
    %v2240 = vmul.f32 %v2218, %v2238
    %2242 = vrot.lane.b32.xlu0 %v2240, 64
    %v2243 = vpop.permute.xlu0 %2242
    %v2245 = vadd.f32 %v2235, %v2243
    %v2246 = vtanh.pop %v2245
    %2248 = vrot.lane.b32.xlu0 %v2246, 64
    %v2249 = vpop.permute.xlu0 %2248
    %v2251 = vmul.f32 %v2233, %v2249
    %v2252 = vld [vmem:[#allocation2 + $0x70] sm:$0xff]
    %v2253 = vld [vmem:[#allocation2 + $0x78] sm:$0xff]
    %v2255 = vsel %vm371, %v2251, 0
    %2257 = vmatpush.msra.mxu0 0.0
    %2258 = vmatpush.msra.mxu0 0.0
    %2259 = vmatpush.msra.mxu0 0.0
    %2260 = vmatpush.msra.mxu0 0.0
    %2261 = vmatpush.msra.mxu0 0.0
    %2262 = vmatpush.msra.mxu0 0.0
    %2263 = vmatpush.msra.mxu0 0.0
    %2264 = vmatpush.msra.mxu0 0.0
    %2265 = vmatpush.msra.mxu0 %v1532
    %2266 = vmatpush.msra.mxu0 %v1530
    %2267 = vmatpush.msra.mxu0 %v1528
    %2268 = vmatpush.msra.mxu0 %v1526
    %2269 = vmatpush.msra.mxu0 %v1524
    %2270 = vmatpush.msra.mxu0 %v1522
    %2271 = vmatpush.msra.mxu0 %v1520
    %2272 = vmatpush.msra.mxu0 %v1518
    %2273 = vmatmul.f32.gmra.mxu0 %v2255
    %v2274 = vpop.f32.mrf.mxu0
    %v2275 = vadd.f32 0.0, %v2274
    %2276 = vdwg.mxu0
    %2277 = vmatpush.msra.mxu0 0.0
    %2278 = vmatpush.msra.mxu0 0.0
    %2279 = vmatpush.msra.mxu0 0.0
    %2280 = vmatpush.msra.mxu0 0.0
    %2281 = vmatpush.msra.mxu0 0.0
    %2282 = vmatpush.msra.mxu0 0.0
    %2283 = vmatpush.msra.mxu0 0.0
    %2284 = vmatpush.msra.mxu0 0.0
    %2285 = vmatpush.msra.mxu0 %v1533
    %2286 = vmatpush.msra.mxu0 %v1531
    %2287 = vmatpush.msra.mxu0 %v1529
    %2288 = vmatpush.msra.mxu0 %v1527
    %2289 = vmatpush.msra.mxu0 %v1525
    %2290 = vmatpush.msra.mxu0 %v1523
    %2291 = vmatpush.msra.mxu0 %v1521
    %2292 = vmatpush.msra.mxu0 %v1519
    %2293 = vmatmul.f32.gmra.mxu0 %v2255
    %v2294 = vpop.f32.mrf.mxu0
    %v2295 = vadd.f32 0.0, %v2294
    %2296 = vdwg.mxu0
    %v2297 = vadd.f32 %v2252, %v2275
    %v2298 = vadd.f32 %v2253, %v2295
    %v2299 = vxor.u32 %v2297, 2147483648
    %v2300 = vxor.u32 %v2298, 2147483648
    %v2301 = vmul.f32 %v2299, 1.442695
    %v2302 = vpow.pop %v2301
    %v2303 = vmul.f32 %v2300, 1.442695
    %v2304 = vpow.pop %v2303
    %v2305 = vadd.f32 %v2302, 1.0
    %v2306 = vadd.f32 %v2304, 1.0
    %v2307 = vrcp.pop %v2305
    %v2308 = vmul.f32 %v2305, %v2307
    %v2309 = vsub.f32 1.0, %v2308
    %v2310 = vmul.f32 %v2307, %v2309
    %v2311 = vadd.f32 %v2307, %v2310
    %vm2312 = vweird.f32 %v2305
    %vm2313 = vweird.f32 %v2307
    %vm2314 = vmor %vm2312, %vm2313
    %v2315 = vsel %vm2314, %v2307, %v2311
    %v2316 = vand.u32 2147483647, %v2305
    %vm2317 = vcmp.eq.f32.partialorder %v2316, 8.507059e+37
    %v2318 = vand.u32 %v2305, 2147483648
    %v2319 = vor.u32 1.1754944e-38, %v2318
    %v2320 = vsel %vm2317, %v2319, %v2315
    %v2321 = vmul.f32 1.0, %v2320
    %v2322 = vrcp.pop %v2306
    %v2323 = vmul.f32 %v2306, %v2322
    %v2324 = vsub.f32 1.0, %v2323
    %v2325 = vmul.f32 %v2322, %v2324
    %v2326 = vadd.f32 %v2322, %v2325
    %vm2327 = vweird.f32 %v2306
    %vm2328 = vweird.f32 %v2322
    %vm2329 = vmor %vm2327, %vm2328
    %v2330 = vsel %vm2329, %v2322, %v2326
    %v2331 = vand.u32 2147483647, %v2306
    %vm2332 = vcmp.eq.f32.partialorder %v2331, 8.507059e+37
    %v2333 = vand.u32 %v2306, 2147483648
    %v2334 = vor.u32 1.1754944e-38, %v2333
    %v2335 = vsel %vm2332, %v2334, %v2330
    %v2336 = vmul.f32 1.0, %v2335
    %v2337 = vtanh.pop %v2298
    %v2338 = vmul.f32 %v2321, %v2245
    %2340 = vrot.lane.b32.xlu0 %v2337, 64
    %v2341 = vpop.permute.xlu0 %2340
    %v2343 = vmul.f32 %v2321, %v2341
    %2345 = vrot.lane.b32.xlu0 %v2343, 64
    %v2346 = vpop.permute.xlu0 %2345
    %v2348 = vadd.f32 %v2338, %v2346
    %v2349 = vtanh.pop %v2348
    %2351 = vrot.lane.b32.xlu0 %v2349, 64
    %v2352 = vpop.permute.xlu0 %2351
    %v2354 = vmul.f32 %v2336, %v2352
    %v2355 = vsel %vm340, %v1633, %v2354
    %v2356 = vsel %vm340, %v1736, %v2251
    %v2357 = vsel %vm340, %v1839, %v2148
    %v2358 = vsel %vm340, %v1942, %v2045
    %v2359 = vsel %vm340, %v2045, %v1942
    %v2360 = vsel %vm340, %v2148, %v1839
    %v2361 = vsel %vm340, %v2251, %v1736
    %v2362 = vsel %vm340, %v2354, %v1633
    %v2363 = vld [vmem:[#allocation18] sm:$0x1]
    %v2365 = vperm.slane %v2363, 0
    %v2367 = vmul.f32 %v2355, %v2365
    %v2368 = vmul.f32 %v2356, %v2365
    %v2369 = vmul.f32 %v2357, %v2365
    %v2370 = vmul.f32 %v2358, %v2365
    %v2371 = vmul.f32 %v2359, %v2365
    %v2372 = vmul.f32 %v2360, %v2365
    %v2373 = vmul.f32 %v2361, %v2365
    %v2374 = vmul.f32 %v2362, %v2365
    %v2375 = vsel %vm371, %v2367, 0.0
    %2376 = vadd.xlane.f32.xlu0 %v2375
    %v2377 = vpop.xlane.xlu0 %2376
    %v2378 = vsel %vm371, %v2368, 0.0
    %2379 = vadd.xlane.f32.xlu0 %v2378
    %v2380 = vpop.xlane.xlu0 %2379
    %v2381 = vsel %vm371, %v2369, 0.0
    %2382 = vadd.xlane.f32.xlu0 %v2381
    %v2383 = vpop.xlane.xlu0 %2382
    %v2384 = vsel %vm371, %v2370, 0.0
    %2385 = vadd.xlane.f32.xlu0 %v2384
    %v2386 = vpop.xlane.xlu0 %2385
    %v2387 = vsel %vm371, %v2371, 0.0
    %2388 = vadd.xlane.f32.xlu0 %v2387
    %v2389 = vpop.xlane.xlu0 %2388
    %v2390 = vsel %vm371, %v2372, 0.0
    %2391 = vadd.xlane.f32.xlu0 %v2390
    %v2392 = vpop.xlane.xlu0 %2391
    %v2393 = vsel %vm371, %v2373, 0.0
    %2394 = vadd.xlane.f32.xlu0 %v2393
    %v2395 = vpop.xlane.xlu0 %2394
    %v2396 = vsel %vm371, %v2374, 0.0
    %2397 = vadd.xlane.f32.xlu0 %v2396
    %v2398 = vpop.xlane.xlu0 %2397
    %v2399 = vld [vmem:[#allocation3] sm:$0x1]
    %v2401 = vperm.slane %v2399, 0
    %v2403 = vadd.f32 %v2377, %v2401
    %v2404 = vadd.f32 %v2380, %v2401
    %v2405 = vadd.f32 %v2383, %v2401
    %v2406 = vadd.f32 %v2386, %v2401
    %v2407 = vadd.f32 %v2389, %v2401
    %v2408 = vadd.f32 %v2392, %v2401
    %v2409 = vadd.f32 %v2395, %v2401
    %v2410 = vadd.f32 %v2398, %v2401
    %v2411 = vtanh.pop %v2403
    %v2412 = vtanh.pop %v2404
    %v2413 = vtanh.pop %v2405
    %v2414 = vtanh.pop %v2406
    %v2415 = vtanh.pop %v2407
    %v2416 = vtanh.pop %v2408
    %v2417 = vtanh.pop %v2409
    %v2418 = vtanh.pop %v2410
    %v2419 = vmax.f32 %v2411, %v2412
    %v2420 = vmax.f32 %v2419, %v2413
    %v2421 = vmax.f32 %v2420, %v2414
    %v2422 = vmax.f32 %v2421, %v2415
    %v2423 = vmax.f32 %v2422, %v2416
    %v2424 = vmax.f32 %v2423, %v2417
    %v2425 = vmax.f32 %v2424, %v2418
    %v2426 = vsub.f32 %v2411, %v2425
    %v2427 = vmul.f32 %v2426, 1.442695
    %v2428 = vpow.pop %v2427
    %v2429 = vadd.f32 %v2428, 0.0
    %2431 = vset.pattern.permute.xlu0 0
    %2432 = vperm.xlu0 %2431, %v2428
    %v2433 = vpop.permute.xlu0 %2432
    %v2435 = vmul.f32 %v2433, %v2355
    %v2436 = vadd.f32 %v2435, 0.0
    %v2437 = vsub.f32 %v2412, %v2425
    %v2438 = vmul.f32 %v2437, 1.442695
    %v2439 = vpow.pop %v2438
    %v2440 = vadd.f32 %v2429, %v2439
    %2442 = vset.pattern.permute.xlu0 0
    %2443 = vperm.xlu0 %2442, %v2439
    %v2444 = vpop.permute.xlu0 %2443
    %v2446 = vmul.f32 %v2444, %v2356
    %v2447 = vadd.f32 %v2436, %v2446
    %v2448 = vsub.f32 %v2413, %v2425
    %v2449 = vmul.f32 %v2448, 1.442695
    %v2450 = vpow.pop %v2449
    %v2451 = vadd.f32 %v2440, %v2450
    %2453 = vset.pattern.permute.xlu0 0
    %2454 = vperm.xlu0 %2453, %v2450
    %v2455 = vpop.permute.xlu0 %2454
    %v2457 = vmul.f32 %v2455, %v2357
    %v2458 = vadd.f32 %v2447, %v2457
    %v2459 = vsub.f32 %v2414, %v2425
    %v2460 = vmul.f32 %v2459, 1.442695
    %v2461 = vpow.pop %v2460
    %v2462 = vadd.f32 %v2451, %v2461
    %2464 = vset.pattern.permute.xlu0 0
    %2465 = vperm.xlu0 %2464, %v2461
    %v2466 = vpop.permute.xlu0 %2465
    %v2468 = vmul.f32 %v2466, %v2358
    %v2469 = vadd.f32 %v2458, %v2468
    %v2470 = vsub.f32 %v2415, %v2425
    %v2471 = vmul.f32 %v2470, 1.442695
    %v2472 = vpow.pop %v2471
    %v2473 = vadd.f32 %v2462, %v2472
    %2475 = vset.pattern.permute.xlu0 0
    %2476 = vperm.xlu0 %2475, %v2472
    %v2477 = vpop.permute.xlu0 %2476
    %v2479 = vmul.f32 %v2477, %v2359
    %v2480 = vadd.f32 %v2469, %v2479
    %v2481 = vsub.f32 %v2416, %v2425
    %v2482 = vmul.f32 %v2481, 1.442695
    %v2483 = vpow.pop %v2482
    %v2484 = vadd.f32 %v2473, %v2483
    %2486 = vset.pattern.permute.xlu0 0
    %2487 = vperm.xlu0 %2486, %v2483
    %v2488 = vpop.permute.xlu0 %2487
    %v2490 = vmul.f32 %v2488, %v2360
    %v2491 = vadd.f32 %v2480, %v2490
    %v2492 = vsub.f32 %v2417, %v2425
    %v2493 = vmul.f32 %v2492, 1.442695
    %v2494 = vpow.pop %v2493
    %v2495 = vadd.f32 %v2484, %v2494
    %2497 = vset.pattern.permute.xlu0 0
    %2498 = vperm.xlu0 %2497, %v2494
    %v2499 = vpop.permute.xlu0 %2498
    %v2501 = vmul.f32 %v2499, %v2361
    %v2502 = vadd.f32 %v2491, %v2501
    %v2503 = vsub.f32 %v2418, %v2425
    %v2504 = vmul.f32 %v2503, 1.442695
    %v2505 = vpow.pop %v2504
    %v2506 = vadd.f32 %v2495, %v2505
    %2508 = vset.pattern.permute.xlu0 0
    %2509 = vperm.xlu0 %2508, %v2505
    %v2510 = vpop.permute.xlu0 %2509
    %v2512 = vmul.f32 %v2510, %v2362
    %v2513 = vadd.f32 %v2502, %v2512
    %2515 = vset.pattern.permute.xlu0 0
    %2516 = vperm.xlu0 %2515, %v2506
    %v2517 = vpop.permute.xlu0 %2516
    %v2519 = vrcp.pop %v2517
    %v2520 = vmul.f32 %v2517, %v2519
    %v2521 = vsub.f32 1.0, %v2520
    %v2522 = vmul.f32 %v2519, %v2521
    %v2523 = vadd.f32 %v2519, %v2522
    %vm2524 = vweird.f32 %v2517
    %vm2525 = vweird.f32 %v2519
    %vm2526 = vmor %vm2524, %vm2525
    %v2527 = vsel %vm2526, %v2519, %v2523
    %v2528 = vand.u32 2147483647, %v2517
    %vm2529 = vcmp.eq.f32.partialorder %v2528, 8.507059e+37
    %v2530 = vand.u32 %v2517, 2147483648
    %v2531 = vor.u32 1.1754944e-38, %v2530
    %v2532 = vsel %vm2529, %v2531, %v2527
    %v2533 = vmul.f32 %v2513, %v2532
    %v2534 = vld [vmem:[%s13] sm:$0xff]
    %v2535 = vld [vmem:[%s13 + $0x8] sm:$0xff]
    %v2536 = vld [vmem:[%s13 + $0x10] sm:$0xff]
    %v2537 = vld [vmem:[%s13 + $0x18] sm:$0xff]
    %v2538 = vld [vmem:[%s13 + $0x20] sm:$0xff]
    %v2539 = vld [vmem:[%s13 + $0x28] sm:$0xff]
    %v2540 = vld [vmem:[%s13 + $0x30] sm:$0xff]
    %v2541 = vld [vmem:[%s13 + $0x38] sm:$0xff]
    %v2542 = vld [vmem:[%s14] sm:$0x1]
    %v2544 = vperm.slane %v2542, 0
    %v2547 = vsel %vm371, %v2533, 0
    %2549 = vmatpush.msra.mxu0 0.0
    %2550 = vmatpush.msra.mxu0 0.0
    %2551 = vmatpush.msra.mxu0 0.0
    %2552 = vmatpush.msra.mxu0 0.0
    %2553 = vmatpush.msra.mxu0 0.0
    %2554 = vmatpush.msra.mxu0 0.0
    %2555 = vmatpush.msra.mxu0 0.0
    %2556 = vmatpush.msra.mxu0 0.0
    %2557 = vmatpush.msra.mxu0 %v2541
    %2558 = vmatpush.msra.mxu0 %v2540
    %2559 = vmatpush.msra.mxu0 %v2539
    %2560 = vmatpush.msra.mxu0 %v2538
    %2561 = vmatpush.msra.mxu0 %v2537
    %2562 = vmatpush.msra.mxu0 %v2536
    %2563 = vmatpush.msra.mxu0 %v2535
    %2564 = vmatpush.msra.mxu0 %v2534
    %2565 = vmatmul.f32.gmra.mxu0 %v2547
    %v2566 = vpop.f32.mrf.mxu0
    %v2567 = vadd.f32 %v2544, %v2566
    %2568 = vdwg.mxu0
    %v2569 = vld [vmem:[%s15] sm:$0x1]
    %v2571 = vperm.slane %v2569, 0
    %v2573 = vmul.f32 %v2567, %v2571
    %v2574 = vld [vmem:[%s16] sm:$0x1]
    %v2576 = vperm.slane %v2574, 0
    %v2578 = vadd.f32 %v2573, %v2576
    %v2579 = vmax.f32 %v2578, 0.0
    %v2580 = vld [vmem:[%s17] sm:$0xff]
    %v2581 = vld [vmem:[%s17 + $0x8] sm:$0xff]
    %v2582 = vld [vmem:[%s17 + $0x10] sm:$0xff]
    %v2583 = vld [vmem:[%s17 + $0x18] sm:$0xff]
    %v2584 = vld [vmem:[%s18] sm:$0x1]
    %v2586 = vperm.slane %v2584, 0
    %v2589 = vsel %vm340, %v2579, 0
    %2591 = vmatpush.msra.mxu0 0.0
    %2592 = vmatpush.msra.mxu0 0.0
    %2593 = vmatpush.msra.mxu0 0.0
    %2594 = vmatpush.msra.mxu0 0.0
    %2595 = vmatpush.msra.mxu0 0.0
    %2596 = vmatpush.msra.mxu0 0.0
    %2597 = vmatpush.msra.mxu0 0.0
    %2598 = vmatpush.msra.mxu0 0.0
    %2599 = vmatpush.msra.mxu0 0.0
    %2600 = vmatpush.msra.mxu0 0.0
    %2601 = vmatpush.msra.mxu0 0.0
    %2602 = vmatpush.msra.mxu0 0.0
    %2603 = vmatpush.msra.mxu0 %v2583
    %2604 = vmatpush.msra.mxu0 %v2582
    %2605 = vmatpush.msra.mxu0 %v2581
    %2606 = vmatpush.msra.mxu0 %v2580
    %2607 = vmatmul.f32.gmra.mxu0 %v2589
    %v2608 = vpop.f32.mrf.mxu0
    %v2609 = vadd.f32 %v2586, %v2608
    %2610 = vdwg.mxu0
    %2611 = vst [vmem:[#allocation19] sm:$0xff] %v2609
    // Predicated region
    $region114: #{tpu_custom_call.1} parent=1 // pred_check
      _
    $region115: #{tpu_custom_call.1} parent=1 // pred_check_branch
      %2613 = sbr.rel (0) target = $region117
    $region116: #{tpu_custom_call.1} parent=1 // pred_region
      %2615 = vsyncadd [#allocation6], 0
      %s2617 = sshll.u32 [#allocation19], 4
      %s2618 = int_to_ptr.vmem [resolvable:$true] %s2617
      %s2619 = sshll.u32 %s19, 4
      %s2620 = int_to_ptr.hbm [resolvable:$true] %s2619
      %2622 = dma.vmem_to_hbm [thread:$0]  %s2618, 128, %s2620, [#allocation6]
    $region117: #{tpu_custom_call.1} parent=1 // pred_fallthru
      _
    // Predicated region
    $region118: #{tpu_custom_call.1} parent=1 // pred_check
      _
    $region119: #{tpu_custom_call.1} parent=1 // pred_check_branch
      %2624 = sbr.rel (0) target = $region121
    $region120: #{tpu_custom_call.1} parent=1 // pred_region
      %2626 = dma.done [#allocation6], 128
    $region121: #{tpu_custom_call.1} parent=1 // pred_fallthru
      _
    %2627 = vsyncpa [#allocation5], 1
    %2628 = vsyncpa [#allocation8], 1
    %2629 = vsyncpa [#allocation11], 1
    %2630 = vsyncpa [#allocation14], 1
    %2631 = vsyncpa [#allocation17], 1
    %2632 = vsyncpa [#allocation6], 1

</llo_original>
